<compile_context>
chip_gen: v5e
topology: v5e:2x2
jax: 0.10.0
libtpu: 0.0.40
codegen_flags: <defaults>
</compile_context>

<pallas_src>
import functools
import math

import jax
import jax.numpy as jnp
from jax.experimental import pallas as pl
from jax.experimental.pallas import tpu as pltpu

LANE = 128
BN_EPS = 1e-5
TARGET_ROWS = 256  # MXU-friendly flattened LHS height (multiple of 128 and 256)


def _make_actor_kernel(num_hidden):
    """Fused kernel: per-call batchnorm -> (linear+swish)*num_hidden -> linear -> tanh.

    Ref order: x, gamma, beta, (w, b)*num_hidden, w_fc, b_fc, out.
    x_ref/out_ref blocks are (C, batch, feat) / (C, batch, act_pad): C whole
    forward calls are handled per grid step.
    """

    def kernel(*refs):
        x_ref, gamma_ref, beta_ref = refs[0], refs[1], refs[2]
        out_ref = refs[-1]
        layer_refs = refs[3:-1]

        x = x_ref[...].astype(jnp.float32)  # (C, B, F)
        C, B, F = x.shape

        # --- BatchNorm1d, training mode, PER CALL: reduce over the batch axis
        # (axis=1) only, so each stacked forward keeps its own whole-batch
        # statistics (reducing over flattened rows would change the model).
        mean = jnp.mean(x, axis=1, keepdims=True)
        var = jnp.mean((x - mean) ** 2, axis=1, keepdims=True)
        h = (x - mean) * jax.lax.rsqrt(var + BN_EPS)
        h = h * gamma_ref[...] + beta_ref[...]  # (1, F) broadcasts over (C, B, F)

        # Flatten calls into rows for the Linear chain: B is a sublane multiple,
        # so merging the leading axes is layout-cheap, and the MXU sees a
        # (C*B, K) LHS tile instead of C separate B-row tiles.
        h = h.reshape(C * B, F)

        # --- hidden layers: Linear + swish (all f32: bf16 operand casts buy
        # nothing at these layer widths and elementwise bf16 is v6e/v7x-only).
        for li in range(num_hidden):
            w = layer_refs[2 * li][...]
            b = layer_refs[2 * li + 1][...]
            h = jnp.dot(h, w, preferred_element_type=jnp.float32) + b
            h = h * jax.nn.sigmoid(h)  # swish(x) = x * sigmoid(x)

        # --- final fc (pre-padded to 128 lanes at init) + tanh: the store is an
        # unmasked, lane-dense 128-wide write.
        w_fc = layer_refs[2 * num_hidden][...]
        b_fc = layer_refs[2 * num_hidden + 1][...]
        act = jnp.tanh(jnp.dot(h, w_fc, preferred_element_type=jnp.float32) + b_fc)

        out_ref[...] = act.reshape(C, B, -1).astype(out_ref.dtype)

    return kernel


def init_ddpg_actor_params(key, ddpgActor_dim, action_size):
    """Param init mirroring the PyTorch module's uniform_init (bias = 0).

    The final fc weight/bias are zero-padded to a 128-lane multiple here, once,
    so the forward path does no eager pad work per call.
    """
    feat = ddpgActor_dim[0]
    params = {
        "gamma": jnp.ones((1, feat), jnp.float32),   # BatchNorm1d weight
        "beta": jnp.zeros((1, feat), jnp.float32),   # BatchNorm1d bias
        "layers": [],
        "action_size": int(action_size),
    }
    dims = list(zip(ddpgActor_dim[:-1], ddpgActor_dim[1:])) + [
        (ddpgActor_dim[-1], action_size)
    ]
    weights = []
    for dim_in, dim_out in dims:
        key, sub = jax.random.split(key)
        # PyTorch hidden_init uses weight.size(0) == out_features for nn.Linear
        lim = 1.0 / math.sqrt(dim_out)
        w = jax.random.uniform(
            sub, (dim_in, dim_out), jnp.float32, minval=-lim, maxval=lim
        )
        b = jnp.zeros((1, dim_out), jnp.float32)
        weights.append((w, b))
    params["layers"] = weights[:-1]

    # Lane-dense output: pad the fc layer to a multiple of 128 columns (once).
    w_fc, b_fc = weights[-1]
    act_pad = LANE * pl.cdiv(action_size, LANE)
    pad = act_pad - action_size
    params["fc"] = (
        jnp.pad(w_fc, ((0, 0), (0, pad))),
        jnp.pad(b_fc, ((0, 0), (0, pad))),
    )
    return params


@functools.partial(jax.jit, static_argnames=("calls_per_block", "action_size"))
def _ddpg_actor_pallas(x, gamma, beta, layer_args, *, calls_per_block, action_size):
    num_calls, batch, feat = x.shape
    C = calls_per_block
    grid = num_calls // C
    num_hidden = len(layer_args) // 2 - 1
    act_pad = layer_args[-1].shape[-1]

    # x / out advance with the grid; every parameter uses a constant index_map
    # so it is DMA'd once and stays resident in VMEM across grid steps.
    in_specs = [pl.BlockSpec((C, batch, feat), lambda i: (i, 0, 0))]
    for a in (gamma, beta) + tuple(layer_args):
        in_specs.append(pl.BlockSpec(a.shape, lambda i: (0, 0)))
    out_specs = pl.BlockSpec((C, batch, act_pad), lambda i: (i, 0, 0))
    out_shape = jax.ShapeDtypeStruct((num_calls, batch, act_pad), jnp.float32)

    # Advisory cost estimate so XLA can schedule around the tiny custom call.
    wshapes = [layer_args[2 * li].shape for li in range(num_hidden + 1)]
    matmul_flops = 2 * batch * sum(di * do for di, do in wshapes)
    flops = int(num_calls * (matmul_flops + 8 * batch * feat))
    transcendentals = int(
        num_calls * batch * (sum(do for _, do in wshapes[:-1]) + act_pad + feat)
    )
    bytes_accessed = int(
        x.size * 4
        + num_calls * batch * act_pad * 4
        + sum(a.size for a in layer_args) * 4
    )

    out = pl.pallas_call(
        _make_actor_kernel(num_hidden),
        out_shape=out_shape,
        grid=(grid,),
        in_specs=in_specs,
        out_specs=out_specs,
        compiler_params=pltpu.CompilerParams(
            dimension_semantics=("parallel",),  # v7x: shard call-blocks across 2 TCs
        ),
        cost_estimate=pl.CostEstimate(
            flops=flops,
            transcendentals=transcendentals,
            bytes_accessed=bytes_accessed,
        ),
    )(x, gamma, beta, *layer_args)

    return out[..., :action_size]


def _choose_calls_per_block(num_calls, batch):
    """How many stacked calls to process per grid step.

    Aim for ~TARGET_ROWS flattened matmul rows per step (multiple of the MXU
    height on all generations), while keeping >= 2 grid steps when possible so
    v7x's two TensorCores both get 'parallel' work.
    """
    c_max = max(1, TARGET_ROWS // max(batch, 1))
    divisors = [d for d in range(1, num_calls + 1)
                if num_calls % d == 0 and d <= c_max]
    multi = [d for d in divisors if num_calls // d >= 2]
    return max(multi) if multi else max(divisors)


def ddpg_actor_forward(x, params, *, calls_per_block=None):
    """Run the fused Pallas kernel.

    x: [batch, feat] (single forward) or [num_calls, batch, feat] (stacked
    forwards; each call gets its own BatchNorm batch statistics).
    Returns [.., batch, action_size] float32.
    """
    squeeze = x.ndim == 2
    if squeeze:
        x = x[None]
    num_calls, batch, feat = x.shape

    if calls_per_block is None:
        calls_per_block = _choose_calls_per_block(num_calls, batch)
    assert num_calls % calls_per_block == 0

    layer_args = tuple()
    for w, b in params["layers"]:
        layer_args += (w, b)
    layer_args += tuple(params["fc"])

    # VMEM sanity check against the 32 MiB default scoped limit (covers v7x's
    # smaller physical VMEM): double-buffered x + out blocks, resident params.
    act_pad = params["fc"][0].shape[-1]
    block_bytes = 4 * 2 * calls_per_block * batch * (feat + act_pad)
    param_bytes = 4 * (sum(a.size for a in layer_args)
                       + params["gamma"].size + params["beta"].size)
    assert block_bytes + param_bytes < 32 * 1024 * 1024, \
        "re-tile calls_per_block: exceeds default scoped VMEM"

    out = _ddpg_actor_pallas(
        x, params["gamma"], params["beta"], layer_args,
        calls_per_block=calls_per_block,
        action_size=params["action_size"],
    )
    return out[0] if squeeze else out


def _reference_forward_single(x, params):
    """Pure-JAX reference for one forward call (whole-batch BN stats)."""
    mean = jnp.mean(x, axis=0, keepdims=True)
    var = jnp.mean((x - mean) ** 2, axis=0, keepdims=True)
    h = (x - mean) / jnp.sqrt(var + BN_EPS)
    h = h * params["gamma"] + params["beta"]
    for w, b in params["layers"]:
        h = h @ w + b
        h = h * jax.nn.sigmoid(h)
    w_fc, b_fc = params["fc"]  # padded cols are exactly zero -> tanh(0)=0, sliced off
    out = jnp.tanh(h @ w_fc + b_fc)
    return out[:, : params["action_size"]]


if __name__ == "__main__":
    # A 2-hidden-layer actor; 64 stacked forward calls so the kernel runs with
    # C=32 calls per grid step (256 flattened matmul rows) over 2 parallel steps.
    ddpgActor_dim = [32, 64, 32]   # state_dim=32 -> 64 -> 32
    action_size = 8
    batch = 8
    num_calls = 64

    key = jax.random.PRNGKey(0)
    key, pkey, xkey = jax.random.split(key, 3)

    params = init_ddpg_actor_params(pkey, ddpgActor_dim, action_size)
    x = jax.random.normal(xkey, (num_calls, batch, ddpgActor_dim[0]), jnp.float32)

    out = jax.block_until_ready(ddpg_actor_forward(x, params))
    assert out.shape == (num_calls, batch, action_size)

    ref = jnp.stack([_reference_forward_single(x[i], params) for i in range(num_calls)])
    assert jnp.allclose(out, ref, atol=1e-5, rtol=1e-5), "mismatch vs reference"

    # Also exercise the single-call (2-D input) convenience path (grid=1, C=1).
    out1 = jax.block_until_ready(ddpg_actor_forward(x[0], params))
    assert out1.shape == (batch, action_size)
    assert jnp.allclose(out1, ref[0], atol=1e-5, rtol=1e-5), "2-D path mismatch"

    print("KERNEL_OK")
</pallas_src>

<mosaic_0001>
module attributes {stable_mosaic.version = 11 : i64} {
  func.func @kernel(%arg0: i32, %arg1: memref<32x8x32xf32, #tpu.memory_space<vmem>>, %arg2: memref<1x32xf32, #tpu.memory_space<vmem>>, %arg3: memref<1x32xf32, #tpu.memory_space<vmem>>, %arg4: memref<32x64xf32, #tpu.memory_space<vmem>>, %arg5: memref<1x64xf32, #tpu.memory_space<vmem>>, %arg6: memref<64x32xf32, #tpu.memory_space<vmem>>, %arg7: memref<1x32xf32, #tpu.memory_space<vmem>>, %arg8: memref<32x128xf32, #tpu.memory_space<vmem>>, %arg9: memref<1x128xf32, #tpu.memory_space<vmem>>, %arg10: memref<32x8x128xf32, #tpu.memory_space<vmem>>) attributes {dimension_semantics = [#tpu.dimension_semantics<parallel>], iteration_bounds = array<i64: 2>, scalar_prefetch = 0 : i64, scratch_operands = 0 : i64, tpu.core_type = #tpu.core_type<tc>, window_params = [{transform_indices = @transform_0, window_bounds = array<i64: 32, 8, 32>}, {pipeline_mode = #tpu.pipeline_mode<synchronous>, transform_indices = @transform_1, window_bounds = array<i64: 1, 32>}, {pipeline_mode = #tpu.pipeline_mode<synchronous>, transform_indices = @transform_2, window_bounds = array<i64: 1, 32>}, {pipeline_mode = #tpu.pipeline_mode<synchronous>, transform_indices = @transform_3, window_bounds = array<i64: 32, 64>}, {pipeline_mode = #tpu.pipeline_mode<synchronous>, transform_indices = @transform_4, window_bounds = array<i64: 1, 64>}, {pipeline_mode = #tpu.pipeline_mode<synchronous>, transform_indices = @transform_5, window_bounds = array<i64: 64, 32>}, {pipeline_mode = #tpu.pipeline_mode<synchronous>, transform_indices = @transform_6, window_bounds = array<i64: 1, 32>}, {pipeline_mode = #tpu.pipeline_mode<synchronous>, transform_indices = @transform_7, window_bounds = array<i64: 32, 128>}, {pipeline_mode = #tpu.pipeline_mode<synchronous>, transform_indices = @transform_8, window_bounds = array<i64: 1, 128>}, {transform_indices = @transform_9, window_bounds = array<i64: 32, 8, 128>}]} {
    %c0 = arith.constant 0 : index
    %c0_0 = arith.constant 0 : index
    %c0_1 = arith.constant 0 : index
    %0 = vector.load %arg1[%c0, %c0_0, %c0_1] : memref<32x8x32xf32, #tpu.memory_space<vmem>>, vector<32x8x32xf32>
    %cst = arith.constant dense<0.000000e+00> : vector<32x32xf32>
    %1 = vector.multi_reduction <add>, %0, %cst [1] : vector<32x8x32xf32> to vector<32x32xf32>
    %2 = vector.shape_cast %1 : vector<32x32xf32> to vector<32x1x32xf32>
    %cst_2 = arith.constant 8.000000e+00 : f32
    %3 = vector.broadcast %cst_2 : f32 to vector<32x1x32xf32>
    %4 = arith.divf %2, %3 : vector<32x1x32xf32>
    %5 = vector.broadcast %4 : vector<32x1x32xf32> to vector<32x8x32xf32>
    %6 = arith.subf %0, %5 : vector<32x8x32xf32>
    %7 = arith.mulf %6, %6 : vector<32x8x32xf32>
    %cst_3 = arith.constant dense<0.000000e+00> : vector<32x32xf32>
    %8 = vector.multi_reduction <add>, %7, %cst_3 [1] : vector<32x8x32xf32> to vector<32x32xf32>
    %9 = vector.shape_cast %8 : vector<32x32xf32> to vector<32x1x32xf32>
    %cst_4 = arith.constant 8.000000e+00 : f32
    %10 = vector.broadcast %cst_4 : f32 to vector<32x1x32xf32>
    %11 = arith.divf %9, %10 : vector<32x1x32xf32>
    %12 = vector.broadcast %4 : vector<32x1x32xf32> to vector<32x8x32xf32>
    %13 = arith.subf %0, %12 : vector<32x8x32xf32>
    %cst_5 = arith.constant 9.99999974E-6 : f32
    %14 = vector.broadcast %cst_5 : f32 to vector<32x1x32xf32>
    %15 = arith.addf %11, %14 : vector<32x1x32xf32>
    %16 = math.rsqrt %15 : vector<32x1x32xf32>
    %17 = vector.broadcast %16 : vector<32x1x32xf32> to vector<32x8x32xf32>
    %18 = arith.mulf %13, %17 : vector<32x8x32xf32>
    %c0_6 = arith.constant 0 : index
    %c0_7 = arith.constant 0 : index
    %19 = vector.load %arg2[%c0_6, %c0_7] : memref<1x32xf32, #tpu.memory_space<vmem>>, vector<1x32xf32>
    %20 = vector.shape_cast %19 : vector<1x32xf32> to vector<1x1x32xf32>
    %21 = vector.broadcast %20 : vector<1x1x32xf32> to vector<32x8x32xf32>
    %22 = arith.mulf %18, %21 : vector<32x8x32xf32>
    %c0_8 = arith.constant 0 : index
    %c0_9 = arith.constant 0 : index
    %23 = vector.load %arg3[%c0_8, %c0_9] : memref<1x32xf32, #tpu.memory_space<vmem>>, vector<1x32xf32>
    %24 = vector.shape_cast %23 : vector<1x32xf32> to vector<1x1x32xf32>
    %25 = vector.broadcast %24 : vector<1x1x32xf32> to vector<32x8x32xf32>
    %26 = arith.addf %22, %25 : vector<32x8x32xf32>
    %27 = vector.shape_cast %26 : vector<32x8x32xf32> to vector<256x32xf32>
    %c0_10 = arith.constant 0 : index
    %c0_11 = arith.constant 0 : index
    %28 = vector.load %arg4[%c0_10, %c0_11] : memref<32x64xf32, #tpu.memory_space<vmem>>, vector<32x64xf32>
    %c0_12 = arith.constant 0 : index
    %c0_13 = arith.constant 0 : index
    %29 = vector.load %arg5[%c0_12, %c0_13] : memref<1x64xf32, #tpu.memory_space<vmem>>, vector<1x64xf32>
    %cst_14 = arith.constant dense<0.000000e+00> : vector<256x64xf32>
    %30 = tpu.matmul %27, %28, %cst_14 {dimension_numbers = #tpu.dot_dimension_numbers<[1], [0], [0], [1], [0, 0, 1, 1], [], []>} : vector<256x32xf32>, vector<32x64xf32>, vector<256x64xf32> -> vector<256x64xf32>
    %31 = vector.broadcast %29 : vector<1x64xf32> to vector<256x64xf32>
    %32 = arith.addf %30, %31 : vector<256x64xf32>
    %33 = arith.negf %32 : vector<256x64xf32>
    %34 = math.exp %33 : vector<256x64xf32>
    %cst_15 = arith.constant 1.000000e+00 : f32
    %35 = vector.broadcast %cst_15 : f32 to vector<256x64xf32>
    %36 = arith.addf %35, %34 : vector<256x64xf32>
    %37 = arith.divf %35, %36 : vector<256x64xf32>
    %38 = arith.mulf %32, %37 : vector<256x64xf32>
    %c0_16 = arith.constant 0 : index
    %c0_17 = arith.constant 0 : index
    %39 = vector.load %arg6[%c0_16, %c0_17] : memref<64x32xf32, #tpu.memory_space<vmem>>, vector<64x32xf32>
    %c0_18 = arith.constant 0 : index
    %c0_19 = arith.constant 0 : index
    %40 = vector.load %arg7[%c0_18, %c0_19] : memref<1x32xf32, #tpu.memory_space<vmem>>, vector<1x32xf32>
    %cst_20 = arith.constant dense<0.000000e+00> : vector<256x32xf32>
    %41 = tpu.matmul %38, %39, %cst_20 {dimension_numbers = #tpu.dot_dimension_numbers<[1], [0], [0], [1], [0, 0, 1, 1], [], []>} : vector<256x64xf32>, vector<64x32xf32>, vector<256x32xf32> -> vector<256x32xf32>
    %42 = vector.broadcast %40 : vector<1x32xf32> to vector<256x32xf32>
    %43 = arith.addf %41, %42 : vector<256x32xf32>
    %44 = arith.negf %43 : vector<256x32xf32>
    %45 = math.exp %44 : vector<256x32xf32>
    %cst_21 = arith.constant 1.000000e+00 : f32
    %46 = vector.broadcast %cst_21 : f32 to vector<256x32xf32>
    %47 = arith.addf %46, %45 : vector<256x32xf32>
    %48 = arith.divf %46, %47 : vector<256x32xf32>
    %49 = arith.mulf %43, %48 : vector<256x32xf32>
    %c0_22 = arith.constant 0 : index
    %c0_23 = arith.constant 0 : index
    %50 = vector.load %arg8[%c0_22, %c0_23] : memref<32x128xf32, #tpu.memory_space<vmem>>, vector<32x128xf32>
    %c0_24 = arith.constant 0 : index
    %c0_25 = arith.constant 0 : index
    %51 = vector.load %arg9[%c0_24, %c0_25] : memref<1x128xf32, #tpu.memory_space<vmem>>, vector<1x128xf32>
    %cst_26 = arith.constant dense<0.000000e+00> : vector<256x128xf32>
    %52 = tpu.matmul %49, %50, %cst_26 {dimension_numbers = #tpu.dot_dimension_numbers<[1], [0], [0], [1], [0, 0, 1, 1], [], []>} : vector<256x32xf32>, vector<32x128xf32>, vector<256x128xf32> -> vector<256x128xf32>
    %53 = vector.broadcast %51 : vector<1x128xf32> to vector<256x128xf32>
    %54 = arith.addf %52, %53 : vector<256x128xf32>
    %55 = math.tanh %54 : vector<256x128xf32>
    %56 = vector.shape_cast %55 : vector<256x128xf32> to vector<32x8x128xf32>
    %c0_27 = arith.constant 0 : index
    %c0_28 = arith.constant 0 : index
    %c0_29 = arith.constant 0 : index
    %57 = vector.load %arg10[%c0_27, %c0_28, %c0_29] : memref<32x8x128xf32, #tpu.memory_space<vmem>>, vector<32x8x128xf32>
    tpu.vector_store %arg10[%c0_27, %c0_28, %c0_29], %56 {strides = array<i32>} : memref<32x8x128xf32, #tpu.memory_space<vmem>>, vector<32x8x128xf32>,
    return
  }
  func.func @transform_0(%arg0: i32) -> (i32, i32, i32) {
    %c0_i32 = arith.constant 0 : i32
    %c0_i32_0 = arith.constant 0 : i32
    %c0_i32_1 = arith.constant 0 : i32
    return %arg0, %c0_i32, %c0_i32_0 : i32, i32, i32
  }
  func.func @transform_1(%arg0: i32) -> (i32, i32) {
    %c0_i32 = arith.constant 0 : i32
    %c0_i32_0 = arith.constant 0 : i32
    %c0_i32_1 = arith.constant 0 : i32
    return %c0_i32, %c0_i32_0 : i32, i32
  }
  func.func @transform_2(%arg0: i32) -> (i32, i32) {
    %c0_i32 = arith.constant 0 : i32
    %c0_i32_0 = arith.constant 0 : i32
    %c0_i32_1 = arith.constant 0 : i32
    return %c0_i32, %c0_i32_0 : i32, i32
  }
  func.func @transform_3(%arg0: i32) -> (i32, i32) {
    %c0_i32 = arith.constant 0 : i32
    %c0_i32_0 = arith.constant 0 : i32
    %c0_i32_1 = arith.constant 0 : i32
    return %c0_i32, %c0_i32_0 : i32, i32
  }
  func.func @transform_4(%arg0: i32) -> (i32, i32) {
    %c0_i32 = arith.constant 0 : i32
    %c0_i32_0 = arith.constant 0 : i32
    %c0_i32_1 = arith.constant 0 : i32
    return %c0_i32, %c0_i32_0 : i32, i32
  }
  func.func @transform_5(%arg0: i32) -> (i32, i32) {
    %c0_i32 = arith.constant 0 : i32
    %c0_i32_0 = arith.constant 0 : i32
    %c0_i32_1 = arith.constant 0 : i32
    return %c0_i32, %c0_i32_0 : i32, i32
  }
  func.func @transform_6(%arg0: i32) -> (i32, i32) {
    %c0_i32 = arith.constant 0 : i32
    %c0_i32_0 = arith.constant 0 : i32
    %c0_i32_1 = arith.constant 0 : i32
    return %c0_i32, %c0_i32_0 : i32, i32
  }
  func.func @transform_7(%arg0: i32) -> (i32, i32) {
    %c0_i32 = arith.constant 0 : i32
    %c0_i32_0 = arith.constant 0 : i32
    %c0_i32_1 = arith.constant 0 : i32
    return %c0_i32, %c0_i32_0 : i32, i32
  }
  func.func @transform_8(%arg0: i32) -> (i32, i32) {
    %c0_i32 = arith.constant 0 : i32
    %c0_i32_0 = arith.constant 0 : i32
    %c0_i32_1 = arith.constant 0 : i32
    return %c0_i32, %c0_i32_0 : i32, i32
  }
  func.func @transform_9(%arg0: i32) -> (i32, i32, i32) {
    %c0_i32 = arith.constant 0 : i32
    %c0_i32_0 = arith.constant 0 : i32
    %c0_i32_1 = arith.constant 0 : i32
    return %arg0, %c0_i32, %c0_i32_0 : i32, i32, i32
  }
}

</mosaic_0001>

<llo_original>
// kernel: _ddpg_actor_pallas.1
$region0: #{_ddpg_actor_pallas.1}
  #allocation0 [shape = 'u32[]', space=smem, size = 0x4, offset = 0x4, fixed_abs, tag = 'smem constant byte address 0x4 - core index']
  #allocation1 [shape = 'u32[72,128]{1,0:T(1,128)}', space=vmem, size = 0x9000, scoped, tag = 'internal scratch']
  %s0 = inlined_call_operand.vmem [shape: f32[64,8,32], index: 0, kind: input, shape index: {}]
  %s1 = inlined_call_operand.vmem [shape: f32[1,32], index: 1, kind: input, shape index: {}]
  %s2 = inlined_call_operand.vmem [shape: f32[1,32], index: 2, kind: input, shape index: {}]
  %s3 = inlined_call_operand.vmem [shape: f32[32,64], index: 3, kind: input, shape index: {}]
  %s4 = inlined_call_operand.vmem [shape: f32[1,64], index: 4, kind: input, shape index: {}]
  %s5 = inlined_call_operand.vmem [shape: f32[64,32], index: 5, kind: input, shape index: {}]
  %s6 = inlined_call_operand.vmem [shape: f32[1,32], index: 6, kind: input, shape index: {}]
  %s7 = inlined_call_operand.vmem [shape: f32[32,128], index: 7, kind: input, shape index: {}]
  %s8 = inlined_call_operand.vmem [shape: f32[1,128], index: 8, kind: input, shape index: {}]
  %s9 = inlined_call_operand.vmem [shape: f32[64,8,128], index: 9, kind: output, shape index: {}]
  %s10 = sld [smem:[#allocation0]]
  $region69: #{_ddpg_actor_pallas.1} parent=0
    _
  %s12 = ssub.s32 1, %s10
  %s13 = scalar_select 0, %s12, %s10
  loop: start=0, step=1, limit=4
  $region2: #{_ddpg_actor_pallas.1} parent=0 // loop_pre_header
    _
  $region3: #{_ddpg_actor_pallas.1} parent=0 // loop_header
    %s15 = sphi 0, %s19
    %p16 = scmp.ge.s32.totalorder %s15, 4
    %s25 = sphi 0, %s27
    %s28 = sphi 0, %s25
    %s29 = sphi 0, %s28
    %s45 = sphi 0, %s29
    %s49 = sphi 0, %s49
    %s51 = sphi 0, %s49
    %s52 = sphi 0, %s51
    %s66 = sphi 0, %s52
    %s70 = sphi 0, %s70
    %s72 = sphi 0, %s70
    %s73 = sphi 0, %s72
    %s87 = sphi 0, %s73
    %s91 = sphi 0, %s91
    %s93 = sphi 0, %s91
    %s94 = sphi 0, %s93
    %s108 = sphi 0, %s94
    %s112 = sphi 0, %s112
    %s114 = sphi 0, %s112
    %s115 = sphi 0, %s114
    %s129 = sphi 0, %s115
    %s133 = sphi 0, %s133
    %s135 = sphi 0, %s133
    %s136 = sphi 0, %s135
    %s150 = sphi 0, %s136
    %s154 = sphi 0, %s154
    %s156 = sphi 0, %s154
    %s157 = sphi 0, %s156
    %s171 = sphi 0, %s157
    %s175 = sphi 0, %s175
    %s177 = sphi 0, %s175
    %s178 = sphi 0, %s177
    %s192 = sphi 0, %s178
    %s196 = sphi 0, %s196
    %s198 = sphi 0, %s196
    %s199 = sphi 0, %s198
    %s213 = sphi 0, %s199
    %s219 = sphi 0, %s221
    %s222 = sphi 0, %s219
    %s223 = sphi 0, %s222
    %s239 = sphi 0, %s223
  $region4: #{_ddpg_actor_pallas.1} parent=0 // loop_header_branch
    %18 = sbr.rel (%p16) target = $region8
  $region5: #{_ddpg_actor_pallas.1} parent=0 // loop_body
    %s20 = ssub.s32 %s15, 1
    %s21 = ssub.s32 %s15, 2
    %s22 = sadd.s32 %s15, 1
    %s23 = ssub.s32 %s15, %s22
    %p24 = scmp.eq.s32.totalorder %s23, 0
    %s26 = sadd.s32 %s25, 1
    %s27 = scalar_select %p24, %s25, %s26
    %p30 = pneg %p24
    %p31 = scmp.eq.s32.totalorder %s15, 1
    %p32 = por %p30, %p31
    %p33 = scmp.ne.s32.totalorder %s25, %s28
    %p34 = scmp.eq.s32.totalorder %s15, 0
    %p35 = por %p33, %p34
    %p36 = scmp.ne.s32.totalorder %s25, %s28
    %p37 = scmp.eq.s32.totalorder %s20, 1
    %p38 = por %p36, %p37
    %p39 = scmp.ne.s32.totalorder %s28, %s29
    %p40 = scmp.eq.s32.totalorder %s20, 0
    %p41 = por %p39, %p40
    %p42 = scmp.ne.s32.totalorder %s28, %s29
    %p43 = scmp.eq.s32.totalorder %s21, 1
    %p44 = por %p42, %p43
    %p46 = scmp.ne.s32.totalorder %s29, %s45
    %p47 = scmp.eq.s32.totalorder %s21, 0
    %p48 = por %p46, %p47
    %s50 = sadd.s32 %s49, 1
    %p53 = scmp.eq.s32.totalorder %s15, 1
    %p54 = scmp.ne.s32.totalorder %s49, %s51
    %p55 = scmp.eq.s32.totalorder %s15, 0
    %p56 = por %p54, %p55
    %p57 = scmp.ne.s32.totalorder %s49, %s51
    %p58 = scmp.eq.s32.totalorder %s20, 1
    %p59 = por %p57, %p58
    %p60 = scmp.ne.s32.totalorder %s51, %s52
    %p61 = scmp.eq.s32.totalorder %s20, 0
    %p62 = por %p60, %p61
    %p63 = scmp.ne.s32.totalorder %s51, %s52
    %p64 = scmp.eq.s32.totalorder %s21, 1
    %p65 = por %p63, %p64
    %p67 = scmp.ne.s32.totalorder %s52, %s66
    %p68 = scmp.eq.s32.totalorder %s21, 0
    %p69 = por %p67, %p68
    %s71 = sadd.s32 %s70, 1
    %p74 = scmp.eq.s32.totalorder %s15, 1
    %p75 = scmp.ne.s32.totalorder %s70, %s72
    %p76 = scmp.eq.s32.totalorder %s15, 0
    %p77 = por %p75, %p76
    %p78 = scmp.ne.s32.totalorder %s70, %s72
    %p79 = scmp.eq.s32.totalorder %s20, 1
    %p80 = por %p78, %p79
    %p81 = scmp.ne.s32.totalorder %s72, %s73
    %p82 = scmp.eq.s32.totalorder %s20, 0
    %p83 = por %p81, %p82
    %p84 = scmp.ne.s32.totalorder %s72, %s73
    %p85 = scmp.eq.s32.totalorder %s21, 1
    %p86 = por %p84, %p85
    %p88 = scmp.ne.s32.totalorder %s73, %s87
    %p89 = scmp.eq.s32.totalorder %s21, 0
    %p90 = por %p88, %p89
    %s92 = sadd.s32 %s91, 1
    %p95 = scmp.eq.s32.totalorder %s15, 1
    %p96 = scmp.ne.s32.totalorder %s91, %s93
    %p97 = scmp.eq.s32.totalorder %s15, 0
    %p98 = por %p96, %p97
    %p99 = scmp.ne.s32.totalorder %s91, %s93
    %p100 = scmp.eq.s32.totalorder %s20, 1
    %p101 = por %p99, %p100
    %p102 = scmp.ne.s32.totalorder %s93, %s94
    %p103 = scmp.eq.s32.totalorder %s20, 0
    %p104 = por %p102, %p103
    %p105 = scmp.ne.s32.totalorder %s93, %s94
    %p106 = scmp.eq.s32.totalorder %s21, 1
    %p107 = por %p105, %p106
    %p109 = scmp.ne.s32.totalorder %s94, %s108
    %p110 = scmp.eq.s32.totalorder %s21, 0
    %p111 = por %p109, %p110
    %s113 = sadd.s32 %s112, 1
    %p116 = scmp.eq.s32.totalorder %s15, 1
    %p117 = scmp.ne.s32.totalorder %s112, %s114
    %p118 = scmp.eq.s32.totalorder %s15, 0
    %p119 = por %p117, %p118
    %p120 = scmp.ne.s32.totalorder %s112, %s114
    %p121 = scmp.eq.s32.totalorder %s20, 1
    %p122 = por %p120, %p121
    %p123 = scmp.ne.s32.totalorder %s114, %s115
    %p124 = scmp.eq.s32.totalorder %s20, 0
    %p125 = por %p123, %p124
    %p126 = scmp.ne.s32.totalorder %s114, %s115
    %p127 = scmp.eq.s32.totalorder %s21, 1
    %p128 = por %p126, %p127
    %p130 = scmp.ne.s32.totalorder %s115, %s129
    %p131 = scmp.eq.s32.totalorder %s21, 0
    %p132 = por %p130, %p131
    %s134 = sadd.s32 %s133, 1
    %p137 = scmp.eq.s32.totalorder %s15, 1
    %p138 = scmp.ne.s32.totalorder %s133, %s135
    %p139 = scmp.eq.s32.totalorder %s15, 0
    %p140 = por %p138, %p139
    %p141 = scmp.ne.s32.totalorder %s133, %s135
    %p142 = scmp.eq.s32.totalorder %s20, 1
    %p143 = por %p141, %p142
    %p144 = scmp.ne.s32.totalorder %s135, %s136
    %p145 = scmp.eq.s32.totalorder %s20, 0
    %p146 = por %p144, %p145
    %p147 = scmp.ne.s32.totalorder %s135, %s136
    %p148 = scmp.eq.s32.totalorder %s21, 1
    %p149 = por %p147, %p148
    %p151 = scmp.ne.s32.totalorder %s136, %s150
    %p152 = scmp.eq.s32.totalorder %s21, 0
    %p153 = por %p151, %p152
    %s155 = sadd.s32 %s154, 1
    %p158 = scmp.eq.s32.totalorder %s15, 1
    %p159 = scmp.ne.s32.totalorder %s154, %s156
    %p160 = scmp.eq.s32.totalorder %s15, 0
    %p161 = por %p159, %p160
    %p162 = scmp.ne.s32.totalorder %s154, %s156
    %p163 = scmp.eq.s32.totalorder %s20, 1
    %p164 = por %p162, %p163
    %p165 = scmp.ne.s32.totalorder %s156, %s157
    %p166 = scmp.eq.s32.totalorder %s20, 0
    %p167 = por %p165, %p166
    %p168 = scmp.ne.s32.totalorder %s156, %s157
    %p169 = scmp.eq.s32.totalorder %s21, 1
    %p170 = por %p168, %p169
    %p172 = scmp.ne.s32.totalorder %s157, %s171
    %p173 = scmp.eq.s32.totalorder %s21, 0
    %p174 = por %p172, %p173
    %s176 = sadd.s32 %s175, 1
    %p179 = scmp.eq.s32.totalorder %s15, 1
    %p180 = scmp.ne.s32.totalorder %s175, %s177
    %p181 = scmp.eq.s32.totalorder %s15, 0
    %p182 = por %p180, %p181
    %p183 = scmp.ne.s32.totalorder %s175, %s177
    %p184 = scmp.eq.s32.totalorder %s20, 1
    %p185 = por %p183, %p184
    %p186 = scmp.ne.s32.totalorder %s177, %s178
    %p187 = scmp.eq.s32.totalorder %s20, 0
    %p188 = por %p186, %p187
    %p189 = scmp.ne.s32.totalorder %s177, %s178
    %p190 = scmp.eq.s32.totalorder %s21, 1
    %p191 = por %p189, %p190
    %p193 = scmp.ne.s32.totalorder %s178, %s192
    %p194 = scmp.eq.s32.totalorder %s21, 0
    %p195 = por %p193, %p194
    %s197 = sadd.s32 %s196, 1
    %p200 = scmp.eq.s32.totalorder %s15, 1
    %p201 = scmp.ne.s32.totalorder %s196, %s198
    %p202 = scmp.eq.s32.totalorder %s15, 0
    %p203 = por %p201, %p202
    %p204 = scmp.ne.s32.totalorder %s196, %s198
    %p205 = scmp.eq.s32.totalorder %s20, 1
    %p206 = por %p204, %p205
    %p207 = scmp.ne.s32.totalorder %s198, %s199
    %p208 = scmp.eq.s32.totalorder %s20, 0
    %p209 = por %p207, %p208
    %p210 = scmp.ne.s32.totalorder %s198, %s199
    %p211 = scmp.eq.s32.totalorder %s21, 1
    %p212 = por %p210, %p211
    %p214 = scmp.ne.s32.totalorder %s199, %s213
    %p215 = scmp.eq.s32.totalorder %s21, 0
    %p216 = por %p214, %p215
    %s217 = ssub.s32 %s15, %s22
    %p218 = scmp.eq.s32.totalorder %s217, 0
    %s220 = sadd.s32 %s219, 1
    %s221 = scalar_select %p218, %s219, %s220
    %p224 = pneg %p218
    %p225 = scmp.eq.s32.totalorder %s15, 1
    %p226 = por %p224, %p225
    %p227 = scmp.ne.s32.totalorder %s219, %s222
    %p228 = scmp.eq.s32.totalorder %s15, 0
    %p229 = por %p227, %p228
    %p230 = scmp.ne.s32.totalorder %s219, %s222
    %p231 = scmp.eq.s32.totalorder %s20, 1
    %p232 = por %p230, %p231
    %p233 = scmp.ne.s32.totalorder %s222, %s223
    %p234 = scmp.eq.s32.totalorder %s20, 0
    %p235 = por %p233, %p234
    %p236 = scmp.ne.s32.totalorder %s222, %s223
    %p237 = scmp.eq.s32.totalorder %s21, 1
    %p238 = por %p236, %p237
    %p240 = scmp.ne.s32.totalorder %s223, %s239
    %p241 = scmp.eq.s32.totalorder %s21, 0
    %p242 = por %p240, %p241
    %p243 = scmp.le.s32.totalorder 1, %s15
    %p244 = scmp.lt.s32.totalorder %s15, 3
    %p245 = pnand %p243, %p244
    %p246 = pneg %p245
    // Predicated region
    $region9: #{_ddpg_actor_pallas.1} parent=5 // pred_check
      _
    $region10: #{_ddpg_actor_pallas.1} parent=5 // pred_check_branch
      %248 = sbr.rel (%p245) target = $region12
    $region11: #{_ddpg_actor_pallas.1} parent=5 // pred_region
      %s249 = ssub.s32 %s15, 1
      // Predicated region
      $region13: #{_ddpg_actor_pallas.1} parent=11 // pred_check
        %p250 = pneg %p62
      $region14: #{_ddpg_actor_pallas.1} parent=11 // pred_check_branch
        %252 = sbr.rel (%p250) target = $region16
      $region15: #{_ddpg_actor_pallas.1} parent=11 // pred_region
        _
      $region16: #{_ddpg_actor_pallas.1} parent=11 // pred_fallthru
        _
      // Predicated region
      $region17: #{_ddpg_actor_pallas.1} parent=11 // pred_check
        %p253 = pneg %p83
      $region18: #{_ddpg_actor_pallas.1} parent=11 // pred_check_branch
        %255 = sbr.rel (%p253) target = $region20
      $region19: #{_ddpg_actor_pallas.1} parent=11 // pred_region
        _
      $region20: #{_ddpg_actor_pallas.1} parent=11 // pred_fallthru
        _
      // Predicated region
      $region21: #{_ddpg_actor_pallas.1} parent=11 // pred_check
        %p256 = pneg %p104
      $region22: #{_ddpg_actor_pallas.1} parent=11 // pred_check_branch
        %258 = sbr.rel (%p256) target = $region24
      $region23: #{_ddpg_actor_pallas.1} parent=11 // pred_region
        _
      $region24: #{_ddpg_actor_pallas.1} parent=11 // pred_fallthru
        _
      // Predicated region
      $region25: #{_ddpg_actor_pallas.1} parent=11 // pred_check
        %p259 = pneg %p125
      $region26: #{_ddpg_actor_pallas.1} parent=11 // pred_check_branch
        %261 = sbr.rel (%p259) target = $region28
      $region27: #{_ddpg_actor_pallas.1} parent=11 // pred_region
        _
      $region28: #{_ddpg_actor_pallas.1} parent=11 // pred_fallthru
        _
      // Predicated region
      $region29: #{_ddpg_actor_pallas.1} parent=11 // pred_check
        %p262 = pneg %p146
      $region30: #{_ddpg_actor_pallas.1} parent=11 // pred_check_branch
        %264 = sbr.rel (%p262) target = $region32
      $region31: #{_ddpg_actor_pallas.1} parent=11 // pred_region
        _
      $region32: #{_ddpg_actor_pallas.1} parent=11 // pred_fallthru
        _
      // Predicated region
      $region33: #{_ddpg_actor_pallas.1} parent=11 // pred_check
        %p265 = pneg %p167
      $region34: #{_ddpg_actor_pallas.1} parent=11 // pred_check_branch
        %267 = sbr.rel (%p265) target = $region36
      $region35: #{_ddpg_actor_pallas.1} parent=11 // pred_region
        _
      $region36: #{_ddpg_actor_pallas.1} parent=11 // pred_fallthru
        _
      // Predicated region
      $region37: #{_ddpg_actor_pallas.1} parent=11 // pred_check
        %p268 = pneg %p188
      $region38: #{_ddpg_actor_pallas.1} parent=11 // pred_check_branch
        %270 = sbr.rel (%p268) target = $region40
      $region39: #{_ddpg_actor_pallas.1} parent=11 // pred_region
        _
      $region40: #{_ddpg_actor_pallas.1} parent=11 // pred_fallthru
        _
      // Predicated region
      $region41: #{_ddpg_actor_pallas.1} parent=11 // pred_check
        %p271 = pneg %p209
      $region42: #{_ddpg_actor_pallas.1} parent=11 // pred_check_branch
        %273 = sbr.rel (%p271) target = $region44
      $region43: #{_ddpg_actor_pallas.1} parent=11 // pred_region
        _
      $region44: #{_ddpg_actor_pallas.1} parent=11 // pred_fallthru
        _
    $region12: #{_ddpg_actor_pallas.1} parent=5 // pred_fallthru
      _
    %p274 = scmp.lt.s32.totalorder %s15, 2
    // Predicated region
    $region45: #{_ddpg_actor_pallas.1} parent=5 // pred_check
      %p275 = pneg %p274
    $region46: #{_ddpg_actor_pallas.1} parent=5 // pred_check_branch
      %277 = sbr.rel (%p275) target = $region48
    $region47: #{_ddpg_actor_pallas.1} parent=5 // pred_region
      // Predicated region
      $region49: #{_ddpg_actor_pallas.1} parent=47 // pred_check
        %p278 = pneg %p35
      $region50: #{_ddpg_actor_pallas.1} parent=47 // pred_check_branch
        %280 = sbr.rel (%p278) target = $region52
      $region51: #{_ddpg_actor_pallas.1} parent=47 // pred_region
        %s281 = smul.u32 32, %s15
        %p282 = scmp.lt.s32.totalorder %s281, 63
        %s283 = scalar_select %p282, %s281, 63
        %s284 = smul.addr %s283, 8
        %s285 = scalar_lea.vmem %s0, %s284
        %s286 = smul.u32 32, %s15
      $region52: #{_ddpg_actor_pallas.1} parent=47 // pred_fallthru
        _
    $region48: #{_ddpg_actor_pallas.1} parent=5 // pred_fallthru
      _
    %p287 = scmp.le.s32.totalorder 1, %s15
    %p288 = scmp.lt.s32.totalorder %s15, 3
    %p289 = pnand %p287, %p288
    %p290 = pneg %p289
    // Predicated region
    $region53: #{_ddpg_actor_pallas.1} parent=5 // pred_check
      _
    $region54: #{_ddpg_actor_pallas.1} parent=5 // pred_check_branch
      %292 = sbr.rel (%p289) target = $region56
    $region55: #{_ddpg_actor_pallas.1} parent=5 // pred_region
      %s293 = ssub.s32 %s15, 1
      %s294 = smul.u32 32, %s20
      %p295 = scmp.lt.s32.totalorder %s294, 63
      %s296 = scalar_select %p295, %s294, 63
      %s297 = smul.addr %s296, 8
      %s298 = scalar_lea.vmem %s0, %s297
      %p299 = pneg %p41
      %p300 = pneg %p38
      %p301 = pneg %p62
      %p302 = pneg %p59
      %p303 = pneg %p83
      %p304 = pneg %p80
      %p305 = pneg %p104
      %p306 = pneg %p101
      %p307 = pneg %p125
      %p308 = pneg %p122
      %p309 = pneg %p146
      %p310 = pneg %p143
      %p311 = pneg %p167
      %p312 = pneg %p164
      %p313 = pneg %p188
      %p314 = pneg %p185
      %p315 = pneg %p209
      %p316 = pneg %p206
      %p317 = pneg %p235
      %p318 = pneg %p232
      %s319 = smul.u32 32, %s20
      %p320 = scmp.lt.s32.totalorder %s319, 63
      %s321 = scalar_select %p320, %s319, 63
      %s322 = smul.addr %s321, 8
      %s323 = scalar_lea.vmem %s9, %s322
      %s324 = smul.u32 32, %s20
      %p325 = scmp.lt.s32.totalorder %s324, 63
      %s326 = scalar_select %p325, %s324, 63
      %s327 = smul.addr %s326, 8
      %s328 = scalar_lea.vmem %s0, %s327
      %s329 = smul.u32 32, %s20
      %s330 = smul.u32 32, %s20
      %p331 = scmp.lt.s32.totalorder %s330, 63
      %s332 = scalar_select %p331, %s330, 63
      %s333 = smul.addr %s332, 8
      %s334 = scalar_lea.vmem %s9, %s333
      %s335 = smul.u32 32, %s20
      %v336 = vld [vmem:[%s328] sm:$0xff]
      %v337 = vld [vmem:[%s328 + $0x8] sm:$0xff]
      %v338 = vld [vmem:[%s328 + $0x10] sm:$0xff]
      %v339 = vld [vmem:[%s328 + $0x18] sm:$0xff]
      %v340 = vld [vmem:[%s328 + $0x20] sm:$0xff]
      %v341 = vld [vmem:[%s328 + $0x28] sm:$0xff]
      %v342 = vld [vmem:[%s328 + $0x30] sm:$0xff]
      %v343 = vld [vmem:[%s328 + $0x38] sm:$0xff]
      %v344 = vld [vmem:[%s328 + $0x40] sm:$0xff]
      %v345 = vld [vmem:[%s328 + $0x48] sm:$0xff]
      %v346 = vld [vmem:[%s328 + $0x50] sm:$0xff]
      %v347 = vld [vmem:[%s328 + $0x58] sm:$0xff]
      %v348 = vld [vmem:[%s328 + $0x60] sm:$0xff]
      %v349 = vld [vmem:[%s328 + $0x68] sm:$0xff]
      %v350 = vld [vmem:[%s328 + $0x70] sm:$0xff]
      %v351 = vld [vmem:[%s328 + $0x78] sm:$0xff]
      %v352 = vld [vmem:[%s328 + $0x80] sm:$0xff]
      %v353 = vld [vmem:[%s328 + $0x88] sm:$0xff]
      %v354 = vld [vmem:[%s328 + $0x90] sm:$0xff]
      %v355 = vld [vmem:[%s328 + $0x98] sm:$0xff]
      %v356 = vld [vmem:[%s328 + $0xa0] sm:$0xff]
      %v357 = vld [vmem:[%s328 + $0xa8] sm:$0xff]
      %v358 = vld [vmem:[%s328 + $0xb0] sm:$0xff]
      %v359 = vld [vmem:[%s328 + $0xb8] sm:$0xff]
      %v360 = vld [vmem:[%s328 + $0xc0] sm:$0xff]
      %v361 = vld [vmem:[%s328 + $0xc8] sm:$0xff]
      %v362 = vld [vmem:[%s328 + $0xd0] sm:$0xff]
      %v363 = vld [vmem:[%s328 + $0xd8] sm:$0xff]
      %v364 = vld [vmem:[%s328 + $0xe0] sm:$0xff]
      %v365 = vld [vmem:[%s328 + $0xe8] sm:$0xff]
      %v366 = vld [vmem:[%s328 + $0xf0] sm:$0xff]
      %v367 = vld [vmem:[%s328 + $0xf8] sm:$0xff]
      %vm368 = vcmask 261120
      %v369 = vsel %vm368, %v336, 0.0
      %v370 = vrot.slane %v369, 4
      %v371 = vadd.f32 %v369, %v370
      %v372 = vrot.slane %v371, 2
      %v373 = vadd.f32 %v371, %v372
      %v374 = vrot.slane %v373, 1
      %v375 = vadd.f32 %v373, %v374
      %v376 = vsel %vm368, %v337, 0.0
      %v377 = vrot.slane %v376, 4
      %v378 = vadd.f32 %v376, %v377
      %v379 = vrot.slane %v378, 2
      %v380 = vadd.f32 %v378, %v379
      %v381 = vrot.slane %v380, 1
      %v382 = vadd.f32 %v380, %v381
      %v383 = vsel %vm368, %v338, 0.0
      %v384 = vrot.slane %v383, 4
      %v385 = vadd.f32 %v383, %v384
      %v386 = vrot.slane %v385, 2
      %v387 = vadd.f32 %v385, %v386
      %v388 = vrot.slane %v387, 1
      %v389 = vadd.f32 %v387, %v388
      %v390 = vsel %vm368, %v339, 0.0
      %v391 = vrot.slane %v390, 4
      %v392 = vadd.f32 %v390, %v391
      %v393 = vrot.slane %v392, 2
      %v394 = vadd.f32 %v392, %v393
      %v395 = vrot.slane %v394, 1
      %v396 = vadd.f32 %v394, %v395
      %v397 = vsel %vm368, %v340, 0.0
      %v398 = vrot.slane %v397, 4
      %v399 = vadd.f32 %v397, %v398
      %v400 = vrot.slane %v399, 2
      %v401 = vadd.f32 %v399, %v400
      %v402 = vrot.slane %v401, 1
      %v403 = vadd.f32 %v401, %v402
      %v404 = vsel %vm368, %v341, 0.0
      %v405 = vrot.slane %v404, 4
      %v406 = vadd.f32 %v404, %v405
      %v407 = vrot.slane %v406, 2
      %v408 = vadd.f32 %v406, %v407
      %v409 = vrot.slane %v408, 1
      %v410 = vadd.f32 %v408, %v409
      %v411 = vsel %vm368, %v342, 0.0
      %v412 = vrot.slane %v411, 4
      %v413 = vadd.f32 %v411, %v412
      %v414 = vrot.slane %v413, 2
      %v415 = vadd.f32 %v413, %v414
      %v416 = vrot.slane %v415, 1
      %v417 = vadd.f32 %v415, %v416
      %v418 = vsel %vm368, %v343, 0.0
      %v419 = vrot.slane %v418, 4
      %v420 = vadd.f32 %v418, %v419
      %v421 = vrot.slane %v420, 2
      %v422 = vadd.f32 %v420, %v421
      %v423 = vrot.slane %v422, 1
      %v424 = vadd.f32 %v422, %v423
      %v425 = vsel %vm368, %v344, 0.0
      %v426 = vrot.slane %v425, 4
      %v427 = vadd.f32 %v425, %v426
      %v428 = vrot.slane %v427, 2
      %v429 = vadd.f32 %v427, %v428
      %v430 = vrot.slane %v429, 1
      %v431 = vadd.f32 %v429, %v430
      %v432 = vsel %vm368, %v345, 0.0
      %v433 = vrot.slane %v432, 4
      %v434 = vadd.f32 %v432, %v433
      %v435 = vrot.slane %v434, 2
      %v436 = vadd.f32 %v434, %v435
      %v437 = vrot.slane %v436, 1
      %v438 = vadd.f32 %v436, %v437
      %v439 = vsel %vm368, %v346, 0.0
      %v440 = vrot.slane %v439, 4
      %v441 = vadd.f32 %v439, %v440
      %v442 = vrot.slane %v441, 2
      %v443 = vadd.f32 %v441, %v442
      %v444 = vrot.slane %v443, 1
      %v445 = vadd.f32 %v443, %v444
      %v446 = vsel %vm368, %v347, 0.0
      %v447 = vrot.slane %v446, 4
      %v448 = vadd.f32 %v446, %v447
      %v449 = vrot.slane %v448, 2
      %v450 = vadd.f32 %v448, %v449
      %v451 = vrot.slane %v450, 1
      %v452 = vadd.f32 %v450, %v451
      %v453 = vsel %vm368, %v348, 0.0
      %v454 = vrot.slane %v453, 4
      %v455 = vadd.f32 %v453, %v454
      %v456 = vrot.slane %v455, 2
      %v457 = vadd.f32 %v455, %v456
      %v458 = vrot.slane %v457, 1
      %v459 = vadd.f32 %v457, %v458
      %v460 = vsel %vm368, %v349, 0.0
      %v461 = vrot.slane %v460, 4
      %v462 = vadd.f32 %v460, %v461
      %v463 = vrot.slane %v462, 2
      %v464 = vadd.f32 %v462, %v463
      %v465 = vrot.slane %v464, 1
      %v466 = vadd.f32 %v464, %v465
      %v467 = vsel %vm368, %v350, 0.0
      %v468 = vrot.slane %v467, 4
      %v469 = vadd.f32 %v467, %v468
      %v470 = vrot.slane %v469, 2
      %v471 = vadd.f32 %v469, %v470
      %v472 = vrot.slane %v471, 1
      %v473 = vadd.f32 %v471, %v472
      %v474 = vsel %vm368, %v351, 0.0
      %v475 = vrot.slane %v474, 4
      %v476 = vadd.f32 %v474, %v475
      %v477 = vrot.slane %v476, 2
      %v478 = vadd.f32 %v476, %v477
      %v479 = vrot.slane %v478, 1
      %v480 = vadd.f32 %v478, %v479
      %v481 = vsel %vm368, %v352, 0.0
      %v482 = vrot.slane %v481, 4
      %v483 = vadd.f32 %v481, %v482
      %v484 = vrot.slane %v483, 2
      %v485 = vadd.f32 %v483, %v484
      %v486 = vrot.slane %v485, 1
      %v487 = vadd.f32 %v485, %v486
      %v488 = vsel %vm368, %v353, 0.0
      %v489 = vrot.slane %v488, 4
      %v490 = vadd.f32 %v488, %v489
      %v491 = vrot.slane %v490, 2
      %v492 = vadd.f32 %v490, %v491
      %v493 = vrot.slane %v492, 1
      %v494 = vadd.f32 %v492, %v493
      %v495 = vsel %vm368, %v354, 0.0
      %v496 = vrot.slane %v495, 4
      %v497 = vadd.f32 %v495, %v496
      %v498 = vrot.slane %v497, 2
      %v499 = vadd.f32 %v497, %v498
      %v500 = vrot.slane %v499, 1
      %v501 = vadd.f32 %v499, %v500
      %v502 = vsel %vm368, %v355, 0.0
      %v503 = vrot.slane %v502, 4
      %v504 = vadd.f32 %v502, %v503
      %v505 = vrot.slane %v504, 2
      %v506 = vadd.f32 %v504, %v505
      %v507 = vrot.slane %v506, 1
      %v508 = vadd.f32 %v506, %v507
      %v509 = vsel %vm368, %v356, 0.0
      %v510 = vrot.slane %v509, 4
      %v511 = vadd.f32 %v509, %v510
      %v512 = vrot.slane %v511, 2
      %v513 = vadd.f32 %v511, %v512
      %v514 = vrot.slane %v513, 1
      %v515 = vadd.f32 %v513, %v514
      %v516 = vsel %vm368, %v357, 0.0
      %v517 = vrot.slane %v516, 4
      %v518 = vadd.f32 %v516, %v517
      %v519 = vrot.slane %v518, 2
      %v520 = vadd.f32 %v518, %v519
      %v521 = vrot.slane %v520, 1
      %v522 = vadd.f32 %v520, %v521
      %v523 = vsel %vm368, %v358, 0.0
      %v524 = vrot.slane %v523, 4
      %v525 = vadd.f32 %v523, %v524
      %v526 = vrot.slane %v525, 2
      %v527 = vadd.f32 %v525, %v526
      %v528 = vrot.slane %v527, 1
      %v529 = vadd.f32 %v527, %v528
      %v530 = vsel %vm368, %v359, 0.0
      %v531 = vrot.slane %v530, 4
      %v532 = vadd.f32 %v530, %v531
      %v533 = vrot.slane %v532, 2
      %v534 = vadd.f32 %v532, %v533
      %v535 = vrot.slane %v534, 1
      %v536 = vadd.f32 %v534, %v535
      %v537 = vsel %vm368, %v360, 0.0
      %v538 = vrot.slane %v537, 4
      %v539 = vadd.f32 %v537, %v538
      %v540 = vrot.slane %v539, 2
      %v541 = vadd.f32 %v539, %v540
      %v542 = vrot.slane %v541, 1
      %v543 = vadd.f32 %v541, %v542
      %v544 = vsel %vm368, %v361, 0.0
      %v545 = vrot.slane %v544, 4
      %v546 = vadd.f32 %v544, %v545
      %v547 = vrot.slane %v546, 2
      %v548 = vadd.f32 %v546, %v547
      %v549 = vrot.slane %v548, 1
      %v550 = vadd.f32 %v548, %v549
      %v551 = vsel %vm368, %v362, 0.0
      %v552 = vrot.slane %v551, 4
      %v553 = vadd.f32 %v551, %v552
      %v554 = vrot.slane %v553, 2
      %v555 = vadd.f32 %v553, %v554
      %v556 = vrot.slane %v555, 1
      %v557 = vadd.f32 %v555, %v556
      %v558 = vsel %vm368, %v363, 0.0
      %v559 = vrot.slane %v558, 4
      %v560 = vadd.f32 %v558, %v559
      %v561 = vrot.slane %v560, 2
      %v562 = vadd.f32 %v560, %v561
      %v563 = vrot.slane %v562, 1
      %v564 = vadd.f32 %v562, %v563
      %v565 = vsel %vm368, %v364, 0.0
      %v566 = vrot.slane %v565, 4
      %v567 = vadd.f32 %v565, %v566
      %v568 = vrot.slane %v567, 2
      %v569 = vadd.f32 %v567, %v568
      %v570 = vrot.slane %v569, 1
      %v571 = vadd.f32 %v569, %v570
      %v572 = vsel %vm368, %v365, 0.0
      %v573 = vrot.slane %v572, 4
      %v574 = vadd.f32 %v572, %v573
      %v575 = vrot.slane %v574, 2
      %v576 = vadd.f32 %v574, %v575
      %v577 = vrot.slane %v576, 1
      %v578 = vadd.f32 %v576, %v577
      %v579 = vsel %vm368, %v366, 0.0
      %v580 = vrot.slane %v579, 4
      %v581 = vadd.f32 %v579, %v580
      %v582 = vrot.slane %v581, 2
      %v583 = vadd.f32 %v581, %v582
      %v584 = vrot.slane %v583, 1
      %v585 = vadd.f32 %v583, %v584
      %v586 = vsel %vm368, %v367, 0.0
      %v587 = vrot.slane %v586, 4
      %v588 = vadd.f32 %v586, %v587
      %v589 = vrot.slane %v588, 2
      %v590 = vadd.f32 %v588, %v589
      %v591 = vrot.slane %v590, 1
      %v592 = vadd.f32 %v590, %v591
      %v593 = vrcp.pop 8.0
      %v594 = vmul.f32 8.0, %v593
      %v595 = vsub.f32 1.0, %v594
      %v596 = vmul.f32 %v593, %v595
      %v597 = vadd.f32 %v593, %v596
      %vm598 = vweird.f32 %v593
      %v599 = vsel %vm598, %v593, %v597
      %v600 = vmul.f32 %v375, %v599
      %v601 = vmul.f32 %v382, %v599
      %v602 = vmul.f32 %v389, %v599
      %v603 = vmul.f32 %v396, %v599
      %v604 = vmul.f32 %v403, %v599
      %v605 = vmul.f32 %v410, %v599
      %v606 = vmul.f32 %v417, %v599
      %v607 = vmul.f32 %v424, %v599
      %v608 = vmul.f32 %v431, %v599
      %v609 = vmul.f32 %v438, %v599
      %v610 = vmul.f32 %v445, %v599
      %v611 = vmul.f32 %v452, %v599
      %v612 = vmul.f32 %v459, %v599
      %v613 = vmul.f32 %v466, %v599
      %v614 = vmul.f32 %v473, %v599
      %v615 = vmul.f32 %v480, %v599
      %v616 = vmul.f32 %v487, %v599
      %v617 = vmul.f32 %v494, %v599
      %v618 = vmul.f32 %v501, %v599
      %v619 = vmul.f32 %v508, %v599
      %v620 = vmul.f32 %v515, %v599
      %v621 = vmul.f32 %v522, %v599
      %v622 = vmul.f32 %v529, %v599
      %v623 = vmul.f32 %v536, %v599
      %v624 = vmul.f32 %v543, %v599
      %v625 = vmul.f32 %v550, %v599
      %v626 = vmul.f32 %v557, %v599
      %v627 = vmul.f32 %v564, %v599
      %v628 = vmul.f32 %v571, %v599
      %v629 = vmul.f32 %v578, %v599
      %v630 = vmul.f32 %v585, %v599
      %v631 = vmul.f32 %v592, %v599
      %v632 = vsub.f32 %v336, %v600
      %v633 = vsub.f32 %v337, %v601
      %v634 = vsub.f32 %v338, %v602
      %v635 = vsub.f32 %v339, %v603
      %v636 = vsub.f32 %v340, %v604
      %v637 = vsub.f32 %v341, %v605
      %v638 = vsub.f32 %v342, %v606
      %v639 = vsub.f32 %v343, %v607
      %v640 = vsub.f32 %v344, %v608
      %v641 = vsub.f32 %v345, %v609
      %v642 = vsub.f32 %v346, %v610
      %v643 = vsub.f32 %v347, %v611
      %v644 = vsub.f32 %v348, %v612
      %v645 = vsub.f32 %v349, %v613
      %v646 = vsub.f32 %v350, %v614
      %v647 = vsub.f32 %v351, %v615
      %v648 = vsub.f32 %v352, %v616
      %v649 = vsub.f32 %v353, %v617
      %v650 = vsub.f32 %v354, %v618
      %v651 = vsub.f32 %v355, %v619
      %v652 = vsub.f32 %v356, %v620
      %v653 = vsub.f32 %v357, %v621
      %v654 = vsub.f32 %v358, %v622
      %v655 = vsub.f32 %v359, %v623
      %v656 = vsub.f32 %v360, %v624
      %v657 = vsub.f32 %v361, %v625
      %v658 = vsub.f32 %v362, %v626
      %v659 = vsub.f32 %v363, %v627
      %v660 = vsub.f32 %v364, %v628
      %v661 = vsub.f32 %v365, %v629
      %v662 = vsub.f32 %v366, %v630
      %v663 = vsub.f32 %v367, %v631
      %v664 = vmul.f32 %v632, %v632
      %v665 = vmul.f32 %v633, %v633
      %v666 = vmul.f32 %v634, %v634
      %v667 = vmul.f32 %v635, %v635
      %v668 = vmul.f32 %v636, %v636
      %v669 = vmul.f32 %v637, %v637
      %v670 = vmul.f32 %v638, %v638
      %v671 = vmul.f32 %v639, %v639
      %v672 = vmul.f32 %v640, %v640
      %v673 = vmul.f32 %v641, %v641
      %v674 = vmul.f32 %v642, %v642
      %v675 = vmul.f32 %v643, %v643
      %v676 = vmul.f32 %v644, %v644
      %v677 = vmul.f32 %v645, %v645
      %v678 = vmul.f32 %v646, %v646
      %v679 = vmul.f32 %v647, %v647
      %v680 = vmul.f32 %v648, %v648
      %v681 = vmul.f32 %v649, %v649
      %v682 = vmul.f32 %v650, %v650
      %v683 = vmul.f32 %v651, %v651
      %v684 = vmul.f32 %v652, %v652
      %v685 = vmul.f32 %v653, %v653
      %v686 = vmul.f32 %v654, %v654
      %v687 = vmul.f32 %v655, %v655
      %v688 = vmul.f32 %v656, %v656
      %v689 = vmul.f32 %v657, %v657
      %v690 = vmul.f32 %v658, %v658
      %v691 = vmul.f32 %v659, %v659
      %v692 = vmul.f32 %v660, %v660
      %v693 = vmul.f32 %v661, %v661
      %v694 = vmul.f32 %v662, %v662
      %v695 = vmul.f32 %v663, %v663
      %v696 = vsel %vm368, %v664, 0.0
      %v697 = vrot.slane %v696, 4
      %v698 = vadd.f32 %v696, %v697
      %v699 = vrot.slane %v698, 2
      %v700 = vadd.f32 %v698, %v699
      %v701 = vrot.slane %v700, 1
      %v702 = vadd.f32 %v700, %v701
      %v703 = vsel %vm368, %v665, 0.0
      %v704 = vrot.slane %v703, 4
      %v705 = vadd.f32 %v703, %v704
      %v706 = vrot.slane %v705, 2
      %v707 = vadd.f32 %v705, %v706
      %v708 = vrot.slane %v707, 1
      %v709 = vadd.f32 %v707, %v708
      %v710 = vsel %vm368, %v666, 0.0
      %v711 = vrot.slane %v710, 4
      %v712 = vadd.f32 %v710, %v711
      %v713 = vrot.slane %v712, 2
      %v714 = vadd.f32 %v712, %v713
      %v715 = vrot.slane %v714, 1
      %v716 = vadd.f32 %v714, %v715
      %v717 = vsel %vm368, %v667, 0.0
      %v718 = vrot.slane %v717, 4
      %v719 = vadd.f32 %v717, %v718
      %v720 = vrot.slane %v719, 2
      %v721 = vadd.f32 %v719, %v720
      %v722 = vrot.slane %v721, 1
      %v723 = vadd.f32 %v721, %v722
      %v724 = vsel %vm368, %v668, 0.0
      %v725 = vrot.slane %v724, 4
      %v726 = vadd.f32 %v724, %v725
      %v727 = vrot.slane %v726, 2
      %v728 = vadd.f32 %v726, %v727
      %v729 = vrot.slane %v728, 1
      %v730 = vadd.f32 %v728, %v729
      %v731 = vsel %vm368, %v669, 0.0
      %v732 = vrot.slane %v731, 4
      %v733 = vadd.f32 %v731, %v732
      %v734 = vrot.slane %v733, 2
      %v735 = vadd.f32 %v733, %v734
      %v736 = vrot.slane %v735, 1
      %v737 = vadd.f32 %v735, %v736
      %v738 = vsel %vm368, %v670, 0.0
      %v739 = vrot.slane %v738, 4
      %v740 = vadd.f32 %v738, %v739
      %v741 = vrot.slane %v740, 2
      %v742 = vadd.f32 %v740, %v741
      %v743 = vrot.slane %v742, 1
      %v744 = vadd.f32 %v742, %v743
      %v745 = vsel %vm368, %v671, 0.0
      %v746 = vrot.slane %v745, 4
      %v747 = vadd.f32 %v745, %v746
      %v748 = vrot.slane %v747, 2
      %v749 = vadd.f32 %v747, %v748
      %v750 = vrot.slane %v749, 1
      %v751 = vadd.f32 %v749, %v750
      %v752 = vsel %vm368, %v672, 0.0
      %v753 = vrot.slane %v752, 4
      %v754 = vadd.f32 %v752, %v753
      %v755 = vrot.slane %v754, 2
      %v756 = vadd.f32 %v754, %v755
      %v757 = vrot.slane %v756, 1
      %v758 = vadd.f32 %v756, %v757
      %v759 = vsel %vm368, %v673, 0.0
      %v760 = vrot.slane %v759, 4
      %v761 = vadd.f32 %v759, %v760
      %v762 = vrot.slane %v761, 2
      %v763 = vadd.f32 %v761, %v762
      %v764 = vrot.slane %v763, 1
      %v765 = vadd.f32 %v763, %v764
      %v766 = vsel %vm368, %v674, 0.0
      %v767 = vrot.slane %v766, 4
      %v768 = vadd.f32 %v766, %v767
      %v769 = vrot.slane %v768, 2
      %v770 = vadd.f32 %v768, %v769
      %v771 = vrot.slane %v770, 1
      %v772 = vadd.f32 %v770, %v771
      %v773 = vsel %vm368, %v675, 0.0
      %v774 = vrot.slane %v773, 4
      %v775 = vadd.f32 %v773, %v774
      %v776 = vrot.slane %v775, 2
      %v777 = vadd.f32 %v775, %v776
      %v778 = vrot.slane %v777, 1
      %v779 = vadd.f32 %v777, %v778
      %v780 = vsel %vm368, %v676, 0.0
      %v781 = vrot.slane %v780, 4
      %v782 = vadd.f32 %v780, %v781
      %v783 = vrot.slane %v782, 2
      %v784 = vadd.f32 %v782, %v783
      %v785 = vrot.slane %v784, 1
      %v786 = vadd.f32 %v784, %v785
      %v787 = vsel %vm368, %v677, 0.0
      %v788 = vrot.slane %v787, 4
      %v789 = vadd.f32 %v787, %v788
      %v790 = vrot.slane %v789, 2
      %v791 = vadd.f32 %v789, %v790
      %v792 = vrot.slane %v791, 1
      %v793 = vadd.f32 %v791, %v792
      %v794 = vsel %vm368, %v678, 0.0
      %v795 = vrot.slane %v794, 4
      %v796 = vadd.f32 %v794, %v795
      %v797 = vrot.slane %v796, 2
      %v798 = vadd.f32 %v796, %v797
      %v799 = vrot.slane %v798, 1
      %v800 = vadd.f32 %v798, %v799
      %v801 = vsel %vm368, %v679, 0.0
      %v802 = vrot.slane %v801, 4
      %v803 = vadd.f32 %v801, %v802
      %v804 = vrot.slane %v803, 2
      %v805 = vadd.f32 %v803, %v804
      %v806 = vrot.slane %v805, 1
      %v807 = vadd.f32 %v805, %v806
      %v808 = vsel %vm368, %v680, 0.0
      %v809 = vrot.slane %v808, 4
      %v810 = vadd.f32 %v808, %v809
      %v811 = vrot.slane %v810, 2
      %v812 = vadd.f32 %v810, %v811
      %v813 = vrot.slane %v812, 1
      %v814 = vadd.f32 %v812, %v813
      %v815 = vsel %vm368, %v681, 0.0
      %v816 = vrot.slane %v815, 4
      %v817 = vadd.f32 %v815, %v816
      %v818 = vrot.slane %v817, 2
      %v819 = vadd.f32 %v817, %v818
      %v820 = vrot.slane %v819, 1
      %v821 = vadd.f32 %v819, %v820
      %v822 = vsel %vm368, %v682, 0.0
      %v823 = vrot.slane %v822, 4
      %v824 = vadd.f32 %v822, %v823
      %v825 = vrot.slane %v824, 2
      %v826 = vadd.f32 %v824, %v825
      %v827 = vrot.slane %v826, 1
      %v828 = vadd.f32 %v826, %v827
      %v829 = vsel %vm368, %v683, 0.0
      %v830 = vrot.slane %v829, 4
      %v831 = vadd.f32 %v829, %v830
      %v832 = vrot.slane %v831, 2
      %v833 = vadd.f32 %v831, %v832
      %v834 = vrot.slane %v833, 1
      %v835 = vadd.f32 %v833, %v834
      %v836 = vsel %vm368, %v684, 0.0
      %v837 = vrot.slane %v836, 4
      %v838 = vadd.f32 %v836, %v837
      %v839 = vrot.slane %v838, 2
      %v840 = vadd.f32 %v838, %v839
      %v841 = vrot.slane %v840, 1
      %v842 = vadd.f32 %v840, %v841
      %v843 = vsel %vm368, %v685, 0.0
      %v844 = vrot.slane %v843, 4
      %v845 = vadd.f32 %v843, %v844
      %v846 = vrot.slane %v845, 2
      %v847 = vadd.f32 %v845, %v846
      %v848 = vrot.slane %v847, 1
      %v849 = vadd.f32 %v847, %v848
      %v850 = vsel %vm368, %v686, 0.0
      %v851 = vrot.slane %v850, 4
      %v852 = vadd.f32 %v850, %v851
      %v853 = vrot.slane %v852, 2
      %v854 = vadd.f32 %v852, %v853
      %v855 = vrot.slane %v854, 1
      %v856 = vadd.f32 %v854, %v855
      %v857 = vsel %vm368, %v687, 0.0
      %v858 = vrot.slane %v857, 4
      %v859 = vadd.f32 %v857, %v858
      %v860 = vrot.slane %v859, 2
      %v861 = vadd.f32 %v859, %v860
      %v862 = vrot.slane %v861, 1
      %v863 = vadd.f32 %v861, %v862
      %v864 = vsel %vm368, %v688, 0.0
      %v865 = vrot.slane %v864, 4
      %v866 = vadd.f32 %v864, %v865
      %v867 = vrot.slane %v866, 2
      %v868 = vadd.f32 %v866, %v867
      %v869 = vrot.slane %v868, 1
      %v870 = vadd.f32 %v868, %v869
      %v871 = vsel %vm368, %v689, 0.0
      %v872 = vrot.slane %v871, 4
      %v873 = vadd.f32 %v871, %v872
      %v874 = vrot.slane %v873, 2
      %v875 = vadd.f32 %v873, %v874
      %v876 = vrot.slane %v875, 1
      %v877 = vadd.f32 %v875, %v876
      %v878 = vsel %vm368, %v690, 0.0
      %v879 = vrot.slane %v878, 4
      %v880 = vadd.f32 %v878, %v879
      %v881 = vrot.slane %v880, 2
      %v882 = vadd.f32 %v880, %v881
      %v883 = vrot.slane %v882, 1
      %v884 = vadd.f32 %v882, %v883
      %v885 = vsel %vm368, %v691, 0.0
      %v886 = vrot.slane %v885, 4
      %v887 = vadd.f32 %v885, %v886
      %v888 = vrot.slane %v887, 2
      %v889 = vadd.f32 %v887, %v888
      %v890 = vrot.slane %v889, 1
      %v891 = vadd.f32 %v889, %v890
      %v892 = vsel %vm368, %v692, 0.0
      %v893 = vrot.slane %v892, 4
      %v894 = vadd.f32 %v892, %v893
      %v895 = vrot.slane %v894, 2
      %v896 = vadd.f32 %v894, %v895
      %v897 = vrot.slane %v896, 1
      %v898 = vadd.f32 %v896, %v897
      %v899 = vsel %vm368, %v693, 0.0
      %v900 = vrot.slane %v899, 4
      %v901 = vadd.f32 %v899, %v900
      %v902 = vrot.slane %v901, 2
      %v903 = vadd.f32 %v901, %v902
      %v904 = vrot.slane %v903, 1
      %v905 = vadd.f32 %v903, %v904
      %v906 = vsel %vm368, %v694, 0.0
      %v907 = vrot.slane %v906, 4
      %v908 = vadd.f32 %v906, %v907
      %v909 = vrot.slane %v908, 2
      %v910 = vadd.f32 %v908, %v909
      %v911 = vrot.slane %v910, 1
      %v912 = vadd.f32 %v910, %v911
      %v913 = vsel %vm368, %v695, 0.0
      %v914 = vrot.slane %v913, 4
      %v915 = vadd.f32 %v913, %v914
      %v916 = vrot.slane %v915, 2
      %v917 = vadd.f32 %v915, %v916
      %v918 = vrot.slane %v917, 1
      %v919 = vadd.f32 %v917, %v918
      %v920 = vmul.f32 %v702, %v599
      %v921 = vmul.f32 %v709, %v599
      %v922 = vmul.f32 %v716, %v599
      %v923 = vmul.f32 %v723, %v599
      %v924 = vmul.f32 %v730, %v599
      %v925 = vmul.f32 %v737, %v599
      %v926 = vmul.f32 %v744, %v599
      %v927 = vmul.f32 %v751, %v599
      %v928 = vmul.f32 %v758, %v599
      %v929 = vmul.f32 %v765, %v599
      %v930 = vmul.f32 %v772, %v599
      %v931 = vmul.f32 %v779, %v599
      %v932 = vmul.f32 %v786, %v599
      %v933 = vmul.f32 %v793, %v599
      %v934 = vmul.f32 %v800, %v599
      %v935 = vmul.f32 %v807, %v599
      %v936 = vmul.f32 %v814, %v599
      %v937 = vmul.f32 %v821, %v599
      %v938 = vmul.f32 %v828, %v599
      %v939 = vmul.f32 %v835, %v599
      %v940 = vmul.f32 %v842, %v599
      %v941 = vmul.f32 %v849, %v599
      %v942 = vmul.f32 %v856, %v599
      %v943 = vmul.f32 %v863, %v599
      %v944 = vmul.f32 %v870, %v599
      %v945 = vmul.f32 %v877, %v599
      %v946 = vmul.f32 %v884, %v599
      %v947 = vmul.f32 %v891, %v599
      %v948 = vmul.f32 %v898, %v599
      %v949 = vmul.f32 %v905, %v599
      %v950 = vmul.f32 %v912, %v599
      %v951 = vmul.f32 %v919, %v599
      %v952 = vadd.f32 %v920, 1e-05
      %v953 = vadd.f32 %v921, 1e-05
      %v954 = vadd.f32 %v922, 1e-05
      %v955 = vadd.f32 %v923, 1e-05
      %v956 = vadd.f32 %v924, 1e-05
      %v957 = vadd.f32 %v925, 1e-05
      %v958 = vadd.f32 %v926, 1e-05
      %v959 = vadd.f32 %v927, 1e-05
      %v960 = vadd.f32 %v928, 1e-05
      %v961 = vadd.f32 %v929, 1e-05
      %v962 = vadd.f32 %v930, 1e-05
      %v963 = vadd.f32 %v931, 1e-05
      %v964 = vadd.f32 %v932, 1e-05
      %v965 = vadd.f32 %v933, 1e-05
      %v966 = vadd.f32 %v934, 1e-05
      %v967 = vadd.f32 %v935, 1e-05
      %v968 = vadd.f32 %v936, 1e-05
      %v969 = vadd.f32 %v937, 1e-05
      %v970 = vadd.f32 %v938, 1e-05
      %v971 = vadd.f32 %v939, 1e-05
      %v972 = vadd.f32 %v940, 1e-05
      %v973 = vadd.f32 %v941, 1e-05
      %v974 = vadd.f32 %v942, 1e-05
      %v975 = vadd.f32 %v943, 1e-05
      %v976 = vadd.f32 %v944, 1e-05
      %v977 = vadd.f32 %v945, 1e-05
      %v978 = vadd.f32 %v946, 1e-05
      %v979 = vadd.f32 %v947, 1e-05
      %v980 = vadd.f32 %v948, 1e-05
      %v981 = vadd.f32 %v949, 1e-05
      %v982 = vadd.f32 %v950, 1e-05
      %v983 = vadd.f32 %v951, 1e-05
      %v984 = vrsqrt.pop %v952
      %v985 = vmul.f32 %v984, %v952
      %v986 = vmul.f32 %v985, %v984
      %v987 = vmul.f32 0.5, %v986
      %v988 = vsub.f32 1.5, %v987
      %v989 = vmul.f32 %v984, %v988
      %vm990 = vweird.f32 %v952
      %vm991 = vweird.f32 %v984
      %vm992 = vmor %vm990, %vm991
      %v993 = vsel %vm992, %v984, %v989
      %v994 = vrsqrt.pop %v953
      %v995 = vmul.f32 %v994, %v953
      %v996 = vmul.f32 %v995, %v994
      %v997 = vmul.f32 0.5, %v996
      %v998 = vsub.f32 1.5, %v997
      %v999 = vmul.f32 %v994, %v998
      %vm1000 = vweird.f32 %v953
      %vm1001 = vweird.f32 %v994
      %vm1002 = vmor %vm1000, %vm1001
      %v1003 = vsel %vm1002, %v994, %v999
      %v1004 = vrsqrt.pop %v954
      %v1005 = vmul.f32 %v1004, %v954
      %v1006 = vmul.f32 %v1005, %v1004
      %v1007 = vmul.f32 0.5, %v1006
      %v1008 = vsub.f32 1.5, %v1007
      %v1009 = vmul.f32 %v1004, %v1008
      %vm1010 = vweird.f32 %v954
      %vm1011 = vweird.f32 %v1004
      %vm1012 = vmor %vm1010, %vm1011
      %v1013 = vsel %vm1012, %v1004, %v1009
      %v1014 = vrsqrt.pop %v955
      %v1015 = vmul.f32 %v1014, %v955
      %v1016 = vmul.f32 %v1015, %v1014
      %v1017 = vmul.f32 0.5, %v1016
      %v1018 = vsub.f32 1.5, %v1017
      %v1019 = vmul.f32 %v1014, %v1018
      %vm1020 = vweird.f32 %v955
      %vm1021 = vweird.f32 %v1014
      %vm1022 = vmor %vm1020, %vm1021
      %v1023 = vsel %vm1022, %v1014, %v1019
      %v1024 = vrsqrt.pop %v956
      %v1025 = vmul.f32 %v1024, %v956
      %v1026 = vmul.f32 %v1025, %v1024
      %v1027 = vmul.f32 0.5, %v1026
      %v1028 = vsub.f32 1.5, %v1027
      %v1029 = vmul.f32 %v1024, %v1028
      %vm1030 = vweird.f32 %v956
      %vm1031 = vweird.f32 %v1024
      %vm1032 = vmor %vm1030, %vm1031
      %v1033 = vsel %vm1032, %v1024, %v1029
      %v1034 = vrsqrt.pop %v957
      %v1035 = vmul.f32 %v1034, %v957
      %v1036 = vmul.f32 %v1035, %v1034
      %v1037 = vmul.f32 0.5, %v1036
      %v1038 = vsub.f32 1.5, %v1037
      %v1039 = vmul.f32 %v1034, %v1038
      %vm1040 = vweird.f32 %v957
      %vm1041 = vweird.f32 %v1034
      %vm1042 = vmor %vm1040, %vm1041
      %v1043 = vsel %vm1042, %v1034, %v1039
      %v1044 = vrsqrt.pop %v958
      %v1045 = vmul.f32 %v1044, %v958
      %v1046 = vmul.f32 %v1045, %v1044
      %v1047 = vmul.f32 0.5, %v1046
      %v1048 = vsub.f32 1.5, %v1047
      %v1049 = vmul.f32 %v1044, %v1048
      %vm1050 = vweird.f32 %v958
      %vm1051 = vweird.f32 %v1044
      %vm1052 = vmor %vm1050, %vm1051
      %v1053 = vsel %vm1052, %v1044, %v1049
      %v1054 = vrsqrt.pop %v959
      %v1055 = vmul.f32 %v1054, %v959
      %v1056 = vmul.f32 %v1055, %v1054
      %v1057 = vmul.f32 0.5, %v1056
      %v1058 = vsub.f32 1.5, %v1057
      %v1059 = vmul.f32 %v1054, %v1058
      %vm1060 = vweird.f32 %v959
      %vm1061 = vweird.f32 %v1054
      %vm1062 = vmor %vm1060, %vm1061
      %v1063 = vsel %vm1062, %v1054, %v1059
      %v1064 = vrsqrt.pop %v960
      %v1065 = vmul.f32 %v1064, %v960
      %v1066 = vmul.f32 %v1065, %v1064
      %v1067 = vmul.f32 0.5, %v1066
      %v1068 = vsub.f32 1.5, %v1067
      %v1069 = vmul.f32 %v1064, %v1068
      %vm1070 = vweird.f32 %v960
      %vm1071 = vweird.f32 %v1064
      %vm1072 = vmor %vm1070, %vm1071
      %v1073 = vsel %vm1072, %v1064, %v1069
      %v1074 = vrsqrt.pop %v961
      %v1075 = vmul.f32 %v1074, %v961
      %v1076 = vmul.f32 %v1075, %v1074
      %v1077 = vmul.f32 0.5, %v1076
      %v1078 = vsub.f32 1.5, %v1077
      %v1079 = vmul.f32 %v1074, %v1078
      %vm1080 = vweird.f32 %v961
      %vm1081 = vweird.f32 %v1074
      %vm1082 = vmor %vm1080, %vm1081
      %v1083 = vsel %vm1082, %v1074, %v1079
      %v1084 = vrsqrt.pop %v962
      %v1085 = vmul.f32 %v1084, %v962
      %v1086 = vmul.f32 %v1085, %v1084
      %v1087 = vmul.f32 0.5, %v1086
      %v1088 = vsub.f32 1.5, %v1087
      %v1089 = vmul.f32 %v1084, %v1088
      %vm1090 = vweird.f32 %v962
      %vm1091 = vweird.f32 %v1084
      %vm1092 = vmor %vm1090, %vm1091
      %v1093 = vsel %vm1092, %v1084, %v1089
      %v1094 = vrsqrt.pop %v963
      %v1095 = vmul.f32 %v1094, %v963
      %v1096 = vmul.f32 %v1095, %v1094
      %v1097 = vmul.f32 0.5, %v1096
      %v1098 = vsub.f32 1.5, %v1097
      %v1099 = vmul.f32 %v1094, %v1098
      %vm1100 = vweird.f32 %v963
      %vm1101 = vweird.f32 %v1094
      %vm1102 = vmor %vm1100, %vm1101
      %v1103 = vsel %vm1102, %v1094, %v1099
      %v1104 = vrsqrt.pop %v964
      %v1105 = vmul.f32 %v1104, %v964
      %v1106 = vmul.f32 %v1105, %v1104
      %v1107 = vmul.f32 0.5, %v1106
      %v1108 = vsub.f32 1.5, %v1107
      %v1109 = vmul.f32 %v1104, %v1108
      %vm1110 = vweird.f32 %v964
      %vm1111 = vweird.f32 %v1104
      %vm1112 = vmor %vm1110, %vm1111
      %v1113 = vsel %vm1112, %v1104, %v1109
      %v1114 = vrsqrt.pop %v965
      %v1115 = vmul.f32 %v1114, %v965
      %v1116 = vmul.f32 %v1115, %v1114
      %v1117 = vmul.f32 0.5, %v1116
      %v1118 = vsub.f32 1.5, %v1117
      %v1119 = vmul.f32 %v1114, %v1118
      %vm1120 = vweird.f32 %v965
      %vm1121 = vweird.f32 %v1114
      %vm1122 = vmor %vm1120, %vm1121
      %v1123 = vsel %vm1122, %v1114, %v1119
      %v1124 = vrsqrt.pop %v966
      %v1125 = vmul.f32 %v1124, %v966
      %v1126 = vmul.f32 %v1125, %v1124
      %v1127 = vmul.f32 0.5, %v1126
      %v1128 = vsub.f32 1.5, %v1127
      %v1129 = vmul.f32 %v1124, %v1128
      %vm1130 = vweird.f32 %v966
      %vm1131 = vweird.f32 %v1124
      %vm1132 = vmor %vm1130, %vm1131
      %v1133 = vsel %vm1132, %v1124, %v1129
      %v1134 = vrsqrt.pop %v967
      %v1135 = vmul.f32 %v1134, %v967
      %v1136 = vmul.f32 %v1135, %v1134
      %v1137 = vmul.f32 0.5, %v1136
      %v1138 = vsub.f32 1.5, %v1137
      %v1139 = vmul.f32 %v1134, %v1138
      %vm1140 = vweird.f32 %v967
      %vm1141 = vweird.f32 %v1134
      %vm1142 = vmor %vm1140, %vm1141
      %v1143 = vsel %vm1142, %v1134, %v1139
      %v1144 = vrsqrt.pop %v968
      %v1145 = vmul.f32 %v1144, %v968
      %v1146 = vmul.f32 %v1145, %v1144
      %v1147 = vmul.f32 0.5, %v1146
      %v1148 = vsub.f32 1.5, %v1147
      %v1149 = vmul.f32 %v1144, %v1148
      %vm1150 = vweird.f32 %v968
      %vm1151 = vweird.f32 %v1144
      %vm1152 = vmor %vm1150, %vm1151
      %v1153 = vsel %vm1152, %v1144, %v1149
      %v1154 = vrsqrt.pop %v969
      %v1155 = vmul.f32 %v1154, %v969
      %v1156 = vmul.f32 %v1155, %v1154
      %v1157 = vmul.f32 0.5, %v1156
      %v1158 = vsub.f32 1.5, %v1157
      %v1159 = vmul.f32 %v1154, %v1158
      %vm1160 = vweird.f32 %v969
      %vm1161 = vweird.f32 %v1154
      %vm1162 = vmor %vm1160, %vm1161
      %v1163 = vsel %vm1162, %v1154, %v1159
      %v1164 = vrsqrt.pop %v970
      %v1165 = vmul.f32 %v1164, %v970
      %v1166 = vmul.f32 %v1165, %v1164
      %v1167 = vmul.f32 0.5, %v1166
      %v1168 = vsub.f32 1.5, %v1167
      %v1169 = vmul.f32 %v1164, %v1168
      %vm1170 = vweird.f32 %v970
      %vm1171 = vweird.f32 %v1164
      %vm1172 = vmor %vm1170, %vm1171
      %v1173 = vsel %vm1172, %v1164, %v1169
      %v1174 = vrsqrt.pop %v971
      %v1175 = vmul.f32 %v1174, %v971
      %v1176 = vmul.f32 %v1175, %v1174
      %v1177 = vmul.f32 0.5, %v1176
      %v1178 = vsub.f32 1.5, %v1177
      %v1179 = vmul.f32 %v1174, %v1178
      %vm1180 = vweird.f32 %v971
      %vm1181 = vweird.f32 %v1174
      %vm1182 = vmor %vm1180, %vm1181
      %v1183 = vsel %vm1182, %v1174, %v1179
      %v1184 = vrsqrt.pop %v972
      %v1185 = vmul.f32 %v1184, %v972
      %v1186 = vmul.f32 %v1185, %v1184
      %v1187 = vmul.f32 0.5, %v1186
      %v1188 = vsub.f32 1.5, %v1187
      %v1189 = vmul.f32 %v1184, %v1188
      %vm1190 = vweird.f32 %v972
      %vm1191 = vweird.f32 %v1184
      %vm1192 = vmor %vm1190, %vm1191
      %v1193 = vsel %vm1192, %v1184, %v1189
      %v1194 = vrsqrt.pop %v973
      %v1195 = vmul.f32 %v1194, %v973
      %v1196 = vmul.f32 %v1195, %v1194
      %v1197 = vmul.f32 0.5, %v1196
      %v1198 = vsub.f32 1.5, %v1197
      %v1199 = vmul.f32 %v1194, %v1198
      %vm1200 = vweird.f32 %v973
      %vm1201 = vweird.f32 %v1194
      %vm1202 = vmor %vm1200, %vm1201
      %v1203 = vsel %vm1202, %v1194, %v1199
      %v1204 = vrsqrt.pop %v974
      %v1205 = vmul.f32 %v1204, %v974
      %v1206 = vmul.f32 %v1205, %v1204
      %v1207 = vmul.f32 0.5, %v1206
      %v1208 = vsub.f32 1.5, %v1207
      %v1209 = vmul.f32 %v1204, %v1208
      %vm1210 = vweird.f32 %v974
      %vm1211 = vweird.f32 %v1204
      %vm1212 = vmor %vm1210, %vm1211
      %v1213 = vsel %vm1212, %v1204, %v1209
      %v1214 = vrsqrt.pop %v975
      %v1215 = vmul.f32 %v1214, %v975
      %v1216 = vmul.f32 %v1215, %v1214
      %v1217 = vmul.f32 0.5, %v1216
      %v1218 = vsub.f32 1.5, %v1217
      %v1219 = vmul.f32 %v1214, %v1218
      %vm1220 = vweird.f32 %v975
      %vm1221 = vweird.f32 %v1214
      %vm1222 = vmor %vm1220, %vm1221
      %v1223 = vsel %vm1222, %v1214, %v1219
      %v1224 = vrsqrt.pop %v976
      %v1225 = vmul.f32 %v1224, %v976
      %v1226 = vmul.f32 %v1225, %v1224
      %v1227 = vmul.f32 0.5, %v1226
      %v1228 = vsub.f32 1.5, %v1227
      %v1229 = vmul.f32 %v1224, %v1228
      %vm1230 = vweird.f32 %v976
      %vm1231 = vweird.f32 %v1224
      %vm1232 = vmor %vm1230, %vm1231
      %v1233 = vsel %vm1232, %v1224, %v1229
      %v1234 = vrsqrt.pop %v977
      %v1235 = vmul.f32 %v1234, %v977
      %v1236 = vmul.f32 %v1235, %v1234
      %v1237 = vmul.f32 0.5, %v1236
      %v1238 = vsub.f32 1.5, %v1237
      %v1239 = vmul.f32 %v1234, %v1238
      %vm1240 = vweird.f32 %v977
      %vm1241 = vweird.f32 %v1234
      %vm1242 = vmor %vm1240, %vm1241
      %v1243 = vsel %vm1242, %v1234, %v1239
      %v1244 = vrsqrt.pop %v978
      %v1245 = vmul.f32 %v1244, %v978
      %v1246 = vmul.f32 %v1245, %v1244
      %v1247 = vmul.f32 0.5, %v1246
      %v1248 = vsub.f32 1.5, %v1247
      %v1249 = vmul.f32 %v1244, %v1248
      %vm1250 = vweird.f32 %v978
      %vm1251 = vweird.f32 %v1244
      %vm1252 = vmor %vm1250, %vm1251
      %v1253 = vsel %vm1252, %v1244, %v1249
      %v1254 = vrsqrt.pop %v979
      %v1255 = vmul.f32 %v1254, %v979
      %v1256 = vmul.f32 %v1255, %v1254
      %v1257 = vmul.f32 0.5, %v1256
      %v1258 = vsub.f32 1.5, %v1257
      %v1259 = vmul.f32 %v1254, %v1258
      %vm1260 = vweird.f32 %v979
      %vm1261 = vweird.f32 %v1254
      %vm1262 = vmor %vm1260, %vm1261
      %v1263 = vsel %vm1262, %v1254, %v1259
      %v1264 = vrsqrt.pop %v980
      %v1265 = vmul.f32 %v1264, %v980
      %v1266 = vmul.f32 %v1265, %v1264
      %v1267 = vmul.f32 0.5, %v1266
      %v1268 = vsub.f32 1.5, %v1267
      %v1269 = vmul.f32 %v1264, %v1268
      %vm1270 = vweird.f32 %v980
      %vm1271 = vweird.f32 %v1264
      %vm1272 = vmor %vm1270, %vm1271
      %v1273 = vsel %vm1272, %v1264, %v1269
      %v1274 = vrsqrt.pop %v981
      %v1275 = vmul.f32 %v1274, %v981
      %v1276 = vmul.f32 %v1275, %v1274
      %v1277 = vmul.f32 0.5, %v1276
      %v1278 = vsub.f32 1.5, %v1277
      %v1279 = vmul.f32 %v1274, %v1278
      %vm1280 = vweird.f32 %v981
      %vm1281 = vweird.f32 %v1274
      %vm1282 = vmor %vm1280, %vm1281
      %v1283 = vsel %vm1282, %v1274, %v1279
      %v1284 = vrsqrt.pop %v982
      %v1285 = vmul.f32 %v1284, %v982
      %v1286 = vmul.f32 %v1285, %v1284
      %v1287 = vmul.f32 0.5, %v1286
      %v1288 = vsub.f32 1.5, %v1287
      %v1289 = vmul.f32 %v1284, %v1288
      %vm1290 = vweird.f32 %v982
      %vm1291 = vweird.f32 %v1284
      %vm1292 = vmor %vm1290, %vm1291
      %v1293 = vsel %vm1292, %v1284, %v1289
      %v1294 = vrsqrt.pop %v983
      %v1295 = vmul.f32 %v1294, %v983
      %v1296 = vmul.f32 %v1295, %v1294
      %v1297 = vmul.f32 0.5, %v1296
      %v1298 = vsub.f32 1.5, %v1297
      %v1299 = vmul.f32 %v1294, %v1298
      %vm1300 = vweird.f32 %v983
      %vm1301 = vweird.f32 %v1294
      %vm1302 = vmor %vm1300, %vm1301
      %v1303 = vsel %vm1302, %v1294, %v1299
      %v1304 = vmul.f32 %v632, %v993
      %v1305 = vmul.f32 %v633, %v1003
      %v1306 = vmul.f32 %v634, %v1013
      %v1307 = vmul.f32 %v635, %v1023
      %v1308 = vmul.f32 %v636, %v1033
      %v1309 = vmul.f32 %v637, %v1043
      %v1310 = vmul.f32 %v638, %v1053
      %v1311 = vmul.f32 %v639, %v1063
      %v1312 = vmul.f32 %v640, %v1073
      %v1313 = vmul.f32 %v641, %v1083
      %v1314 = vmul.f32 %v642, %v1093
      %v1315 = vmul.f32 %v643, %v1103
      %v1316 = vmul.f32 %v644, %v1113
      %v1317 = vmul.f32 %v645, %v1123
      %v1318 = vmul.f32 %v646, %v1133
      %v1319 = vmul.f32 %v647, %v1143
      %v1320 = vmul.f32 %v648, %v1153
      %v1321 = vmul.f32 %v649, %v1163
      %v1322 = vmul.f32 %v650, %v1173
      %v1323 = vmul.f32 %v651, %v1183
      %v1324 = vmul.f32 %v652, %v1193
      %v1325 = vmul.f32 %v653, %v1203
      %v1326 = vmul.f32 %v654, %v1213
      %v1327 = vmul.f32 %v655, %v1223
      %v1328 = vmul.f32 %v656, %v1233
      %v1329 = vmul.f32 %v657, %v1243
      %v1330 = vmul.f32 %v658, %v1253
      %v1331 = vmul.f32 %v659, %v1263
      %v1332 = vmul.f32 %v660, %v1273
      %v1333 = vmul.f32 %v661, %v1283
      %v1334 = vmul.f32 %v662, %v1293
      %v1335 = vmul.f32 %v663, %v1303
      %v1336 = vld [vmem:[%s1] sm:$0x1]
      %v1338 = vperm.slane %v1336, 0
      %v1340 = vmul.f32 %v1304, %v1338
      %v1341 = vmul.f32 %v1305, %v1338
      %v1342 = vmul.f32 %v1306, %v1338
      %v1343 = vmul.f32 %v1307, %v1338
      %v1344 = vmul.f32 %v1308, %v1338
      %v1345 = vmul.f32 %v1309, %v1338
      %v1346 = vmul.f32 %v1310, %v1338
      %v1347 = vmul.f32 %v1311, %v1338
      %v1348 = vmul.f32 %v1312, %v1338
      %v1349 = vmul.f32 %v1313, %v1338
      %v1350 = vmul.f32 %v1314, %v1338
      %v1351 = vmul.f32 %v1315, %v1338
      %v1352 = vmul.f32 %v1316, %v1338
      %v1353 = vmul.f32 %v1317, %v1338
      %v1354 = vmul.f32 %v1318, %v1338
      %v1355 = vmul.f32 %v1319, %v1338
      %v1356 = vmul.f32 %v1320, %v1338
      %v1357 = vmul.f32 %v1321, %v1338
      %v1358 = vmul.f32 %v1322, %v1338
      %v1359 = vmul.f32 %v1323, %v1338
      %v1360 = vmul.f32 %v1324, %v1338
      %v1361 = vmul.f32 %v1325, %v1338
      %v1362 = vmul.f32 %v1326, %v1338
      %v1363 = vmul.f32 %v1327, %v1338
      %v1364 = vmul.f32 %v1328, %v1338
      %v1365 = vmul.f32 %v1329, %v1338
      %v1366 = vmul.f32 %v1330, %v1338
      %v1367 = vmul.f32 %v1331, %v1338
      %v1368 = vmul.f32 %v1332, %v1338
      %v1369 = vmul.f32 %v1333, %v1338
      %v1370 = vmul.f32 %v1334, %v1338
      %v1371 = vmul.f32 %v1335, %v1338
      %v1372 = vld [vmem:[%s2] sm:$0x1]
      %v1374 = vperm.slane %v1372, 0
      %v1376 = vadd.f32 %v1340, %v1374
      %v1377 = vadd.f32 %v1341, %v1374
      %v1378 = vadd.f32 %v1342, %v1374
      %v1379 = vadd.f32 %v1343, %v1374
      %v1380 = vadd.f32 %v1344, %v1374
      %v1381 = vadd.f32 %v1345, %v1374
      %v1382 = vadd.f32 %v1346, %v1374
      %v1383 = vadd.f32 %v1347, %v1374
      %v1384 = vadd.f32 %v1348, %v1374
      %v1385 = vadd.f32 %v1349, %v1374
      %v1386 = vadd.f32 %v1350, %v1374
      %v1387 = vadd.f32 %v1351, %v1374
      %v1388 = vadd.f32 %v1352, %v1374
      %v1389 = vadd.f32 %v1353, %v1374
      %v1390 = vadd.f32 %v1354, %v1374
      %v1391 = vadd.f32 %v1355, %v1374
      %v1392 = vadd.f32 %v1356, %v1374
      %v1393 = vadd.f32 %v1357, %v1374
      %v1394 = vadd.f32 %v1358, %v1374
      %v1395 = vadd.f32 %v1359, %v1374
      %v1396 = vadd.f32 %v1360, %v1374
      %v1397 = vadd.f32 %v1361, %v1374
      %v1398 = vadd.f32 %v1362, %v1374
      %v1399 = vadd.f32 %v1363, %v1374
      %v1400 = vadd.f32 %v1364, %v1374
      %v1401 = vadd.f32 %v1365, %v1374
      %v1402 = vadd.f32 %v1366, %v1374
      %v1403 = vadd.f32 %v1367, %v1374
      %v1404 = vadd.f32 %v1368, %v1374
      %v1405 = vadd.f32 %v1369, %v1374
      %v1406 = vadd.f32 %v1370, %v1374
      %v1407 = vadd.f32 %v1371, %v1374
      %v1408 = vld [vmem:[%s3] sm:$0xff]
      %v1409 = vld [vmem:[%s3 + $0x8] sm:$0xff]
      %v1410 = vld [vmem:[%s3 + $0x10] sm:$0xff]
      %v1411 = vld [vmem:[%s3 + $0x18] sm:$0xff]
      %v1412 = vld [vmem:[%s4] sm:$0x1]
      %v1414 = vperm.slane %v1412, 0
      %v1417 = vsel %vm368, %v1376, 0
      %v1420 = vsel %vm368, %v1377, 0
      %v1423 = vsel %vm368, %v1378, 0
      %v1426 = vsel %vm368, %v1379, 0
      %v1429 = vsel %vm368, %v1380, 0
      %v1432 = vsel %vm368, %v1381, 0
      %v1435 = vsel %vm368, %v1382, 0
      %v1438 = vsel %vm368, %v1383, 0
      %v1441 = vsel %vm368, %v1384, 0
      %v1444 = vsel %vm368, %v1385, 0
      %v1447 = vsel %vm368, %v1386, 0
      %v1450 = vsel %vm368, %v1387, 0
      %v1453 = vsel %vm368, %v1388, 0
      %v1456 = vsel %vm368, %v1389, 0
      %v1459 = vsel %vm368, %v1390, 0
      %v1462 = vsel %vm368, %v1391, 0
      %v1465 = vsel %vm368, %v1392, 0
      %v1468 = vsel %vm368, %v1393, 0
      %v1471 = vsel %vm368, %v1394, 0
      %v1474 = vsel %vm368, %v1395, 0
      %v1477 = vsel %vm368, %v1396, 0
      %v1480 = vsel %vm368, %v1397, 0
      %v1483 = vsel %vm368, %v1398, 0
      %v1486 = vsel %vm368, %v1399, 0
      %v1489 = vsel %vm368, %v1400, 0
      %v1492 = vsel %vm368, %v1401, 0
      %v1495 = vsel %vm368, %v1402, 0
      %v1498 = vsel %vm368, %v1403, 0
      %v1501 = vsel %vm368, %v1404, 0
      %v1504 = vsel %vm368, %v1405, 0
      %v1507 = vsel %vm368, %v1406, 0
      %v1510 = vsel %vm368, %v1407, 0
      %1512 = vmatpush.msra.mxu0 0.0
      %1513 = vmatpush.msra.mxu0 0.0
      %1514 = vmatpush.msra.mxu0 0.0
      %1515 = vmatpush.msra.mxu0 0.0
      %1516 = vmatpush.msra.mxu0 0.0
      %1517 = vmatpush.msra.mxu0 0.0
      %1518 = vmatpush.msra.mxu0 0.0
      %1519 = vmatpush.msra.mxu0 0.0
      %1520 = vmatpush.msra.mxu0 0.0
      %1521 = vmatpush.msra.mxu0 0.0
      %1522 = vmatpush.msra.mxu0 0.0
      %1523 = vmatpush.msra.mxu0 0.0
      %1524 = vmatpush.msra.mxu0 %v1411
      %1525 = vmatpush.msra.mxu0 %v1410
      %1526 = vmatpush.msra.mxu0 %v1409
      %1527 = vmatpush.msra.mxu0 %v1408
      %1528 = vmatmul.f32.gmra.mxu0 %v1417
      %v1529 = vpop.f32.mrf.mxu0
      %v1530 = vadd.f32 %v1414, %v1529
      %1531 = vmatmul.f32.gmra.mxu0 %v1420
      %v1532 = vpop.f32.mrf.mxu0
      %v1533 = vadd.f32 %v1414, %v1532
      %1534 = vmatmul.f32.gmra.mxu0 %v1423
      %v1535 = vpop.f32.mrf.mxu0
      %v1536 = vadd.f32 %v1414, %v1535
      %1537 = vmatmul.f32.gmra.mxu0 %v1426
      %v1538 = vpop.f32.mrf.mxu0
      %v1539 = vadd.f32 %v1414, %v1538
      %1540 = vmatmul.f32.gmra.mxu0 %v1429
      %v1541 = vpop.f32.mrf.mxu0
      %v1542 = vadd.f32 %v1414, %v1541
      %1543 = vmatmul.f32.gmra.mxu0 %v1432
      %v1544 = vpop.f32.mrf.mxu0
      %v1545 = vadd.f32 %v1414, %v1544
      %1546 = vmatmul.f32.gmra.mxu0 %v1435
      %v1547 = vpop.f32.mrf.mxu0
      %v1548 = vadd.f32 %v1414, %v1547
      %1549 = vmatmul.f32.gmra.mxu0 %v1438
      %v1550 = vpop.f32.mrf.mxu0
      %v1551 = vadd.f32 %v1414, %v1550
      %1552 = vmatmul.f32.gmra.mxu0 %v1441
      %v1553 = vpop.f32.mrf.mxu0
      %v1554 = vadd.f32 %v1414, %v1553
      %1555 = vmatmul.f32.gmra.mxu0 %v1444
      %v1556 = vpop.f32.mrf.mxu0
      %v1557 = vadd.f32 %v1414, %v1556
      %1558 = vmatmul.f32.gmra.mxu0 %v1447
      %v1559 = vpop.f32.mrf.mxu0
      %v1560 = vadd.f32 %v1414, %v1559
      %1561 = vmatmul.f32.gmra.mxu0 %v1450
      %v1562 = vpop.f32.mrf.mxu0
      %v1563 = vadd.f32 %v1414, %v1562
      %1564 = vmatmul.f32.gmra.mxu0 %v1453
      %v1565 = vpop.f32.mrf.mxu0
      %v1566 = vadd.f32 %v1414, %v1565
      %1567 = vmatmul.f32.gmra.mxu0 %v1456
      %v1568 = vpop.f32.mrf.mxu0
      %v1569 = vadd.f32 %v1414, %v1568
      %1570 = vmatmul.f32.gmra.mxu0 %v1459
      %v1571 = vpop.f32.mrf.mxu0
      %v1572 = vadd.f32 %v1414, %v1571
      %1573 = vmatmul.f32.gmra.mxu0 %v1462
      %v1574 = vpop.f32.mrf.mxu0
      %v1575 = vadd.f32 %v1414, %v1574
      %1576 = vmatmul.f32.gmra.mxu0 %v1465
      %v1577 = vpop.f32.mrf.mxu0
      %v1578 = vadd.f32 %v1414, %v1577
      %1579 = vmatmul.f32.gmra.mxu0 %v1468
      %v1580 = vpop.f32.mrf.mxu0
      %v1581 = vadd.f32 %v1414, %v1580
      %1582 = vmatmul.f32.gmra.mxu0 %v1471
      %v1583 = vpop.f32.mrf.mxu0
      %v1584 = vadd.f32 %v1414, %v1583
      %1585 = vmatmul.f32.gmra.mxu0 %v1474
      %v1586 = vpop.f32.mrf.mxu0
      %v1587 = vadd.f32 %v1414, %v1586
      %1588 = vmatmul.f32.gmra.mxu0 %v1477
      %v1589 = vpop.f32.mrf.mxu0
      %v1590 = vadd.f32 %v1414, %v1589
      %1591 = vmatmul.f32.gmra.mxu0 %v1480
      %v1592 = vpop.f32.mrf.mxu0
      %v1593 = vadd.f32 %v1414, %v1592
      %1594 = vmatmul.f32.gmra.mxu0 %v1483
      %v1595 = vpop.f32.mrf.mxu0
      %v1596 = vadd.f32 %v1414, %v1595
      %1597 = vmatmul.f32.gmra.mxu0 %v1486
      %v1598 = vpop.f32.mrf.mxu0
      %v1599 = vadd.f32 %v1414, %v1598
      %1600 = vmatmul.f32.gmra.mxu0 %v1489
      %v1601 = vpop.f32.mrf.mxu0
      %v1602 = vadd.f32 %v1414, %v1601
      %1603 = vmatmul.f32.gmra.mxu0 %v1492
      %v1604 = vpop.f32.mrf.mxu0
      %v1605 = vadd.f32 %v1414, %v1604
      %1606 = vmatmul.f32.gmra.mxu0 %v1495
      %v1607 = vpop.f32.mrf.mxu0
      %v1608 = vadd.f32 %v1414, %v1607
      %1609 = vmatmul.f32.gmra.mxu0 %v1498
      %v1610 = vpop.f32.mrf.mxu0
      %v1611 = vadd.f32 %v1414, %v1610
      %1612 = vmatmul.f32.gmra.mxu0 %v1501
      %v1613 = vpop.f32.mrf.mxu0
      %v1614 = vadd.f32 %v1414, %v1613
      %1615 = vmatmul.f32.gmra.mxu0 %v1504
      %v1616 = vpop.f32.mrf.mxu0
      %v1617 = vadd.f32 %v1414, %v1616
      %1618 = vmatmul.f32.gmra.mxu0 %v1507
      %v1619 = vpop.f32.mrf.mxu0
      %v1620 = vadd.f32 %v1414, %v1619
      %1621 = vmatmul.f32.gmra.mxu0 %v1510
      %v1622 = vpop.f32.mrf.mxu0
      %v1623 = vadd.f32 %v1414, %v1622
      %1624 = vdwg.mxu0
      %v1625 = vxor.u32 %v1530, 2147483648
      %v1626 = vxor.u32 %v1533, 2147483648
      %v1627 = vxor.u32 %v1536, 2147483648
      %v1628 = vxor.u32 %v1539, 2147483648
      %v1629 = vxor.u32 %v1542, 2147483648
      %v1630 = vxor.u32 %v1545, 2147483648
      %v1631 = vxor.u32 %v1548, 2147483648
      %v1632 = vxor.u32 %v1551, 2147483648
      %v1633 = vxor.u32 %v1554, 2147483648
      %v1634 = vxor.u32 %v1557, 2147483648
      %v1635 = vxor.u32 %v1560, 2147483648
      %v1636 = vxor.u32 %v1563, 2147483648
      %v1637 = vxor.u32 %v1566, 2147483648
      %v1638 = vxor.u32 %v1569, 2147483648
      %v1639 = vxor.u32 %v1572, 2147483648
      %v1640 = vxor.u32 %v1575, 2147483648
      %v1641 = vxor.u32 %v1578, 2147483648
      %v1642 = vxor.u32 %v1581, 2147483648
      %v1643 = vxor.u32 %v1584, 2147483648
      %v1644 = vxor.u32 %v1587, 2147483648
      %v1645 = vxor.u32 %v1590, 2147483648
      %v1646 = vxor.u32 %v1593, 2147483648
      %v1647 = vxor.u32 %v1596, 2147483648
      %v1648 = vxor.u32 %v1599, 2147483648
      %v1649 = vxor.u32 %v1602, 2147483648
      %v1650 = vxor.u32 %v1605, 2147483648
      %v1651 = vxor.u32 %v1608, 2147483648
      %v1652 = vxor.u32 %v1611, 2147483648
      %v1653 = vxor.u32 %v1614, 2147483648
      %v1654 = vxor.u32 %v1617, 2147483648
      %v1655 = vxor.u32 %v1620, 2147483648
      %v1656 = vxor.u32 %v1623, 2147483648
      %v1657 = vmul.f32 %v1625, 1.442695
      %v1658 = vpow.pop %v1657
      %v1659 = vmul.f32 %v1626, 1.442695
      %v1660 = vpow.pop %v1659
      %v1661 = vmul.f32 %v1627, 1.442695
      %v1662 = vpow.pop %v1661
      %v1663 = vmul.f32 %v1628, 1.442695
      %v1664 = vpow.pop %v1663
      %v1665 = vmul.f32 %v1629, 1.442695
      %v1666 = vpow.pop %v1665
      %v1667 = vmul.f32 %v1630, 1.442695
      %v1668 = vpow.pop %v1667
      %v1669 = vmul.f32 %v1631, 1.442695
      %v1670 = vpow.pop %v1669
      %v1671 = vmul.f32 %v1632, 1.442695
      %v1672 = vpow.pop %v1671
      %v1673 = vmul.f32 %v1633, 1.442695
      %v1674 = vpow.pop %v1673
      %v1675 = vmul.f32 %v1634, 1.442695
      %v1676 = vpow.pop %v1675
      %v1677 = vmul.f32 %v1635, 1.442695
      %v1678 = vpow.pop %v1677
      %v1679 = vmul.f32 %v1636, 1.442695
      %v1680 = vpow.pop %v1679
      %v1681 = vmul.f32 %v1637, 1.442695
      %v1682 = vpow.pop %v1681
      %v1683 = vmul.f32 %v1638, 1.442695
      %v1684 = vpow.pop %v1683
      %v1685 = vmul.f32 %v1639, 1.442695
      %v1686 = vpow.pop %v1685
      %v1687 = vmul.f32 %v1640, 1.442695
      %v1688 = vpow.pop %v1687
      %v1689 = vmul.f32 %v1641, 1.442695
      %v1690 = vpow.pop %v1689
      %v1691 = vmul.f32 %v1642, 1.442695
      %v1692 = vpow.pop %v1691
      %v1693 = vmul.f32 %v1643, 1.442695
      %v1694 = vpow.pop %v1693
      %v1695 = vmul.f32 %v1644, 1.442695
      %v1696 = vpow.pop %v1695
      %v1697 = vmul.f32 %v1645, 1.442695
      %v1698 = vpow.pop %v1697
      %v1699 = vmul.f32 %v1646, 1.442695
      %v1700 = vpow.pop %v1699
      %v1701 = vmul.f32 %v1647, 1.442695
      %v1702 = vpow.pop %v1701
      %v1703 = vmul.f32 %v1648, 1.442695
      %v1704 = vpow.pop %v1703
      %v1705 = vmul.f32 %v1649, 1.442695
      %v1706 = vpow.pop %v1705
      %v1707 = vmul.f32 %v1650, 1.442695
      %v1708 = vpow.pop %v1707
      %v1709 = vmul.f32 %v1651, 1.442695
      %v1710 = vpow.pop %v1709
      %v1711 = vmul.f32 %v1652, 1.442695
      %v1712 = vpow.pop %v1711
      %v1713 = vmul.f32 %v1653, 1.442695
      %v1714 = vpow.pop %v1713
      %v1715 = vmul.f32 %v1654, 1.442695
      %v1716 = vpow.pop %v1715
      %v1717 = vmul.f32 %v1655, 1.442695
      %v1718 = vpow.pop %v1717
      %v1719 = vmul.f32 %v1656, 1.442695
      %v1720 = vpow.pop %v1719
      %v1721 = vadd.f32 %v1658, 1.0
      %v1722 = vadd.f32 %v1660, 1.0
      %v1723 = vadd.f32 %v1662, 1.0
      %v1724 = vadd.f32 %v1664, 1.0
      %v1725 = vadd.f32 %v1666, 1.0
      %v1726 = vadd.f32 %v1668, 1.0
      %v1727 = vadd.f32 %v1670, 1.0
      %v1728 = vadd.f32 %v1672, 1.0
      %v1729 = vadd.f32 %v1674, 1.0
      %v1730 = vadd.f32 %v1676, 1.0
      %v1731 = vadd.f32 %v1678, 1.0
      %v1732 = vadd.f32 %v1680, 1.0
      %v1733 = vadd.f32 %v1682, 1.0
      %v1734 = vadd.f32 %v1684, 1.0
      %v1735 = vadd.f32 %v1686, 1.0
      %v1736 = vadd.f32 %v1688, 1.0
      %v1737 = vadd.f32 %v1690, 1.0
      %v1738 = vadd.f32 %v1692, 1.0
      %v1739 = vadd.f32 %v1694, 1.0
      %v1740 = vadd.f32 %v1696, 1.0
      %v1741 = vadd.f32 %v1698, 1.0
      %v1742 = vadd.f32 %v1700, 1.0
      %v1743 = vadd.f32 %v1702, 1.0
      %v1744 = vadd.f32 %v1704, 1.0
      %v1745 = vadd.f32 %v1706, 1.0
      %v1746 = vadd.f32 %v1708, 1.0
      %v1747 = vadd.f32 %v1710, 1.0
      %v1748 = vadd.f32 %v1712, 1.0
      %v1749 = vadd.f32 %v1714, 1.0
      %v1750 = vadd.f32 %v1716, 1.0
      %v1751 = vadd.f32 %v1718, 1.0
      %v1752 = vadd.f32 %v1720, 1.0
      %v1753 = vrcp.pop %v1721
      %v1754 = vmul.f32 %v1721, %v1753
      %v1755 = vsub.f32 1.0, %v1754
      %v1756 = vmul.f32 %v1753, %v1755
      %v1757 = vadd.f32 %v1753, %v1756
      %vm1758 = vweird.f32 %v1721
      %vm1759 = vweird.f32 %v1753
      %vm1760 = vmor %vm1758, %vm1759
      %v1761 = vsel %vm1760, %v1753, %v1757
      %v1762 = vand.u32 2147483647, %v1721
      %vm1763 = vcmp.eq.f32.partialorder %v1762, 8.507059e+37
      %v1764 = vand.u32 %v1721, 2147483648
      %v1765 = vor.u32 1.1754944e-38, %v1764
      %v1766 = vsel %vm1763, %v1765, %v1761
      %v1767 = vmul.f32 1.0, %v1766
      %v1768 = vrcp.pop %v1722
      %v1769 = vmul.f32 %v1722, %v1768
      %v1770 = vsub.f32 1.0, %v1769
      %v1771 = vmul.f32 %v1768, %v1770
      %v1772 = vadd.f32 %v1768, %v1771
      %vm1773 = vweird.f32 %v1722
      %vm1774 = vweird.f32 %v1768
      %vm1775 = vmor %vm1773, %vm1774
      %v1776 = vsel %vm1775, %v1768, %v1772
      %v1777 = vand.u32 2147483647, %v1722
      %vm1778 = vcmp.eq.f32.partialorder %v1777, 8.507059e+37
      %v1779 = vand.u32 %v1722, 2147483648
      %v1780 = vor.u32 1.1754944e-38, %v1779
      %v1781 = vsel %vm1778, %v1780, %v1776
      %v1782 = vmul.f32 1.0, %v1781
      %v1783 = vrcp.pop %v1723
      %v1784 = vmul.f32 %v1723, %v1783
      %v1785 = vsub.f32 1.0, %v1784
      %v1786 = vmul.f32 %v1783, %v1785
      %v1787 = vadd.f32 %v1783, %v1786
      %vm1788 = vweird.f32 %v1723
      %vm1789 = vweird.f32 %v1783
      %vm1790 = vmor %vm1788, %vm1789
      %v1791 = vsel %vm1790, %v1783, %v1787
      %v1792 = vand.u32 2147483647, %v1723
      %vm1793 = vcmp.eq.f32.partialorder %v1792, 8.507059e+37
      %v1794 = vand.u32 %v1723, 2147483648
      %v1795 = vor.u32 1.1754944e-38, %v1794
      %v1796 = vsel %vm1793, %v1795, %v1791
      %v1797 = vmul.f32 1.0, %v1796
      %v1798 = vrcp.pop %v1724
      %v1799 = vmul.f32 %v1724, %v1798
      %v1800 = vsub.f32 1.0, %v1799
      %v1801 = vmul.f32 %v1798, %v1800
      %v1802 = vadd.f32 %v1798, %v1801
      %vm1803 = vweird.f32 %v1724
      %vm1804 = vweird.f32 %v1798
      %vm1805 = vmor %vm1803, %vm1804
      %v1806 = vsel %vm1805, %v1798, %v1802
      %v1807 = vand.u32 2147483647, %v1724
      %vm1808 = vcmp.eq.f32.partialorder %v1807, 8.507059e+37
      %v1809 = vand.u32 %v1724, 2147483648
      %v1810 = vor.u32 1.1754944e-38, %v1809
      %v1811 = vsel %vm1808, %v1810, %v1806
      %v1812 = vmul.f32 1.0, %v1811
      %v1813 = vrcp.pop %v1725
      %v1814 = vmul.f32 %v1725, %v1813
      %v1815 = vsub.f32 1.0, %v1814
      %v1816 = vmul.f32 %v1813, %v1815
      %v1817 = vadd.f32 %v1813, %v1816
      %vm1818 = vweird.f32 %v1725
      %vm1819 = vweird.f32 %v1813
      %vm1820 = vmor %vm1818, %vm1819
      %v1821 = vsel %vm1820, %v1813, %v1817
      %v1822 = vand.u32 2147483647, %v1725
      %vm1823 = vcmp.eq.f32.partialorder %v1822, 8.507059e+37
      %v1824 = vand.u32 %v1725, 2147483648
      %v1825 = vor.u32 1.1754944e-38, %v1824
      %v1826 = vsel %vm1823, %v1825, %v1821
      %v1827 = vmul.f32 1.0, %v1826
      %v1828 = vrcp.pop %v1726
      %v1829 = vmul.f32 %v1726, %v1828
      %v1830 = vsub.f32 1.0, %v1829
      %v1831 = vmul.f32 %v1828, %v1830
      %v1832 = vadd.f32 %v1828, %v1831
      %vm1833 = vweird.f32 %v1726
      %vm1834 = vweird.f32 %v1828
      %vm1835 = vmor %vm1833, %vm1834
      %v1836 = vsel %vm1835, %v1828, %v1832
      %v1837 = vand.u32 2147483647, %v1726
      %vm1838 = vcmp.eq.f32.partialorder %v1837, 8.507059e+37
      %v1839 = vand.u32 %v1726, 2147483648
      %v1840 = vor.u32 1.1754944e-38, %v1839
      %v1841 = vsel %vm1838, %v1840, %v1836
      %v1842 = vmul.f32 1.0, %v1841
      %v1843 = vrcp.pop %v1727
      %v1844 = vmul.f32 %v1727, %v1843
      %v1845 = vsub.f32 1.0, %v1844
      %v1846 = vmul.f32 %v1843, %v1845
      %v1847 = vadd.f32 %v1843, %v1846
      %vm1848 = vweird.f32 %v1727
      %vm1849 = vweird.f32 %v1843
      %vm1850 = vmor %vm1848, %vm1849
      %v1851 = vsel %vm1850, %v1843, %v1847
      %v1852 = vand.u32 2147483647, %v1727
      %vm1853 = vcmp.eq.f32.partialorder %v1852, 8.507059e+37
      %v1854 = vand.u32 %v1727, 2147483648
      %v1855 = vor.u32 1.1754944e-38, %v1854
      %v1856 = vsel %vm1853, %v1855, %v1851
      %v1857 = vmul.f32 1.0, %v1856
      %v1858 = vrcp.pop %v1728
      %v1859 = vmul.f32 %v1728, %v1858
      %v1860 = vsub.f32 1.0, %v1859
      %v1861 = vmul.f32 %v1858, %v1860
      %v1862 = vadd.f32 %v1858, %v1861
      %vm1863 = vweird.f32 %v1728
      %vm1864 = vweird.f32 %v1858
      %vm1865 = vmor %vm1863, %vm1864
      %v1866 = vsel %vm1865, %v1858, %v1862
      %v1867 = vand.u32 2147483647, %v1728
      %vm1868 = vcmp.eq.f32.partialorder %v1867, 8.507059e+37
      %v1869 = vand.u32 %v1728, 2147483648
      %v1870 = vor.u32 1.1754944e-38, %v1869
      %v1871 = vsel %vm1868, %v1870, %v1866
      %v1872 = vmul.f32 1.0, %v1871
      %v1873 = vrcp.pop %v1729
      %v1874 = vmul.f32 %v1729, %v1873
      %v1875 = vsub.f32 1.0, %v1874
      %v1876 = vmul.f32 %v1873, %v1875
      %v1877 = vadd.f32 %v1873, %v1876
      %vm1878 = vweird.f32 %v1729
      %vm1879 = vweird.f32 %v1873
      %vm1880 = vmor %vm1878, %vm1879
      %v1881 = vsel %vm1880, %v1873, %v1877
      %v1882 = vand.u32 2147483647, %v1729
      %vm1883 = vcmp.eq.f32.partialorder %v1882, 8.507059e+37
      %v1884 = vand.u32 %v1729, 2147483648
      %v1885 = vor.u32 1.1754944e-38, %v1884
      %v1886 = vsel %vm1883, %v1885, %v1881
      %v1887 = vmul.f32 1.0, %v1886
      %v1888 = vrcp.pop %v1730
      %v1889 = vmul.f32 %v1730, %v1888
      %v1890 = vsub.f32 1.0, %v1889
      %v1891 = vmul.f32 %v1888, %v1890
      %v1892 = vadd.f32 %v1888, %v1891
      %vm1893 = vweird.f32 %v1730
      %vm1894 = vweird.f32 %v1888
      %vm1895 = vmor %vm1893, %vm1894
      %v1896 = vsel %vm1895, %v1888, %v1892
      %v1897 = vand.u32 2147483647, %v1730
      %vm1898 = vcmp.eq.f32.partialorder %v1897, 8.507059e+37
      %v1899 = vand.u32 %v1730, 2147483648
      %v1900 = vor.u32 1.1754944e-38, %v1899
      %v1901 = vsel %vm1898, %v1900, %v1896
      %v1902 = vmul.f32 1.0, %v1901
      %v1903 = vrcp.pop %v1731
      %v1904 = vmul.f32 %v1731, %v1903
      %v1905 = vsub.f32 1.0, %v1904
      %v1906 = vmul.f32 %v1903, %v1905
      %v1907 = vadd.f32 %v1903, %v1906
      %vm1908 = vweird.f32 %v1731
      %vm1909 = vweird.f32 %v1903
      %vm1910 = vmor %vm1908, %vm1909
      %v1911 = vsel %vm1910, %v1903, %v1907
      %v1912 = vand.u32 2147483647, %v1731
      %vm1913 = vcmp.eq.f32.partialorder %v1912, 8.507059e+37
      %v1914 = vand.u32 %v1731, 2147483648
      %v1915 = vor.u32 1.1754944e-38, %v1914
      %v1916 = vsel %vm1913, %v1915, %v1911
      %v1917 = vmul.f32 1.0, %v1916
      %v1918 = vrcp.pop %v1732
      %v1919 = vmul.f32 %v1732, %v1918
      %v1920 = vsub.f32 1.0, %v1919
      %v1921 = vmul.f32 %v1918, %v1920
      %v1922 = vadd.f32 %v1918, %v1921
      %vm1923 = vweird.f32 %v1732
      %vm1924 = vweird.f32 %v1918
      %vm1925 = vmor %vm1923, %vm1924
      %v1926 = vsel %vm1925, %v1918, %v1922
      %v1927 = vand.u32 2147483647, %v1732
      %vm1928 = vcmp.eq.f32.partialorder %v1927, 8.507059e+37
      %v1929 = vand.u32 %v1732, 2147483648
      %v1930 = vor.u32 1.1754944e-38, %v1929
      %v1931 = vsel %vm1928, %v1930, %v1926
      %v1932 = vmul.f32 1.0, %v1931
      %v1933 = vrcp.pop %v1733
      %v1934 = vmul.f32 %v1733, %v1933
      %v1935 = vsub.f32 1.0, %v1934
      %v1936 = vmul.f32 %v1933, %v1935
      %v1937 = vadd.f32 %v1933, %v1936
      %vm1938 = vweird.f32 %v1733
      %vm1939 = vweird.f32 %v1933
      %vm1940 = vmor %vm1938, %vm1939
      %v1941 = vsel %vm1940, %v1933, %v1937
      %v1942 = vand.u32 2147483647, %v1733
      %vm1943 = vcmp.eq.f32.partialorder %v1942, 8.507059e+37
      %v1944 = vand.u32 %v1733, 2147483648
      %v1945 = vor.u32 1.1754944e-38, %v1944
      %v1946 = vsel %vm1943, %v1945, %v1941
      %v1947 = vmul.f32 1.0, %v1946
      %v1948 = vrcp.pop %v1734
      %v1949 = vmul.f32 %v1734, %v1948
      %v1950 = vsub.f32 1.0, %v1949
      %v1951 = vmul.f32 %v1948, %v1950
      %v1952 = vadd.f32 %v1948, %v1951
      %vm1953 = vweird.f32 %v1734
      %vm1954 = vweird.f32 %v1948
      %vm1955 = vmor %vm1953, %vm1954
      %v1956 = vsel %vm1955, %v1948, %v1952
      %v1957 = vand.u32 2147483647, %v1734
      %vm1958 = vcmp.eq.f32.partialorder %v1957, 8.507059e+37
      %v1959 = vand.u32 %v1734, 2147483648
      %v1960 = vor.u32 1.1754944e-38, %v1959
      %v1961 = vsel %vm1958, %v1960, %v1956
      %v1962 = vmul.f32 1.0, %v1961
      %v1963 = vrcp.pop %v1735
      %v1964 = vmul.f32 %v1735, %v1963
      %v1965 = vsub.f32 1.0, %v1964
      %v1966 = vmul.f32 %v1963, %v1965
      %v1967 = vadd.f32 %v1963, %v1966
      %vm1968 = vweird.f32 %v1735
      %vm1969 = vweird.f32 %v1963
      %vm1970 = vmor %vm1968, %vm1969
      %v1971 = vsel %vm1970, %v1963, %v1967
      %v1972 = vand.u32 2147483647, %v1735
      %vm1973 = vcmp.eq.f32.partialorder %v1972, 8.507059e+37
      %v1974 = vand.u32 %v1735, 2147483648
      %v1975 = vor.u32 1.1754944e-38, %v1974
      %v1976 = vsel %vm1973, %v1975, %v1971
      %v1977 = vmul.f32 1.0, %v1976
      %v1978 = vrcp.pop %v1736
      %v1979 = vmul.f32 %v1736, %v1978
      %v1980 = vsub.f32 1.0, %v1979
      %v1981 = vmul.f32 %v1978, %v1980
      %v1982 = vadd.f32 %v1978, %v1981
      %vm1983 = vweird.f32 %v1736
      %vm1984 = vweird.f32 %v1978
      %vm1985 = vmor %vm1983, %vm1984
      %v1986 = vsel %vm1985, %v1978, %v1982
      %v1987 = vand.u32 2147483647, %v1736
      %vm1988 = vcmp.eq.f32.partialorder %v1987, 8.507059e+37
      %v1989 = vand.u32 %v1736, 2147483648
      %v1990 = vor.u32 1.1754944e-38, %v1989
      %v1991 = vsel %vm1988, %v1990, %v1986
      %v1992 = vmul.f32 1.0, %v1991
      %v1993 = vrcp.pop %v1737
      %v1994 = vmul.f32 %v1737, %v1993
      %v1995 = vsub.f32 1.0, %v1994
      %v1996 = vmul.f32 %v1993, %v1995
      %v1997 = vadd.f32 %v1993, %v1996
      %vm1998 = vweird.f32 %v1737
      %vm1999 = vweird.f32 %v1993
      %vm2000 = vmor %vm1998, %vm1999
      %v2001 = vsel %vm2000, %v1993, %v1997
      %v2002 = vand.u32 2147483647, %v1737
      %vm2003 = vcmp.eq.f32.partialorder %v2002, 8.507059e+37
      %v2004 = vand.u32 %v1737, 2147483648
      %v2005 = vor.u32 1.1754944e-38, %v2004
      %v2006 = vsel %vm2003, %v2005, %v2001
      %v2007 = vmul.f32 1.0, %v2006
      %v2008 = vrcp.pop %v1738
      %v2009 = vmul.f32 %v1738, %v2008
      %v2010 = vsub.f32 1.0, %v2009
      %v2011 = vmul.f32 %v2008, %v2010
      %v2012 = vadd.f32 %v2008, %v2011
      %vm2013 = vweird.f32 %v1738
      %vm2014 = vweird.f32 %v2008
      %vm2015 = vmor %vm2013, %vm2014
      %v2016 = vsel %vm2015, %v2008, %v2012
      %v2017 = vand.u32 2147483647, %v1738
      %vm2018 = vcmp.eq.f32.partialorder %v2017, 8.507059e+37
      %v2019 = vand.u32 %v1738, 2147483648
      %v2020 = vor.u32 1.1754944e-38, %v2019
      %v2021 = vsel %vm2018, %v2020, %v2016
      %v2022 = vmul.f32 1.0, %v2021
      %v2023 = vrcp.pop %v1739
      %v2024 = vmul.f32 %v1739, %v2023
      %v2025 = vsub.f32 1.0, %v2024
      %v2026 = vmul.f32 %v2023, %v2025
      %v2027 = vadd.f32 %v2023, %v2026
      %vm2028 = vweird.f32 %v1739
      %vm2029 = vweird.f32 %v2023
      %vm2030 = vmor %vm2028, %vm2029
      %v2031 = vsel %vm2030, %v2023, %v2027
      %v2032 = vand.u32 2147483647, %v1739
      %vm2033 = vcmp.eq.f32.partialorder %v2032, 8.507059e+37
      %v2034 = vand.u32 %v1739, 2147483648
      %v2035 = vor.u32 1.1754944e-38, %v2034
      %v2036 = vsel %vm2033, %v2035, %v2031
      %v2037 = vmul.f32 1.0, %v2036
      %v2038 = vrcp.pop %v1740
      %v2039 = vmul.f32 %v1740, %v2038
      %v2040 = vsub.f32 1.0, %v2039
      %v2041 = vmul.f32 %v2038, %v2040
      %v2042 = vadd.f32 %v2038, %v2041
      %vm2043 = vweird.f32 %v1740
      %vm2044 = vweird.f32 %v2038
      %vm2045 = vmor %vm2043, %vm2044
      %v2046 = vsel %vm2045, %v2038, %v2042
      %v2047 = vand.u32 2147483647, %v1740
      %vm2048 = vcmp.eq.f32.partialorder %v2047, 8.507059e+37
      %v2049 = vand.u32 %v1740, 2147483648
      %v2050 = vor.u32 1.1754944e-38, %v2049
      %v2051 = vsel %vm2048, %v2050, %v2046
      %v2052 = vmul.f32 1.0, %v2051
      %v2053 = vrcp.pop %v1741
      %v2054 = vmul.f32 %v1741, %v2053
      %v2055 = vsub.f32 1.0, %v2054
      %v2056 = vmul.f32 %v2053, %v2055
      %v2057 = vadd.f32 %v2053, %v2056
      %vm2058 = vweird.f32 %v1741
      %vm2059 = vweird.f32 %v2053
      %vm2060 = vmor %vm2058, %vm2059
      %v2061 = vsel %vm2060, %v2053, %v2057
      %v2062 = vand.u32 2147483647, %v1741
      %vm2063 = vcmp.eq.f32.partialorder %v2062, 8.507059e+37
      %v2064 = vand.u32 %v1741, 2147483648
      %v2065 = vor.u32 1.1754944e-38, %v2064
      %v2066 = vsel %vm2063, %v2065, %v2061
      %v2067 = vmul.f32 1.0, %v2066
      %v2068 = vrcp.pop %v1742
      %v2069 = vmul.f32 %v1742, %v2068
      %v2070 = vsub.f32 1.0, %v2069
      %v2071 = vmul.f32 %v2068, %v2070
      %v2072 = vadd.f32 %v2068, %v2071
      %vm2073 = vweird.f32 %v1742
      %vm2074 = vweird.f32 %v2068
      %vm2075 = vmor %vm2073, %vm2074
      %v2076 = vsel %vm2075, %v2068, %v2072
      %v2077 = vand.u32 2147483647, %v1742
      %vm2078 = vcmp.eq.f32.partialorder %v2077, 8.507059e+37
      %v2079 = vand.u32 %v1742, 2147483648
      %v2080 = vor.u32 1.1754944e-38, %v2079
      %v2081 = vsel %vm2078, %v2080, %v2076
      %v2082 = vmul.f32 1.0, %v2081
      %v2083 = vrcp.pop %v1743
      %v2084 = vmul.f32 %v1743, %v2083
      %v2085 = vsub.f32 1.0, %v2084
      %v2086 = vmul.f32 %v2083, %v2085
      %v2087 = vadd.f32 %v2083, %v2086
      %vm2088 = vweird.f32 %v1743
      %vm2089 = vweird.f32 %v2083
      %vm2090 = vmor %vm2088, %vm2089
      %v2091 = vsel %vm2090, %v2083, %v2087
      %v2092 = vand.u32 2147483647, %v1743
      %vm2093 = vcmp.eq.f32.partialorder %v2092, 8.507059e+37
      %v2094 = vand.u32 %v1743, 2147483648
      %v2095 = vor.u32 1.1754944e-38, %v2094
      %v2096 = vsel %vm2093, %v2095, %v2091
      %v2097 = vmul.f32 1.0, %v2096
      %v2098 = vrcp.pop %v1744
      %v2099 = vmul.f32 %v1744, %v2098
      %v2100 = vsub.f32 1.0, %v2099
      %v2101 = vmul.f32 %v2098, %v2100
      %v2102 = vadd.f32 %v2098, %v2101
      %vm2103 = vweird.f32 %v1744
      %vm2104 = vweird.f32 %v2098
      %vm2105 = vmor %vm2103, %vm2104
      %v2106 = vsel %vm2105, %v2098, %v2102
      %v2107 = vand.u32 2147483647, %v1744
      %vm2108 = vcmp.eq.f32.partialorder %v2107, 8.507059e+37
      %v2109 = vand.u32 %v1744, 2147483648
      %v2110 = vor.u32 1.1754944e-38, %v2109
      %v2111 = vsel %vm2108, %v2110, %v2106
      %v2112 = vmul.f32 1.0, %v2111
      %v2113 = vrcp.pop %v1745
      %v2114 = vmul.f32 %v1745, %v2113
      %v2115 = vsub.f32 1.0, %v2114
      %v2116 = vmul.f32 %v2113, %v2115
      %v2117 = vadd.f32 %v2113, %v2116
      %vm2118 = vweird.f32 %v1745
      %vm2119 = vweird.f32 %v2113
      %vm2120 = vmor %vm2118, %vm2119
      %v2121 = vsel %vm2120, %v2113, %v2117
      %v2122 = vand.u32 2147483647, %v1745
      %vm2123 = vcmp.eq.f32.partialorder %v2122, 8.507059e+37
      %v2124 = vand.u32 %v1745, 2147483648
      %v2125 = vor.u32 1.1754944e-38, %v2124
      %v2126 = vsel %vm2123, %v2125, %v2121
      %v2127 = vmul.f32 1.0, %v2126
      %v2128 = vrcp.pop %v1746
      %v2129 = vmul.f32 %v1746, %v2128
      %v2130 = vsub.f32 1.0, %v2129
      %v2131 = vmul.f32 %v2128, %v2130
      %v2132 = vadd.f32 %v2128, %v2131
      %vm2133 = vweird.f32 %v1746
      %vm2134 = vweird.f32 %v2128
      %vm2135 = vmor %vm2133, %vm2134
      %v2136 = vsel %vm2135, %v2128, %v2132
      %v2137 = vand.u32 2147483647, %v1746
      %vm2138 = vcmp.eq.f32.partialorder %v2137, 8.507059e+37
      %v2139 = vand.u32 %v1746, 2147483648
      %v2140 = vor.u32 1.1754944e-38, %v2139
      %v2141 = vsel %vm2138, %v2140, %v2136
      %v2142 = vmul.f32 1.0, %v2141
      %v2143 = vrcp.pop %v1747
      %v2144 = vmul.f32 %v1747, %v2143
      %v2145 = vsub.f32 1.0, %v2144
      %v2146 = vmul.f32 %v2143, %v2145
      %v2147 = vadd.f32 %v2143, %v2146
      %vm2148 = vweird.f32 %v1747
      %vm2149 = vweird.f32 %v2143
      %vm2150 = vmor %vm2148, %vm2149
      %v2151 = vsel %vm2150, %v2143, %v2147
      %v2152 = vand.u32 2147483647, %v1747
      %vm2153 = vcmp.eq.f32.partialorder %v2152, 8.507059e+37
      %v2154 = vand.u32 %v1747, 2147483648
      %v2155 = vor.u32 1.1754944e-38, %v2154
      %v2156 = vsel %vm2153, %v2155, %v2151
      %v2157 = vmul.f32 1.0, %v2156
      %v2158 = vrcp.pop %v1748
      %v2159 = vmul.f32 %v1748, %v2158
      %v2160 = vsub.f32 1.0, %v2159
      %v2161 = vmul.f32 %v2158, %v2160
      %v2162 = vadd.f32 %v2158, %v2161
      %vm2163 = vweird.f32 %v1748
      %vm2164 = vweird.f32 %v2158
      %vm2165 = vmor %vm2163, %vm2164
      %v2166 = vsel %vm2165, %v2158, %v2162
      %v2167 = vand.u32 2147483647, %v1748
      %vm2168 = vcmp.eq.f32.partialorder %v2167, 8.507059e+37
      %v2169 = vand.u32 %v1748, 2147483648
      %v2170 = vor.u32 1.1754944e-38, %v2169
      %v2171 = vsel %vm2168, %v2170, %v2166
      %v2172 = vmul.f32 1.0, %v2171
      %v2173 = vrcp.pop %v1749
      %v2174 = vmul.f32 %v1749, %v2173
      %v2175 = vsub.f32 1.0, %v2174
      %v2176 = vmul.f32 %v2173, %v2175
      %v2177 = vadd.f32 %v2173, %v2176
      %vm2178 = vweird.f32 %v1749
      %vm2179 = vweird.f32 %v2173
      %vm2180 = vmor %vm2178, %vm2179
      %v2181 = vsel %vm2180, %v2173, %v2177
      %v2182 = vand.u32 2147483647, %v1749
      %vm2183 = vcmp.eq.f32.partialorder %v2182, 8.507059e+37
      %v2184 = vand.u32 %v1749, 2147483648
      %v2185 = vor.u32 1.1754944e-38, %v2184
      %v2186 = vsel %vm2183, %v2185, %v2181
      %v2187 = vmul.f32 1.0, %v2186
      %v2188 = vrcp.pop %v1750
      %v2189 = vmul.f32 %v1750, %v2188
      %v2190 = vsub.f32 1.0, %v2189
      %v2191 = vmul.f32 %v2188, %v2190
      %v2192 = vadd.f32 %v2188, %v2191
      %vm2193 = vweird.f32 %v1750
      %vm2194 = vweird.f32 %v2188
      %vm2195 = vmor %vm2193, %vm2194
      %v2196 = vsel %vm2195, %v2188, %v2192
      %v2197 = vand.u32 2147483647, %v1750
      %vm2198 = vcmp.eq.f32.partialorder %v2197, 8.507059e+37
      %v2199 = vand.u32 %v1750, 2147483648
      %v2200 = vor.u32 1.1754944e-38, %v2199
      %v2201 = vsel %vm2198, %v2200, %v2196
      %v2202 = vmul.f32 1.0, %v2201
      %v2203 = vrcp.pop %v1751
      %v2204 = vmul.f32 %v1751, %v2203
      %v2205 = vsub.f32 1.0, %v2204
      %v2206 = vmul.f32 %v2203, %v2205
      %v2207 = vadd.f32 %v2203, %v2206
      %vm2208 = vweird.f32 %v1751
      %vm2209 = vweird.f32 %v2203
      %vm2210 = vmor %vm2208, %vm2209
      %v2211 = vsel %vm2210, %v2203, %v2207
      %v2212 = vand.u32 2147483647, %v1751
      %vm2213 = vcmp.eq.f32.partialorder %v2212, 8.507059e+37
      %v2214 = vand.u32 %v1751, 2147483648
      %v2215 = vor.u32 1.1754944e-38, %v2214
      %v2216 = vsel %vm2213, %v2215, %v2211
      %v2217 = vmul.f32 1.0, %v2216
      %v2218 = vrcp.pop %v1752
      %v2219 = vmul.f32 %v1752, %v2218
      %v2220 = vsub.f32 1.0, %v2219
      %v2221 = vmul.f32 %v2218, %v2220
      %v2222 = vadd.f32 %v2218, %v2221
      %vm2223 = vweird.f32 %v1752
      %vm2224 = vweird.f32 %v2218
      %vm2225 = vmor %vm2223, %vm2224
      %v2226 = vsel %vm2225, %v2218, %v2222
      %v2227 = vand.u32 2147483647, %v1752
      %vm2228 = vcmp.eq.f32.partialorder %v2227, 8.507059e+37
      %v2229 = vand.u32 %v1752, 2147483648
      %v2230 = vor.u32 1.1754944e-38, %v2229
      %v2231 = vsel %vm2228, %v2230, %v2226
      %v2232 = vmul.f32 1.0, %v2231
      %v2233 = vmul.f32 %v1530, %v1767
      %v2234 = vmul.f32 %v1533, %v1782
      %v2235 = vmul.f32 %v1536, %v1797
      %v2236 = vmul.f32 %v1539, %v1812
      %v2237 = vmul.f32 %v1542, %v1827
      %v2238 = vmul.f32 %v1545, %v1842
      %v2239 = vmul.f32 %v1548, %v1857
      %v2240 = vmul.f32 %v1551, %v1872
      %v2241 = vmul.f32 %v1554, %v1887
      %v2242 = vmul.f32 %v1557, %v1902
      %v2243 = vmul.f32 %v1560, %v1917
      %v2244 = vmul.f32 %v1563, %v1932
      %v2245 = vmul.f32 %v1566, %v1947
      %v2246 = vmul.f32 %v1569, %v1962
      %v2247 = vmul.f32 %v1572, %v1977
      %v2248 = vmul.f32 %v1575, %v1992
      %v2249 = vmul.f32 %v1578, %v2007
      %v2250 = vmul.f32 %v1581, %v2022
      %v2251 = vmul.f32 %v1584, %v2037
      %v2252 = vmul.f32 %v1587, %v2052
      %v2253 = vmul.f32 %v1590, %v2067
      %v2254 = vmul.f32 %v1593, %v2082
      %v2255 = vmul.f32 %v1596, %v2097
      %v2256 = vmul.f32 %v1599, %v2112
      %v2257 = vmul.f32 %v1602, %v2127
      %v2258 = vmul.f32 %v1605, %v2142
      %v2259 = vmul.f32 %v1608, %v2157
      %v2260 = vmul.f32 %v1611, %v2172
      %v2261 = vmul.f32 %v1614, %v2187
      %v2262 = vmul.f32 %v1617, %v2202
      %v2263 = vmul.f32 %v1620, %v2217
      %v2264 = vmul.f32 %v1623, %v2232
      %v2265 = vld [vmem:[%s5] sm:$0xff]
      %v2266 = vld [vmem:[%s5 + $0x8] sm:$0xff]
      %v2267 = vld [vmem:[%s5 + $0x10] sm:$0xff]
      %v2268 = vld [vmem:[%s5 + $0x18] sm:$0xff]
      %v2269 = vld [vmem:[%s5 + $0x20] sm:$0xff]
      %v2270 = vld [vmem:[%s5 + $0x28] sm:$0xff]
      %v2271 = vld [vmem:[%s5 + $0x30] sm:$0xff]
      %v2272 = vld [vmem:[%s5 + $0x38] sm:$0xff]
      %v2273 = vld [vmem:[%s6] sm:$0x1]
      %v2275 = vperm.slane %v2273, 0
      %vm2277 = vcmask 523264
      %v2279 = vsel %vm2277, %v2233, 0
      %v2282 = vsel %vm2277, %v2234, 0
      %v2285 = vsel %vm2277, %v2235, 0
      %v2288 = vsel %vm2277, %v2236, 0
      %v2291 = vsel %vm2277, %v2237, 0
      %v2294 = vsel %vm2277, %v2238, 0
      %v2297 = vsel %vm2277, %v2239, 0
      %v2300 = vsel %vm2277, %v2240, 0
      %v2303 = vsel %vm2277, %v2241, 0
      %v2306 = vsel %vm2277, %v2242, 0
      %v2309 = vsel %vm2277, %v2243, 0
      %v2312 = vsel %vm2277, %v2244, 0
      %v2315 = vsel %vm2277, %v2245, 0
      %v2318 = vsel %vm2277, %v2246, 0
      %v2321 = vsel %vm2277, %v2247, 0
      %v2324 = vsel %vm2277, %v2248, 0
      %v2327 = vsel %vm2277, %v2249, 0
      %v2330 = vsel %vm2277, %v2250, 0
      %v2333 = vsel %vm2277, %v2251, 0
      %v2336 = vsel %vm2277, %v2252, 0
      %v2339 = vsel %vm2277, %v2253, 0
      %v2342 = vsel %vm2277, %v2254, 0
      %v2345 = vsel %vm2277, %v2255, 0
      %v2348 = vsel %vm2277, %v2256, 0
      %v2351 = vsel %vm2277, %v2257, 0
      %v2354 = vsel %vm2277, %v2258, 0
      %v2357 = vsel %vm2277, %v2259, 0
      %v2360 = vsel %vm2277, %v2260, 0
      %v2363 = vsel %vm2277, %v2261, 0
      %v2366 = vsel %vm2277, %v2262, 0
      %v2369 = vsel %vm2277, %v2263, 0
      %v2372 = vsel %vm2277, %v2264, 0
      %2374 = vmatpush.msra.mxu0 0.0
      %2375 = vmatpush.msra.mxu0 0.0
      %2376 = vmatpush.msra.mxu0 0.0
      %2377 = vmatpush.msra.mxu0 0.0
      %2378 = vmatpush.msra.mxu0 0.0
      %2379 = vmatpush.msra.mxu0 0.0
      %2380 = vmatpush.msra.mxu0 0.0
      %2381 = vmatpush.msra.mxu0 0.0
      %2382 = vmatpush.msra.mxu0 %v2272
      %2383 = vmatpush.msra.mxu0 %v2271
      %2384 = vmatpush.msra.mxu0 %v2270
      %2385 = vmatpush.msra.mxu0 %v2269
      %2386 = vmatpush.msra.mxu0 %v2268
      %2387 = vmatpush.msra.mxu0 %v2267
      %2388 = vmatpush.msra.mxu0 %v2266
      %2389 = vmatpush.msra.mxu0 %v2265
      %2390 = vmatmul.f32.gmra.mxu0 %v2279
      %v2391 = vpop.f32.mrf.mxu0
      %v2392 = vadd.f32 %v2275, %v2391
      %2393 = vmatmul.f32.gmra.mxu0 %v2282
      %v2394 = vpop.f32.mrf.mxu0
      %v2395 = vadd.f32 %v2275, %v2394
      %2396 = vmatmul.f32.gmra.mxu0 %v2285
      %v2397 = vpop.f32.mrf.mxu0
      %v2398 = vadd.f32 %v2275, %v2397
      %2399 = vmatmul.f32.gmra.mxu0 %v2288
      %v2400 = vpop.f32.mrf.mxu0
      %v2401 = vadd.f32 %v2275, %v2400
      %2402 = vmatmul.f32.gmra.mxu0 %v2291
      %v2403 = vpop.f32.mrf.mxu0
      %v2404 = vadd.f32 %v2275, %v2403
      %2405 = vmatmul.f32.gmra.mxu0 %v2294
      %v2406 = vpop.f32.mrf.mxu0
      %v2407 = vadd.f32 %v2275, %v2406
      %2408 = vmatmul.f32.gmra.mxu0 %v2297
      %v2409 = vpop.f32.mrf.mxu0
      %v2410 = vadd.f32 %v2275, %v2409
      %2411 = vmatmul.f32.gmra.mxu0 %v2300
      %v2412 = vpop.f32.mrf.mxu0
      %v2413 = vadd.f32 %v2275, %v2412
      %2414 = vmatmul.f32.gmra.mxu0 %v2303
      %v2415 = vpop.f32.mrf.mxu0
      %v2416 = vadd.f32 %v2275, %v2415
      %2417 = vmatmul.f32.gmra.mxu0 %v2306
      %v2418 = vpop.f32.mrf.mxu0
      %v2419 = vadd.f32 %v2275, %v2418
      %2420 = vmatmul.f32.gmra.mxu0 %v2309
      %v2421 = vpop.f32.mrf.mxu0
      %v2422 = vadd.f32 %v2275, %v2421
      %2423 = vmatmul.f32.gmra.mxu0 %v2312
      %v2424 = vpop.f32.mrf.mxu0
      %v2425 = vadd.f32 %v2275, %v2424
      %2426 = vmatmul.f32.gmra.mxu0 %v2315
      %v2427 = vpop.f32.mrf.mxu0
      %v2428 = vadd.f32 %v2275, %v2427
      %2429 = vmatmul.f32.gmra.mxu0 %v2318
      %v2430 = vpop.f32.mrf.mxu0
      %v2431 = vadd.f32 %v2275, %v2430
      %2432 = vmatmul.f32.gmra.mxu0 %v2321
      %v2433 = vpop.f32.mrf.mxu0
      %v2434 = vadd.f32 %v2275, %v2433
      %2435 = vmatmul.f32.gmra.mxu0 %v2324
      %v2436 = vpop.f32.mrf.mxu0
      %v2437 = vadd.f32 %v2275, %v2436
      %2438 = vmatmul.f32.gmra.mxu0 %v2327
      %v2439 = vpop.f32.mrf.mxu0
      %v2440 = vadd.f32 %v2275, %v2439
      %2441 = vmatmul.f32.gmra.mxu0 %v2330
      %v2442 = vpop.f32.mrf.mxu0
      %v2443 = vadd.f32 %v2275, %v2442
      %2444 = vmatmul.f32.gmra.mxu0 %v2333
      %v2445 = vpop.f32.mrf.mxu0
      %v2446 = vadd.f32 %v2275, %v2445
      %2447 = vmatmul.f32.gmra.mxu0 %v2336
      %v2448 = vpop.f32.mrf.mxu0
      %v2449 = vadd.f32 %v2275, %v2448
      %2450 = vmatmul.f32.gmra.mxu0 %v2339
      %v2451 = vpop.f32.mrf.mxu0
      %v2452 = vadd.f32 %v2275, %v2451
      %2453 = vmatmul.f32.gmra.mxu0 %v2342
      %v2454 = vpop.f32.mrf.mxu0
      %v2455 = vadd.f32 %v2275, %v2454
      %2456 = vmatmul.f32.gmra.mxu0 %v2345
      %v2457 = vpop.f32.mrf.mxu0
      %v2458 = vadd.f32 %v2275, %v2457
      %2459 = vmatmul.f32.gmra.mxu0 %v2348
      %v2460 = vpop.f32.mrf.mxu0
      %v2461 = vadd.f32 %v2275, %v2460
      %2462 = vmatmul.f32.gmra.mxu0 %v2351
      %v2463 = vpop.f32.mrf.mxu0
      %v2464 = vadd.f32 %v2275, %v2463
      %2465 = vmatmul.f32.gmra.mxu0 %v2354
      %v2466 = vpop.f32.mrf.mxu0
      %v2467 = vadd.f32 %v2275, %v2466
      %2468 = vmatmul.f32.gmra.mxu0 %v2357
      %v2469 = vpop.f32.mrf.mxu0
      %v2470 = vadd.f32 %v2275, %v2469
      %2471 = vmatmul.f32.gmra.mxu0 %v2360
      %v2472 = vpop.f32.mrf.mxu0
      %v2473 = vadd.f32 %v2275, %v2472
      %2474 = vmatmul.f32.gmra.mxu0 %v2363
      %v2475 = vpop.f32.mrf.mxu0
      %v2476 = vadd.f32 %v2275, %v2475
      %2477 = vmatmul.f32.gmra.mxu0 %v2366
      %v2478 = vpop.f32.mrf.mxu0
      %v2479 = vadd.f32 %v2275, %v2478
      %2480 = vmatmul.f32.gmra.mxu0 %v2369
      %v2481 = vpop.f32.mrf.mxu0
      %v2482 = vadd.f32 %v2275, %v2481
      %2483 = vmatmul.f32.gmra.mxu0 %v2372
      %v2484 = vpop.f32.mrf.mxu0
      %v2485 = vadd.f32 %v2275, %v2484
      %2486 = vdwg.mxu0
      %v2487 = vxor.u32 %v2392, 2147483648
      %v2488 = vxor.u32 %v2395, 2147483648
      %v2489 = vxor.u32 %v2398, 2147483648
      %v2490 = vxor.u32 %v2401, 2147483648
      %v2491 = vxor.u32 %v2404, 2147483648
      %v2492 = vxor.u32 %v2407, 2147483648
      %v2493 = vxor.u32 %v2410, 2147483648
      %v2494 = vxor.u32 %v2413, 2147483648
      %v2495 = vxor.u32 %v2416, 2147483648
      %v2496 = vxor.u32 %v2419, 2147483648
      %v2497 = vxor.u32 %v2422, 2147483648
      %v2498 = vxor.u32 %v2425, 2147483648
      %v2499 = vxor.u32 %v2428, 2147483648
      %v2500 = vxor.u32 %v2431, 2147483648
      %v2501 = vxor.u32 %v2434, 2147483648
      %v2502 = vxor.u32 %v2437, 2147483648
      %v2503 = vxor.u32 %v2440, 2147483648
      %v2504 = vxor.u32 %v2443, 2147483648
      %v2505 = vxor.u32 %v2446, 2147483648
      %v2506 = vxor.u32 %v2449, 2147483648
      %v2507 = vxor.u32 %v2452, 2147483648
      %v2508 = vxor.u32 %v2455, 2147483648
      %v2509 = vxor.u32 %v2458, 2147483648
      %v2510 = vxor.u32 %v2461, 2147483648
      %v2511 = vxor.u32 %v2464, 2147483648
      %v2512 = vxor.u32 %v2467, 2147483648
      %v2513 = vxor.u32 %v2470, 2147483648
      %v2514 = vxor.u32 %v2473, 2147483648
      %v2515 = vxor.u32 %v2476, 2147483648
      %v2516 = vxor.u32 %v2479, 2147483648
      %v2517 = vxor.u32 %v2482, 2147483648
      %v2518 = vxor.u32 %v2485, 2147483648
      %v2519 = vmul.f32 %v2487, 1.442695
      %v2520 = vpow.pop %v2519
      %v2521 = vmul.f32 %v2488, 1.442695
      %v2522 = vpow.pop %v2521
      %v2523 = vmul.f32 %v2489, 1.442695
      %v2524 = vpow.pop %v2523
      %v2525 = vmul.f32 %v2490, 1.442695
      %v2526 = vpow.pop %v2525
      %v2527 = vmul.f32 %v2491, 1.442695
      %v2528 = vpow.pop %v2527
      %v2529 = vmul.f32 %v2492, 1.442695
      %v2530 = vpow.pop %v2529
      %v2531 = vmul.f32 %v2493, 1.442695
      %v2532 = vpow.pop %v2531
      %v2533 = vmul.f32 %v2494, 1.442695
      %v2534 = vpow.pop %v2533
      %v2535 = vmul.f32 %v2495, 1.442695
      %v2536 = vpow.pop %v2535
      %v2537 = vmul.f32 %v2496, 1.442695
      %v2538 = vpow.pop %v2537
      %v2539 = vmul.f32 %v2497, 1.442695
      %v2540 = vpow.pop %v2539
      %v2541 = vmul.f32 %v2498, 1.442695
      %v2542 = vpow.pop %v2541
      %v2543 = vmul.f32 %v2499, 1.442695
      %v2544 = vpow.pop %v2543
      %v2545 = vmul.f32 %v2500, 1.442695
      %v2546 = vpow.pop %v2545
      %v2547 = vmul.f32 %v2501, 1.442695
      %v2548 = vpow.pop %v2547
      %v2549 = vmul.f32 %v2502, 1.442695
      %v2550 = vpow.pop %v2549
      %v2551 = vmul.f32 %v2503, 1.442695
      %v2552 = vpow.pop %v2551
      %v2553 = vmul.f32 %v2504, 1.442695
      %v2554 = vpow.pop %v2553
      %v2555 = vmul.f32 %v2505, 1.442695
      %v2556 = vpow.pop %v2555
      %v2557 = vmul.f32 %v2506, 1.442695
      %v2558 = vpow.pop %v2557
      %v2559 = vmul.f32 %v2507, 1.442695
      %v2560 = vpow.pop %v2559
      %v2561 = vmul.f32 %v2508, 1.442695
      %v2562 = vpow.pop %v2561
      %v2563 = vmul.f32 %v2509, 1.442695
      %v2564 = vpow.pop %v2563
      %v2565 = vmul.f32 %v2510, 1.442695
      %v2566 = vpow.pop %v2565
      %v2567 = vmul.f32 %v2511, 1.442695
      %v2568 = vpow.pop %v2567
      %v2569 = vmul.f32 %v2512, 1.442695
      %v2570 = vpow.pop %v2569
      %v2571 = vmul.f32 %v2513, 1.442695
      %v2572 = vpow.pop %v2571
      %v2573 = vmul.f32 %v2514, 1.442695
      %v2574 = vpow.pop %v2573
      %v2575 = vmul.f32 %v2515, 1.442695
      %v2576 = vpow.pop %v2575
      %v2577 = vmul.f32 %v2516, 1.442695
      %v2578 = vpow.pop %v2577
      %v2579 = vmul.f32 %v2517, 1.442695
      %v2580 = vpow.pop %v2579
      %v2581 = vmul.f32 %v2518, 1.442695
      %v2582 = vpow.pop %v2581
      %v2583 = vadd.f32 %v2520, 1.0
      %v2584 = vadd.f32 %v2522, 1.0
      %v2585 = vadd.f32 %v2524, 1.0
      %v2586 = vadd.f32 %v2526, 1.0
      %v2587 = vadd.f32 %v2528, 1.0
      %v2588 = vadd.f32 %v2530, 1.0
      %v2589 = vadd.f32 %v2532, 1.0
      %v2590 = vadd.f32 %v2534, 1.0
      %v2591 = vadd.f32 %v2536, 1.0
      %v2592 = vadd.f32 %v2538, 1.0
      %v2593 = vadd.f32 %v2540, 1.0
      %v2594 = vadd.f32 %v2542, 1.0
      %v2595 = vadd.f32 %v2544, 1.0
      %v2596 = vadd.f32 %v2546, 1.0
      %v2597 = vadd.f32 %v2548, 1.0
      %v2598 = vadd.f32 %v2550, 1.0
      %v2599 = vadd.f32 %v2552, 1.0
      %v2600 = vadd.f32 %v2554, 1.0
      %v2601 = vadd.f32 %v2556, 1.0
      %v2602 = vadd.f32 %v2558, 1.0
      %v2603 = vadd.f32 %v2560, 1.0
      %v2604 = vadd.f32 %v2562, 1.0
      %v2605 = vadd.f32 %v2564, 1.0
      %v2606 = vadd.f32 %v2566, 1.0
      %v2607 = vadd.f32 %v2568, 1.0
      %v2608 = vadd.f32 %v2570, 1.0
      %v2609 = vadd.f32 %v2572, 1.0
      %v2610 = vadd.f32 %v2574, 1.0
      %v2611 = vadd.f32 %v2576, 1.0
      %v2612 = vadd.f32 %v2578, 1.0
      %v2613 = vadd.f32 %v2580, 1.0
      %v2614 = vadd.f32 %v2582, 1.0
      %v2615 = vrcp.pop %v2583
      %v2616 = vmul.f32 %v2583, %v2615
      %v2617 = vsub.f32 1.0, %v2616
      %v2618 = vmul.f32 %v2615, %v2617
      %v2619 = vadd.f32 %v2615, %v2618
      %vm2620 = vweird.f32 %v2583
      %vm2621 = vweird.f32 %v2615
      %vm2622 = vmor %vm2620, %vm2621
      %v2623 = vsel %vm2622, %v2615, %v2619
      %v2624 = vand.u32 2147483647, %v2583
      %vm2625 = vcmp.eq.f32.partialorder %v2624, 8.507059e+37
      %v2626 = vand.u32 %v2583, 2147483648
      %v2627 = vor.u32 1.1754944e-38, %v2626
      %v2628 = vsel %vm2625, %v2627, %v2623
      %v2629 = vmul.f32 1.0, %v2628
      %v2630 = vrcp.pop %v2584
      %v2631 = vmul.f32 %v2584, %v2630
      %v2632 = vsub.f32 1.0, %v2631
      %v2633 = vmul.f32 %v2630, %v2632
      %v2634 = vadd.f32 %v2630, %v2633
      %vm2635 = vweird.f32 %v2584
      %vm2636 = vweird.f32 %v2630
      %vm2637 = vmor %vm2635, %vm2636
      %v2638 = vsel %vm2637, %v2630, %v2634
      %v2639 = vand.u32 2147483647, %v2584
      %vm2640 = vcmp.eq.f32.partialorder %v2639, 8.507059e+37
      %v2641 = vand.u32 %v2584, 2147483648
      %v2642 = vor.u32 1.1754944e-38, %v2641
      %v2643 = vsel %vm2640, %v2642, %v2638
      %v2644 = vmul.f32 1.0, %v2643
      %v2645 = vrcp.pop %v2585
      %v2646 = vmul.f32 %v2585, %v2645
      %v2647 = vsub.f32 1.0, %v2646
      %v2648 = vmul.f32 %v2645, %v2647
      %v2649 = vadd.f32 %v2645, %v2648
      %vm2650 = vweird.f32 %v2585
      %vm2651 = vweird.f32 %v2645
      %vm2652 = vmor %vm2650, %vm2651
      %v2653 = vsel %vm2652, %v2645, %v2649
      %v2654 = vand.u32 2147483647, %v2585
      %vm2655 = vcmp.eq.f32.partialorder %v2654, 8.507059e+37
      %v2656 = vand.u32 %v2585, 2147483648
      %v2657 = vor.u32 1.1754944e-38, %v2656
      %v2658 = vsel %vm2655, %v2657, %v2653
      %v2659 = vmul.f32 1.0, %v2658
      %v2660 = vrcp.pop %v2586
      %v2661 = vmul.f32 %v2586, %v2660
      %v2662 = vsub.f32 1.0, %v2661
      %v2663 = vmul.f32 %v2660, %v2662
      %v2664 = vadd.f32 %v2660, %v2663
      %vm2665 = vweird.f32 %v2586
      %vm2666 = vweird.f32 %v2660
      %vm2667 = vmor %vm2665, %vm2666
      %v2668 = vsel %vm2667, %v2660, %v2664
      %v2669 = vand.u32 2147483647, %v2586
      %vm2670 = vcmp.eq.f32.partialorder %v2669, 8.507059e+37
      %v2671 = vand.u32 %v2586, 2147483648
      %v2672 = vor.u32 1.1754944e-38, %v2671
      %v2673 = vsel %vm2670, %v2672, %v2668
      %v2674 = vmul.f32 1.0, %v2673
      %v2675 = vrcp.pop %v2587
      %v2676 = vmul.f32 %v2587, %v2675
      %v2677 = vsub.f32 1.0, %v2676
      %v2678 = vmul.f32 %v2675, %v2677
      %v2679 = vadd.f32 %v2675, %v2678
      %vm2680 = vweird.f32 %v2587
      %vm2681 = vweird.f32 %v2675
      %vm2682 = vmor %vm2680, %vm2681
      %v2683 = vsel %vm2682, %v2675, %v2679
      %v2684 = vand.u32 2147483647, %v2587
      %vm2685 = vcmp.eq.f32.partialorder %v2684, 8.507059e+37
      %v2686 = vand.u32 %v2587, 2147483648
      %v2687 = vor.u32 1.1754944e-38, %v2686
      %v2688 = vsel %vm2685, %v2687, %v2683
      %v2689 = vmul.f32 1.0, %v2688
      %v2690 = vrcp.pop %v2588
      %v2691 = vmul.f32 %v2588, %v2690
      %v2692 = vsub.f32 1.0, %v2691
      %v2693 = vmul.f32 %v2690, %v2692
      %v2694 = vadd.f32 %v2690, %v2693
      %vm2695 = vweird.f32 %v2588
      %vm2696 = vweird.f32 %v2690
      %vm2697 = vmor %vm2695, %vm2696
      %v2698 = vsel %vm2697, %v2690, %v2694
      %v2699 = vand.u32 2147483647, %v2588
      %vm2700 = vcmp.eq.f32.partialorder %v2699, 8.507059e+37
      %v2701 = vand.u32 %v2588, 2147483648
      %v2702 = vor.u32 1.1754944e-38, %v2701
      %v2703 = vsel %vm2700, %v2702, %v2698
      %v2704 = vmul.f32 1.0, %v2703
      %v2705 = vrcp.pop %v2589
      %v2706 = vmul.f32 %v2589, %v2705
      %v2707 = vsub.f32 1.0, %v2706
      %v2708 = vmul.f32 %v2705, %v2707
      %v2709 = vadd.f32 %v2705, %v2708
      %vm2710 = vweird.f32 %v2589
      %vm2711 = vweird.f32 %v2705
      %vm2712 = vmor %vm2710, %vm2711
      %v2713 = vsel %vm2712, %v2705, %v2709
      %v2714 = vand.u32 2147483647, %v2589
      %vm2715 = vcmp.eq.f32.partialorder %v2714, 8.507059e+37
      %v2716 = vand.u32 %v2589, 2147483648
      %v2717 = vor.u32 1.1754944e-38, %v2716
      %v2718 = vsel %vm2715, %v2717, %v2713
      %v2719 = vmul.f32 1.0, %v2718
      %v2720 = vrcp.pop %v2590
      %v2721 = vmul.f32 %v2590, %v2720
      %v2722 = vsub.f32 1.0, %v2721
      %v2723 = vmul.f32 %v2720, %v2722
      %v2724 = vadd.f32 %v2720, %v2723
      %vm2725 = vweird.f32 %v2590
      %vm2726 = vweird.f32 %v2720
      %vm2727 = vmor %vm2725, %vm2726
      %v2728 = vsel %vm2727, %v2720, %v2724
      %v2729 = vand.u32 2147483647, %v2590
      %vm2730 = vcmp.eq.f32.partialorder %v2729, 8.507059e+37
      %v2731 = vand.u32 %v2590, 2147483648
      %v2732 = vor.u32 1.1754944e-38, %v2731
      %v2733 = vsel %vm2730, %v2732, %v2728
      %v2734 = vmul.f32 1.0, %v2733
      %v2735 = vrcp.pop %v2591
      %v2736 = vmul.f32 %v2591, %v2735
      %v2737 = vsub.f32 1.0, %v2736
      %v2738 = vmul.f32 %v2735, %v2737
      %v2739 = vadd.f32 %v2735, %v2738
      %vm2740 = vweird.f32 %v2591
      %vm2741 = vweird.f32 %v2735
      %vm2742 = vmor %vm2740, %vm2741
      %v2743 = vsel %vm2742, %v2735, %v2739
      %v2744 = vand.u32 2147483647, %v2591
      %vm2745 = vcmp.eq.f32.partialorder %v2744, 8.507059e+37
      %v2746 = vand.u32 %v2591, 2147483648
      %v2747 = vor.u32 1.1754944e-38, %v2746
      %v2748 = vsel %vm2745, %v2747, %v2743
      %v2749 = vmul.f32 1.0, %v2748
      %v2750 = vrcp.pop %v2592
      %v2751 = vmul.f32 %v2592, %v2750
      %v2752 = vsub.f32 1.0, %v2751
      %v2753 = vmul.f32 %v2750, %v2752
      %v2754 = vadd.f32 %v2750, %v2753
      %vm2755 = vweird.f32 %v2592
      %vm2756 = vweird.f32 %v2750
      %vm2757 = vmor %vm2755, %vm2756
      %v2758 = vsel %vm2757, %v2750, %v2754
      %v2759 = vand.u32 2147483647, %v2592
      %vm2760 = vcmp.eq.f32.partialorder %v2759, 8.507059e+37
      %v2761 = vand.u32 %v2592, 2147483648
      %v2762 = vor.u32 1.1754944e-38, %v2761
      %v2763 = vsel %vm2760, %v2762, %v2758
      %v2764 = vmul.f32 1.0, %v2763
      %v2765 = vrcp.pop %v2593
      %v2766 = vmul.f32 %v2593, %v2765
      %v2767 = vsub.f32 1.0, %v2766
      %v2768 = vmul.f32 %v2765, %v2767
      %v2769 = vadd.f32 %v2765, %v2768
      %vm2770 = vweird.f32 %v2593
      %vm2771 = vweird.f32 %v2765
      %vm2772 = vmor %vm2770, %vm2771
      %v2773 = vsel %vm2772, %v2765, %v2769
      %v2774 = vand.u32 2147483647, %v2593
      %vm2775 = vcmp.eq.f32.partialorder %v2774, 8.507059e+37
      %v2776 = vand.u32 %v2593, 2147483648
      %v2777 = vor.u32 1.1754944e-38, %v2776
      %v2778 = vsel %vm2775, %v2777, %v2773
      %v2779 = vmul.f32 1.0, %v2778
      %v2780 = vrcp.pop %v2594
      %v2781 = vmul.f32 %v2594, %v2780
      %v2782 = vsub.f32 1.0, %v2781
      %v2783 = vmul.f32 %v2780, %v2782
      %v2784 = vadd.f32 %v2780, %v2783
      %vm2785 = vweird.f32 %v2594
      %vm2786 = vweird.f32 %v2780
      %vm2787 = vmor %vm2785, %vm2786
      %v2788 = vsel %vm2787, %v2780, %v2784
      %v2789 = vand.u32 2147483647, %v2594
      %vm2790 = vcmp.eq.f32.partialorder %v2789, 8.507059e+37
      %v2791 = vand.u32 %v2594, 2147483648
      %v2792 = vor.u32 1.1754944e-38, %v2791
      %v2793 = vsel %vm2790, %v2792, %v2788
      %v2794 = vmul.f32 1.0, %v2793
      %v2795 = vrcp.pop %v2595
      %v2796 = vmul.f32 %v2595, %v2795
      %v2797 = vsub.f32 1.0, %v2796
      %v2798 = vmul.f32 %v2795, %v2797
      %v2799 = vadd.f32 %v2795, %v2798
      %vm2800 = vweird.f32 %v2595
      %vm2801 = vweird.f32 %v2795
      %vm2802 = vmor %vm2800, %vm2801
      %v2803 = vsel %vm2802, %v2795, %v2799
      %v2804 = vand.u32 2147483647, %v2595
      %vm2805 = vcmp.eq.f32.partialorder %v2804, 8.507059e+37
      %v2806 = vand.u32 %v2595, 2147483648
      %v2807 = vor.u32 1.1754944e-38, %v2806
      %v2808 = vsel %vm2805, %v2807, %v2803
      %v2809 = vmul.f32 1.0, %v2808
      %v2810 = vrcp.pop %v2596
      %v2811 = vmul.f32 %v2596, %v2810
      %v2812 = vsub.f32 1.0, %v2811
      %v2813 = vmul.f32 %v2810, %v2812
      %v2814 = vadd.f32 %v2810, %v2813
      %vm2815 = vweird.f32 %v2596
      %vm2816 = vweird.f32 %v2810
      %vm2817 = vmor %vm2815, %vm2816
      %v2818 = vsel %vm2817, %v2810, %v2814
      %v2819 = vand.u32 2147483647, %v2596
      %vm2820 = vcmp.eq.f32.partialorder %v2819, 8.507059e+37
      %v2821 = vand.u32 %v2596, 2147483648
      %v2822 = vor.u32 1.1754944e-38, %v2821
      %v2823 = vsel %vm2820, %v2822, %v2818
      %v2824 = vmul.f32 1.0, %v2823
      %v2825 = vrcp.pop %v2597
      %v2826 = vmul.f32 %v2597, %v2825
      %v2827 = vsub.f32 1.0, %v2826
      %v2828 = vmul.f32 %v2825, %v2827
      %v2829 = vadd.f32 %v2825, %v2828
      %vm2830 = vweird.f32 %v2597
      %vm2831 = vweird.f32 %v2825
      %vm2832 = vmor %vm2830, %vm2831
      %v2833 = vsel %vm2832, %v2825, %v2829
      %v2834 = vand.u32 2147483647, %v2597
      %vm2835 = vcmp.eq.f32.partialorder %v2834, 8.507059e+37
      %v2836 = vand.u32 %v2597, 2147483648
      %v2837 = vor.u32 1.1754944e-38, %v2836
      %v2838 = vsel %vm2835, %v2837, %v2833
      %v2839 = vmul.f32 1.0, %v2838
      %v2840 = vrcp.pop %v2598
      %v2841 = vmul.f32 %v2598, %v2840
      %v2842 = vsub.f32 1.0, %v2841
      %v2843 = vmul.f32 %v2840, %v2842
      %v2844 = vadd.f32 %v2840, %v2843
      %vm2845 = vweird.f32 %v2598
      %vm2846 = vweird.f32 %v2840
      %vm2847 = vmor %vm2845, %vm2846
      %v2848 = vsel %vm2847, %v2840, %v2844
      %v2849 = vand.u32 2147483647, %v2598
      %vm2850 = vcmp.eq.f32.partialorder %v2849, 8.507059e+37
      %v2851 = vand.u32 %v2598, 2147483648
      %v2852 = vor.u32 1.1754944e-38, %v2851
      %v2853 = vsel %vm2850, %v2852, %v2848
      %v2854 = vmul.f32 1.0, %v2853
      %v2855 = vrcp.pop %v2599
      %v2856 = vmul.f32 %v2599, %v2855
      %v2857 = vsub.f32 1.0, %v2856
      %v2858 = vmul.f32 %v2855, %v2857
      %v2859 = vadd.f32 %v2855, %v2858
      %vm2860 = vweird.f32 %v2599
      %vm2861 = vweird.f32 %v2855
      %vm2862 = vmor %vm2860, %vm2861
      %v2863 = vsel %vm2862, %v2855, %v2859
      %v2864 = vand.u32 2147483647, %v2599
      %vm2865 = vcmp.eq.f32.partialorder %v2864, 8.507059e+37
      %v2866 = vand.u32 %v2599, 2147483648
      %v2867 = vor.u32 1.1754944e-38, %v2866
      %v2868 = vsel %vm2865, %v2867, %v2863
      %v2869 = vmul.f32 1.0, %v2868
      %v2870 = vrcp.pop %v2600
      %v2871 = vmul.f32 %v2600, %v2870
      %v2872 = vsub.f32 1.0, %v2871
      %v2873 = vmul.f32 %v2870, %v2872
      %v2874 = vadd.f32 %v2870, %v2873
      %vm2875 = vweird.f32 %v2600
      %vm2876 = vweird.f32 %v2870
      %vm2877 = vmor %vm2875, %vm2876
      %v2878 = vsel %vm2877, %v2870, %v2874
      %v2879 = vand.u32 2147483647, %v2600
      %vm2880 = vcmp.eq.f32.partialorder %v2879, 8.507059e+37
      %v2881 = vand.u32 %v2600, 2147483648
      %v2882 = vor.u32 1.1754944e-38, %v2881
      %v2883 = vsel %vm2880, %v2882, %v2878
      %v2884 = vmul.f32 1.0, %v2883
      %v2885 = vrcp.pop %v2601
      %v2886 = vmul.f32 %v2601, %v2885
      %v2887 = vsub.f32 1.0, %v2886
      %v2888 = vmul.f32 %v2885, %v2887
      %v2889 = vadd.f32 %v2885, %v2888
      %vm2890 = vweird.f32 %v2601
      %vm2891 = vweird.f32 %v2885
      %vm2892 = vmor %vm2890, %vm2891
      %v2893 = vsel %vm2892, %v2885, %v2889
      %v2894 = vand.u32 2147483647, %v2601
      %vm2895 = vcmp.eq.f32.partialorder %v2894, 8.507059e+37
      %v2896 = vand.u32 %v2601, 2147483648
      %v2897 = vor.u32 1.1754944e-38, %v2896
      %v2898 = vsel %vm2895, %v2897, %v2893
      %v2899 = vmul.f32 1.0, %v2898
      %v2900 = vrcp.pop %v2602
      %v2901 = vmul.f32 %v2602, %v2900
      %v2902 = vsub.f32 1.0, %v2901
      %v2903 = vmul.f32 %v2900, %v2902
      %v2904 = vadd.f32 %v2900, %v2903
      %vm2905 = vweird.f32 %v2602
      %vm2906 = vweird.f32 %v2900
      %vm2907 = vmor %vm2905, %vm2906
      %v2908 = vsel %vm2907, %v2900, %v2904
      %v2909 = vand.u32 2147483647, %v2602
      %vm2910 = vcmp.eq.f32.partialorder %v2909, 8.507059e+37
      %v2911 = vand.u32 %v2602, 2147483648
      %v2912 = vor.u32 1.1754944e-38, %v2911
      %v2913 = vsel %vm2910, %v2912, %v2908
      %v2914 = vmul.f32 1.0, %v2913
      %v2915 = vrcp.pop %v2603
      %v2916 = vmul.f32 %v2603, %v2915
      %v2917 = vsub.f32 1.0, %v2916
      %v2918 = vmul.f32 %v2915, %v2917
      %v2919 = vadd.f32 %v2915, %v2918
      %vm2920 = vweird.f32 %v2603
      %vm2921 = vweird.f32 %v2915
      %vm2922 = vmor %vm2920, %vm2921
      %v2923 = vsel %vm2922, %v2915, %v2919
      %v2924 = vand.u32 2147483647, %v2603
      %vm2925 = vcmp.eq.f32.partialorder %v2924, 8.507059e+37
      %v2926 = vand.u32 %v2603, 2147483648
      %v2927 = vor.u32 1.1754944e-38, %v2926
      %v2928 = vsel %vm2925, %v2927, %v2923
      %v2929 = vmul.f32 1.0, %v2928
      %v2930 = vrcp.pop %v2604
      %v2931 = vmul.f32 %v2604, %v2930
      %v2932 = vsub.f32 1.0, %v2931
      %v2933 = vmul.f32 %v2930, %v2932
      %v2934 = vadd.f32 %v2930, %v2933
      %vm2935 = vweird.f32 %v2604
      %vm2936 = vweird.f32 %v2930
      %vm2937 = vmor %vm2935, %vm2936
      %v2938 = vsel %vm2937, %v2930, %v2934
      %v2939 = vand.u32 2147483647, %v2604
      %vm2940 = vcmp.eq.f32.partialorder %v2939, 8.507059e+37
      %v2941 = vand.u32 %v2604, 2147483648
      %v2942 = vor.u32 1.1754944e-38, %v2941
      %v2943 = vsel %vm2940, %v2942, %v2938
      %v2944 = vmul.f32 1.0, %v2943
      %v2945 = vrcp.pop %v2605
      %v2946 = vmul.f32 %v2605, %v2945
      %v2947 = vsub.f32 1.0, %v2946
      %v2948 = vmul.f32 %v2945, %v2947
      %v2949 = vadd.f32 %v2945, %v2948
      %vm2950 = vweird.f32 %v2605
      %vm2951 = vweird.f32 %v2945
      %vm2952 = vmor %vm2950, %vm2951
      %v2953 = vsel %vm2952, %v2945, %v2949
      %v2954 = vand.u32 2147483647, %v2605
      %vm2955 = vcmp.eq.f32.partialorder %v2954, 8.507059e+37
      %v2956 = vand.u32 %v2605, 2147483648
      %v2957 = vor.u32 1.1754944e-38, %v2956
      %v2958 = vsel %vm2955, %v2957, %v2953
      %v2959 = vmul.f32 1.0, %v2958
      %v2960 = vrcp.pop %v2606
      %v2961 = vmul.f32 %v2606, %v2960
      %v2962 = vsub.f32 1.0, %v2961
      %v2963 = vmul.f32 %v2960, %v2962
      %v2964 = vadd.f32 %v2960, %v2963
      %vm2965 = vweird.f32 %v2606
      %vm2966 = vweird.f32 %v2960
      %vm2967 = vmor %vm2965, %vm2966
      %v2968 = vsel %vm2967, %v2960, %v2964
      %v2969 = vand.u32 2147483647, %v2606
      %vm2970 = vcmp.eq.f32.partialorder %v2969, 8.507059e+37
      %v2971 = vand.u32 %v2606, 2147483648
      %v2972 = vor.u32 1.1754944e-38, %v2971
      %v2973 = vsel %vm2970, %v2972, %v2968
      %v2974 = vmul.f32 1.0, %v2973
      %v2975 = vrcp.pop %v2607
      %v2976 = vmul.f32 %v2607, %v2975
      %v2977 = vsub.f32 1.0, %v2976
      %v2978 = vmul.f32 %v2975, %v2977
      %v2979 = vadd.f32 %v2975, %v2978
      %vm2980 = vweird.f32 %v2607
      %vm2981 = vweird.f32 %v2975
      %vm2982 = vmor %vm2980, %vm2981
      %v2983 = vsel %vm2982, %v2975, %v2979
      %v2984 = vand.u32 2147483647, %v2607
      %vm2985 = vcmp.eq.f32.partialorder %v2984, 8.507059e+37
      %v2986 = vand.u32 %v2607, 2147483648
      %v2987 = vor.u32 1.1754944e-38, %v2986
      %v2988 = vsel %vm2985, %v2987, %v2983
      %v2989 = vmul.f32 1.0, %v2988
      %v2990 = vrcp.pop %v2608
      %v2991 = vmul.f32 %v2608, %v2990
      %v2992 = vsub.f32 1.0, %v2991
      %v2993 = vmul.f32 %v2990, %v2992
      %v2994 = vadd.f32 %v2990, %v2993
      %vm2995 = vweird.f32 %v2608
      %vm2996 = vweird.f32 %v2990
      %vm2997 = vmor %vm2995, %vm2996
      %v2998 = vsel %vm2997, %v2990, %v2994
      %v2999 = vand.u32 2147483647, %v2608
      %vm3000 = vcmp.eq.f32.partialorder %v2999, 8.507059e+37
      %v3001 = vand.u32 %v2608, 2147483648
      %v3002 = vor.u32 1.1754944e-38, %v3001
      %v3003 = vsel %vm3000, %v3002, %v2998
      %v3004 = vmul.f32 1.0, %v3003
      %v3005 = vrcp.pop %v2609
      %v3006 = vmul.f32 %v2609, %v3005
      %v3007 = vsub.f32 1.0, %v3006
      %v3008 = vmul.f32 %v3005, %v3007
      %v3009 = vadd.f32 %v3005, %v3008
      %vm3010 = vweird.f32 %v2609
      %vm3011 = vweird.f32 %v3005
      %vm3012 = vmor %vm3010, %vm3011
      %v3013 = vsel %vm3012, %v3005, %v3009
      %v3014 = vand.u32 2147483647, %v2609
      %vm3015 = vcmp.eq.f32.partialorder %v3014, 8.507059e+37
      %v3016 = vand.u32 %v2609, 2147483648
      %v3017 = vor.u32 1.1754944e-38, %v3016
      %v3018 = vsel %vm3015, %v3017, %v3013
      %v3019 = vmul.f32 1.0, %v3018
      %v3020 = vrcp.pop %v2610
      %v3021 = vmul.f32 %v2610, %v3020
      %v3022 = vsub.f32 1.0, %v3021
      %v3023 = vmul.f32 %v3020, %v3022
      %v3024 = vadd.f32 %v3020, %v3023
      %vm3025 = vweird.f32 %v2610
      %vm3026 = vweird.f32 %v3020
      %vm3027 = vmor %vm3025, %vm3026
      %v3028 = vsel %vm3027, %v3020, %v3024
      %v3029 = vand.u32 2147483647, %v2610
      %vm3030 = vcmp.eq.f32.partialorder %v3029, 8.507059e+37
      %v3031 = vand.u32 %v2610, 2147483648
      %v3032 = vor.u32 1.1754944e-38, %v3031
      %v3033 = vsel %vm3030, %v3032, %v3028
      %v3034 = vmul.f32 1.0, %v3033
      %v3035 = vrcp.pop %v2611
      %v3036 = vmul.f32 %v2611, %v3035
      %v3037 = vsub.f32 1.0, %v3036
      %v3038 = vmul.f32 %v3035, %v3037
      %v3039 = vadd.f32 %v3035, %v3038
      %vm3040 = vweird.f32 %v2611
      %vm3041 = vweird.f32 %v3035
      %vm3042 = vmor %vm3040, %vm3041
      %v3043 = vsel %vm3042, %v3035, %v3039
      %v3044 = vand.u32 2147483647, %v2611
      %vm3045 = vcmp.eq.f32.partialorder %v3044, 8.507059e+37
      %v3046 = vand.u32 %v2611, 2147483648
      %v3047 = vor.u32 1.1754944e-38, %v3046
      %v3048 = vsel %vm3045, %v3047, %v3043
      %v3049 = vmul.f32 1.0, %v3048
      %v3050 = vrcp.pop %v2612
      %v3051 = vmul.f32 %v2612, %v3050
      %v3052 = vsub.f32 1.0, %v3051
      %v3053 = vmul.f32 %v3050, %v3052
      %v3054 = vadd.f32 %v3050, %v3053
      %vm3055 = vweird.f32 %v2612
      %vm3056 = vweird.f32 %v3050
      %vm3057 = vmor %vm3055, %vm3056
      %v3058 = vsel %vm3057, %v3050, %v3054
      %v3059 = vand.u32 2147483647, %v2612
      %vm3060 = vcmp.eq.f32.partialorder %v3059, 8.507059e+37
      %v3061 = vand.u32 %v2612, 2147483648
      %v3062 = vor.u32 1.1754944e-38, %v3061
      %v3063 = vsel %vm3060, %v3062, %v3058
      %v3064 = vmul.f32 1.0, %v3063
      %v3065 = vrcp.pop %v2613
      %v3066 = vmul.f32 %v2613, %v3065
      %v3067 = vsub.f32 1.0, %v3066
      %v3068 = vmul.f32 %v3065, %v3067
      %v3069 = vadd.f32 %v3065, %v3068
      %vm3070 = vweird.f32 %v2613
      %vm3071 = vweird.f32 %v3065
      %vm3072 = vmor %vm3070, %vm3071
      %v3073 = vsel %vm3072, %v3065, %v3069
      %v3074 = vand.u32 2147483647, %v2613
      %vm3075 = vcmp.eq.f32.partialorder %v3074, 8.507059e+37
      %v3076 = vand.u32 %v2613, 2147483648
      %v3077 = vor.u32 1.1754944e-38, %v3076
      %v3078 = vsel %vm3075, %v3077, %v3073
      %v3079 = vmul.f32 1.0, %v3078
      %v3080 = vrcp.pop %v2614
      %v3081 = vmul.f32 %v2614, %v3080
      %v3082 = vsub.f32 1.0, %v3081
      %v3083 = vmul.f32 %v3080, %v3082
      %v3084 = vadd.f32 %v3080, %v3083
      %vm3085 = vweird.f32 %v2614
      %vm3086 = vweird.f32 %v3080
      %vm3087 = vmor %vm3085, %vm3086
      %v3088 = vsel %vm3087, %v3080, %v3084
      %v3089 = vand.u32 2147483647, %v2614
      %vm3090 = vcmp.eq.f32.partialorder %v3089, 8.507059e+37
      %v3091 = vand.u32 %v2614, 2147483648
      %v3092 = vor.u32 1.1754944e-38, %v3091
      %v3093 = vsel %vm3090, %v3092, %v3088
      %v3094 = vmul.f32 1.0, %v3093
      %v3095 = vmul.f32 %v2392, %v2629
      %v3096 = vmul.f32 %v2395, %v2644
      %v3097 = vmul.f32 %v2398, %v2659
      %v3098 = vmul.f32 %v2401, %v2674
      %v3099 = vmul.f32 %v2404, %v2689
      %v3100 = vmul.f32 %v2407, %v2704
      %v3101 = vmul.f32 %v2410, %v2719
      %v3102 = vmul.f32 %v2413, %v2734
      %v3103 = vmul.f32 %v2416, %v2749
      %v3104 = vmul.f32 %v2419, %v2764
      %v3105 = vmul.f32 %v2422, %v2779
      %v3106 = vmul.f32 %v2425, %v2794
      %v3107 = vmul.f32 %v2428, %v2809
      %v3108 = vmul.f32 %v2431, %v2824
      %v3109 = vmul.f32 %v2434, %v2839
      %v3110 = vmul.f32 %v2437, %v2854
      %v3111 = vmul.f32 %v2440, %v2869
      %v3112 = vmul.f32 %v2443, %v2884
      %v3113 = vmul.f32 %v2446, %v2899
      %v3114 = vmul.f32 %v2449, %v2914
      %v3115 = vmul.f32 %v2452, %v2929
      %v3116 = vmul.f32 %v2455, %v2944
      %v3117 = vmul.f32 %v2458, %v2959
      %v3118 = vmul.f32 %v2461, %v2974
      %v3119 = vmul.f32 %v2464, %v2989
      %v3120 = vmul.f32 %v2467, %v3004
      %v3121 = vmul.f32 %v2470, %v3019
      %v3122 = vmul.f32 %v2473, %v3034
      %v3123 = vmul.f32 %v2476, %v3049
      %v3124 = vmul.f32 %v2479, %v3064
      %v3125 = vmul.f32 %v2482, %v3079
      %v3126 = vmul.f32 %v2485, %v3094
      %v3127 = vld [vmem:[%s7] sm:$0xff]
      %v3128 = vld [vmem:[%s7 + $0x8] sm:$0xff]
      %v3129 = vld [vmem:[%s7 + $0x10] sm:$0xff]
      %v3130 = vld [vmem:[%s7 + $0x18] sm:$0xff]
      %v3131 = vld [vmem:[%s8] sm:$0x1]
      %v3133 = vperm.slane %v3131, 0
      %v3136 = vsel %vm368, %v3095, 0
      %v3139 = vsel %vm368, %v3096, 0
      %v3142 = vsel %vm368, %v3097, 0
      %v3145 = vsel %vm368, %v3098, 0
      %v3148 = vsel %vm368, %v3099, 0
      %v3151 = vsel %vm368, %v3100, 0
      %v3154 = vsel %vm368, %v3101, 0
      %v3157 = vsel %vm368, %v3102, 0
      %v3160 = vsel %vm368, %v3103, 0
      %v3163 = vsel %vm368, %v3104, 0
      %v3166 = vsel %vm368, %v3105, 0
      %v3169 = vsel %vm368, %v3106, 0
      %v3172 = vsel %vm368, %v3107, 0
      %v3175 = vsel %vm368, %v3108, 0
      %v3178 = vsel %vm368, %v3109, 0
      %v3181 = vsel %vm368, %v3110, 0
      %v3184 = vsel %vm368, %v3111, 0
      %v3187 = vsel %vm368, %v3112, 0
      %v3190 = vsel %vm368, %v3113, 0
      %v3193 = vsel %vm368, %v3114, 0
      %v3196 = vsel %vm368, %v3115, 0
      %v3199 = vsel %vm368, %v3116, 0
      %v3202 = vsel %vm368, %v3117, 0
      %v3205 = vsel %vm368, %v3118, 0
      %v3208 = vsel %vm368, %v3119, 0
      %v3211 = vsel %vm368, %v3120, 0
      %v3214 = vsel %vm368, %v3121, 0
      %v3217 = vsel %vm368, %v3122, 0
      %v3220 = vsel %vm368, %v3123, 0
      %v3223 = vsel %vm368, %v3124, 0
      %v3226 = vsel %vm368, %v3125, 0
      %v3229 = vsel %vm368, %v3126, 0
      %3231 = vmatpush.msra.mxu0 0.0
      %3232 = vmatpush.msra.mxu0 0.0
      %3233 = vmatpush.msra.mxu0 0.0
      %3234 = vmatpush.msra.mxu0 0.0
      %3235 = vmatpush.msra.mxu0 0.0
      %3236 = vmatpush.msra.mxu0 0.0
      %3237 = vmatpush.msra.mxu0 0.0
      %3238 = vmatpush.msra.mxu0 0.0
      %3239 = vmatpush.msra.mxu0 0.0
      %3240 = vmatpush.msra.mxu0 0.0
      %3241 = vmatpush.msra.mxu0 0.0
      %3242 = vmatpush.msra.mxu0 0.0
      %3243 = vmatpush.msra.mxu0 %v3130
      %3244 = vmatpush.msra.mxu0 %v3129
      %3245 = vmatpush.msra.mxu0 %v3128
      %3246 = vmatpush.msra.mxu0 %v3127
      %3247 = vmatmul.f32.gmra.mxu0 %v3136
      %v3248 = vpop.f32.mrf.mxu0
      %v3249 = vadd.f32 %v3133, %v3248
      %3250 = vmatmul.f32.gmra.mxu0 %v3139
      %v3251 = vpop.f32.mrf.mxu0
      %v3252 = vadd.f32 %v3133, %v3251
      %3253 = vmatmul.f32.gmra.mxu0 %v3142
      %v3254 = vpop.f32.mrf.mxu0
      %v3255 = vadd.f32 %v3133, %v3254
      %3256 = vmatmul.f32.gmra.mxu0 %v3145
      %v3257 = vpop.f32.mrf.mxu0
      %v3258 = vadd.f32 %v3133, %v3257
      %3259 = vmatmul.f32.gmra.mxu0 %v3148
      %v3260 = vpop.f32.mrf.mxu0
      %v3261 = vadd.f32 %v3133, %v3260
      %3262 = vmatmul.f32.gmra.mxu0 %v3151
      %v3263 = vpop.f32.mrf.mxu0
      %v3264 = vadd.f32 %v3133, %v3263
      %3265 = vmatmul.f32.gmra.mxu0 %v3154
      %v3266 = vpop.f32.mrf.mxu0
      %v3267 = vadd.f32 %v3133, %v3266
      %3268 = vmatmul.f32.gmra.mxu0 %v3157
      %v3269 = vpop.f32.mrf.mxu0
      %v3270 = vadd.f32 %v3133, %v3269
      %3271 = vmatmul.f32.gmra.mxu0 %v3160
      %v3272 = vpop.f32.mrf.mxu0
      %v3273 = vadd.f32 %v3133, %v3272
      %3274 = vmatmul.f32.gmra.mxu0 %v3163
      %v3275 = vpop.f32.mrf.mxu0
      %v3276 = vadd.f32 %v3133, %v3275
      %3277 = vmatmul.f32.gmra.mxu0 %v3166
      %v3278 = vpop.f32.mrf.mxu0
      %v3279 = vadd.f32 %v3133, %v3278
      %3280 = vmatmul.f32.gmra.mxu0 %v3169
      %v3281 = vpop.f32.mrf.mxu0
      %v3282 = vadd.f32 %v3133, %v3281
      %3283 = vmatmul.f32.gmra.mxu0 %v3172
      %v3284 = vpop.f32.mrf.mxu0
      %v3285 = vadd.f32 %v3133, %v3284
      %3286 = vmatmul.f32.gmra.mxu0 %v3175
      %v3287 = vpop.f32.mrf.mxu0
      %v3288 = vadd.f32 %v3133, %v3287
      %3289 = vmatmul.f32.gmra.mxu0 %v3178
      %v3290 = vpop.f32.mrf.mxu0
      %v3291 = vadd.f32 %v3133, %v3290
      %3292 = vmatmul.f32.gmra.mxu0 %v3181
      %v3293 = vpop.f32.mrf.mxu0
      %v3294 = vadd.f32 %v3133, %v3293
      %3295 = vmatmul.f32.gmra.mxu0 %v3184
      %v3296 = vpop.f32.mrf.mxu0
      %v3297 = vadd.f32 %v3133, %v3296
      %3298 = vmatmul.f32.gmra.mxu0 %v3187
      %v3299 = vpop.f32.mrf.mxu0
      %v3300 = vadd.f32 %v3133, %v3299
      %3301 = vmatmul.f32.gmra.mxu0 %v3190
      %v3302 = vpop.f32.mrf.mxu0
      %v3303 = vadd.f32 %v3133, %v3302
      %3304 = vmatmul.f32.gmra.mxu0 %v3193
      %v3305 = vpop.f32.mrf.mxu0
      %v3306 = vadd.f32 %v3133, %v3305
      %3307 = vmatmul.f32.gmra.mxu0 %v3196
      %v3308 = vpop.f32.mrf.mxu0
      %v3309 = vadd.f32 %v3133, %v3308
      %3310 = vmatmul.f32.gmra.mxu0 %v3199
      %v3311 = vpop.f32.mrf.mxu0
      %v3312 = vadd.f32 %v3133, %v3311
      %3313 = vmatmul.f32.gmra.mxu0 %v3202
      %v3314 = vpop.f32.mrf.mxu0
      %v3315 = vadd.f32 %v3133, %v3314
      %3316 = vmatmul.f32.gmra.mxu0 %v3205
      %v3317 = vpop.f32.mrf.mxu0
      %v3318 = vadd.f32 %v3133, %v3317
      %3319 = vmatmul.f32.gmra.mxu0 %v3208
      %v3320 = vpop.f32.mrf.mxu0
      %v3321 = vadd.f32 %v3133, %v3320
      %3322 = vmatmul.f32.gmra.mxu0 %v3211
      %v3323 = vpop.f32.mrf.mxu0
      %v3324 = vadd.f32 %v3133, %v3323
      %3325 = vmatmul.f32.gmra.mxu0 %v3214
      %v3326 = vpop.f32.mrf.mxu0
      %v3327 = vadd.f32 %v3133, %v3326
      %3328 = vmatmul.f32.gmra.mxu0 %v3217
      %v3329 = vpop.f32.mrf.mxu0
      %v3330 = vadd.f32 %v3133, %v3329
      %3331 = vmatmul.f32.gmra.mxu0 %v3220
      %v3332 = vpop.f32.mrf.mxu0
      %v3333 = vadd.f32 %v3133, %v3332
      %3334 = vmatmul.f32.gmra.mxu0 %v3223
      %v3335 = vpop.f32.mrf.mxu0
      %v3336 = vadd.f32 %v3133, %v3335
      %3337 = vmatmul.f32.gmra.mxu0 %v3226
      %v3338 = vpop.f32.mrf.mxu0
      %v3339 = vadd.f32 %v3133, %v3338
      %3340 = vmatmul.f32.gmra.mxu0 %v3229
      %v3341 = vpop.f32.mrf.mxu0
      %v3342 = vadd.f32 %v3133, %v3341
      %3343 = vdwg.mxu0
      %v3344 = vtanh.pop %v3249
      %v3345 = vtanh.pop %v3252
      %v3346 = vtanh.pop %v3255
      %v3347 = vtanh.pop %v3258
      %v3348 = vtanh.pop %v3261
      %v3349 = vtanh.pop %v3264
      %v3350 = vtanh.pop %v3267
      %v3351 = vtanh.pop %v3270
      %v3352 = vtanh.pop %v3273
      %v3353 = vtanh.pop %v3276
      %v3354 = vtanh.pop %v3279
      %v3355 = vtanh.pop %v3282
      %v3356 = vtanh.pop %v3285
      %v3357 = vtanh.pop %v3288
      %v3358 = vtanh.pop %v3291
      %v3359 = vtanh.pop %v3294
      %v3360 = vtanh.pop %v3297
      %v3361 = vtanh.pop %v3300
      %v3362 = vtanh.pop %v3303
      %v3363 = vtanh.pop %v3306
      %v3364 = vtanh.pop %v3309
      %v3365 = vtanh.pop %v3312
      %v3366 = vtanh.pop %v3315
      %v3367 = vtanh.pop %v3318
      %v3368 = vtanh.pop %v3321
      %v3369 = vtanh.pop %v3324
      %v3370 = vtanh.pop %v3327
      %v3371 = vtanh.pop %v3330
      %v3372 = vtanh.pop %v3333
      %v3373 = vtanh.pop %v3336
      %v3374 = vtanh.pop %v3339
      %v3375 = vtanh.pop %v3342
      %3376 = vst [vmem:[%s334] sm:$0xff] %v3344
      %3377 = vst [vmem:[%s334 + $0x8] sm:$0xff] %v3345
      %3378 = vst [vmem:[%s334 + $0x10] sm:$0xff] %v3346
      %3379 = vst [vmem:[%s334 + $0x18] sm:$0xff] %v3347
      %3380 = vst [vmem:[%s334 + $0x20] sm:$0xff] %v3348
      %3381 = vst [vmem:[%s334 + $0x28] sm:$0xff] %v3349
      %3382 = vst [vmem:[%s334 + $0x30] sm:$0xff] %v3350
      %3383 = vst [vmem:[%s334 + $0x38] sm:$0xff] %v3351
      %3384 = vst [vmem:[%s334 + $0x40] sm:$0xff] %v3352
      %3385 = vst [vmem:[%s334 + $0x48] sm:$0xff] %v3353
      %3386 = vst [vmem:[%s334 + $0x50] sm:$0xff] %v3354
      %3387 = vst [vmem:[%s334 + $0x58] sm:$0xff] %v3355
      %3388 = vst [vmem:[%s334 + $0x60] sm:$0xff] %v3356
      %3389 = vst [vmem:[%s334 + $0x68] sm:$0xff] %v3357
      %3390 = vst [vmem:[%s334 + $0x70] sm:$0xff] %v3358
      %3391 = vst [vmem:[%s334 + $0x78] sm:$0xff] %v3359
      %3392 = vst [vmem:[%s334 + $0x80] sm:$0xff] %v3360
      %3393 = vst [vmem:[%s334 + $0x88] sm:$0xff] %v3361
      %3394 = vst [vmem:[%s334 + $0x90] sm:$0xff] %v3362
      %3395 = vst [vmem:[%s334 + $0x98] sm:$0xff] %v3363
      %3396 = vst [vmem:[%s334 + $0xa0] sm:$0xff] %v3364
      %3397 = vst [vmem:[%s334 + $0xa8] sm:$0xff] %v3365
      %3398 = vst [vmem:[%s334 + $0xb0] sm:$0xff] %v3366
      %3399 = vst [vmem:[%s334 + $0xb8] sm:$0xff] %v3367
      %3400 = vst [vmem:[%s334 + $0xc0] sm:$0xff] %v3368
      %3401 = vst [vmem:[%s334 + $0xc8] sm:$0xff] %v3369
      %3402 = vst [vmem:[%s334 + $0xd0] sm:$0xff] %v3370
      %3403 = vst [vmem:[%s334 + $0xd8] sm:$0xff] %v3371
      %3404 = vst [vmem:[%s334 + $0xe0] sm:$0xff] %v3372
      %3405 = vst [vmem:[%s334 + $0xe8] sm:$0xff] %v3373
      %3406 = vst [vmem:[%s334 + $0xf0] sm:$0xff] %v3374
      %3407 = vst [vmem:[%s334 + $0xf8] sm:$0xff] %v3375
      %s3408 = smul.u32 32, %s20
      %p3409 = scmp.lt.s32.totalorder %s3408, 63
      %s3410 = scalar_select %p3409, %s3408, 63
      %s3411 = smul.addr %s3410, 8
      %s3412 = scalar_lea.vmem %s9, %s3411
      // Predicated region
      $region57: #{_ddpg_actor_pallas.1} parent=55 // pred_check
        %p3413 = pneg %p232
      $region58: #{_ddpg_actor_pallas.1} parent=55 // pred_check_branch
        %3415 = sbr.rel (%p3413) target = $region60
      $region59: #{_ddpg_actor_pallas.1} parent=55 // pred_region
        %s3416 = smul.u32 32, %s20
      $region60: #{_ddpg_actor_pallas.1} parent=55 // pred_fallthru
        _
    $region56: #{_ddpg_actor_pallas.1} parent=5 // pred_fallthru
      _
    %p3417 = scmp.le.s32.totalorder 2, %s15
    // Predicated region
    $region61: #{_ddpg_actor_pallas.1} parent=5 // pred_check
      %p3418 = pneg %p3417
    $region62: #{_ddpg_actor_pallas.1} parent=5 // pred_check_branch
      %3420 = sbr.rel (%p3418) target = $region64
    $region63: #{_ddpg_actor_pallas.1} parent=5 // pred_region
      %s3421 = ssub.s32 %s15, 2
      // Predicated region
      $region65: #{_ddpg_actor_pallas.1} parent=63 // pred_check
        %p3422 = pneg %p238
      $region66: #{_ddpg_actor_pallas.1} parent=63 // pred_check_branch
        %3424 = sbr.rel (%p3422) target = $region68
      $region67: #{_ddpg_actor_pallas.1} parent=63 // pred_region
        %s3425 = smul.u32 32, %s21
        %p3426 = scmp.lt.s32.totalorder %s3425, 63
        %s3427 = scalar_select %p3426, %s3425, 63
        %s3428 = smul.addr %s3427, 8
        %s3429 = scalar_lea.vmem %s9, %s3428
      $region68: #{_ddpg_actor_pallas.1} parent=63 // pred_fallthru
        _
    $region64: #{_ddpg_actor_pallas.1} parent=5 // pred_fallthru
      _
  $region6: #{_ddpg_actor_pallas.1} parent=0 // loop_footer
    %s19 = sadd.s32 1, %s15
  $region7: #{_ddpg_actor_pallas.1} parent=0 // loop_footer_branch
    %14 = sbr.rel target = $region3
  $region8: #{_ddpg_actor_pallas.1} parent=0 // loop_exit
    _

</llo_original>
